<compile_context>
chip_gen: v5e
topology: v5e:2x2
jax: 0.10.0
libtpu: 0.0.40
codegen_flags: <defaults>
</compile_context>

<pallas_src>
import functools
import numpy as np
import jax
import jax.numpy as jnp
from jax.experimental import pallas as pl
from jax.experimental.pallas import tpu as pltpu

_EPS = 1e-6


# -------- hardware-aware VMEM limit & tile picking -------------------------------

def _vmem_limit_bytes():
    cap = 64 * 1024 * 1024                       # conservative default (v7x per-TC)
    try:
        cap = int(getattr(pltpu.get_tpu_info(), "vmem_capacity_bytes", cap))
    except Exception:
        pass
    # ~75% of physical VMEM, capped so the compiler keeps scratch headroom.
    return int(min(cap * 3 // 4, 100 * 1024 * 1024))


_VMEM_LIMIT = _vmem_limit_bytes()
_TILE_BUDGET = int(_VMEM_LIMIT * 0.45)           # per-kernel working-set budget
_TILE_CANDS = (512, 256, 128, 64, 32, 16, 8)     # multiples of 8 (sublane aligned)


def _pick_tile(total, fits):
    """Largest legal tile along an H axis whose estimated working set fits."""
    if fits(total):
        return total
    for c in _TILE_CANDS:
        if c < total and total % c == 0 and fits(c):
            return c
    for c in reversed(_TILE_CANDS):              # nothing fits: smallest legal tile
        if c < total and total % c == 0:
            return c
    return total


def _gelu(x):
    # TODO(synk): torch.nn.GELU() defaults to the exact erf GELU; tanh-approx is
    # used so the transcendental runs on the EUP slot instead of ~12 VALU ops
    # per element on the widest tensor of the kernel.
    return jax.nn.gelu(x, approximate=True)


# -------- interpolation coefficients (host side, static) ------------------------

def _interp_matrix(n_in, n_out):
    A = np.zeros((n_out, n_in), np.float32)
    if n_in == 1:
        A[:, 0] = 1.0
        return A
    for i in range(n_out):
        src = i * (n_in - 1) / (n_out - 1)        # align_corners=True mapping
        i0 = min(int(np.floor(src)), n_in - 1)
        frac = src - i0
        i1 = min(i0 + 1, n_in - 1)
        A[i, i0] += 1.0 - frac
        A[i, i1] += frac
    return A


# -------- K1: fused upsample + (virtual) concat + LN + 1x1 conv ------------------

def _up_ln_conv_kernel(x_ref, skip_ref, ah_ref, awt_ref, gs_ref, bs_ref, gx_ref,
                       bx_ref, ws_ref, wx_ref, bc_ref, o_ref, *, H, W, Cx, Cs):
    xb = x_ref[0].astype(jnp.float32)                       # (H, W, Cx) low-res
    ah = ah_ref[...]                                        # (TH1, H)
    awt = awt_ref[...]                                      # (W, W2)
    TH1 = ah.shape[0]
    W2 = awt.shape[1]
    cout = ws_ref.shape[1]

    # H upsample: one (TH1,H) x (H, W*Cx) matmul (rows of A_h for this tile).
    y = jnp.dot(ah, xb.reshape(H, W * Cx),
                preferred_element_type=jnp.float32).reshape(TH1, W, Cx)
    # W upsample: one (TH1*Cx, W) x (W, W2) matmul; only last-two-dim transposes.
    y = jnp.transpose(y, (0, 2, 1)).reshape(TH1 * Cx, W)
    y = jnp.dot(y, awt, preferred_element_type=jnp.float32)
    xu = jnp.transpose(y.reshape(TH1, Cx, W2), (0, 2, 1))   # (TH1, W2, Cx)

    sk = skip_ref[0].astype(jnp.float32)                    # (TH1, W2, Cs)
    cin = Cs + Cx
    # channels_first LayerNorm over the (virtually) concatenated channels
    # [skip | x]: joint mean/var, then per-half affine.  No concat tensor.
    u = (jnp.sum(sk, -1, keepdims=True) + jnp.sum(xu, -1, keepdims=True)) / cin
    dsk = sk - u
    dxu = xu - u
    var = (jnp.sum(dsk * dsk, -1, keepdims=True)
           + jnp.sum(dxu * dxu, -1, keepdims=True)) / cin
    inv = jax.lax.rsqrt(var + _EPS)
    nsk = (dsk * inv) * gs_ref[...] + bs_ref[...]
    nxu = (dxu * inv) * gx_ref[...] + bx_ref[...]

    # 1x1 conv with the weight split along input channels (bf16 MXU operands).
    hw = TH1 * W2
    out = (jnp.dot(nsk.reshape(hw, Cs).astype(jnp.bfloat16), ws_ref[...],
                   preferred_element_type=jnp.float32)
           + jnp.dot(nxu.reshape(hw, Cx).astype(jnp.bfloat16), wx_ref[...],
                     preferred_element_type=jnp.float32)
           + bc_ref[...])
    o_ref[0] = out.reshape(TH1, W2, cout).astype(o_ref.dtype)


def up_ln_conv(x, skip, params):
    # x: (B, H, W, Cx), skip: (B, 2H, 2W, Cs) -> (B, 2H, 2W, Cout)
    B, H, W, Cx = x.shape
    _, H2, W2, Cs = skip.shape
    assert H2 == 2 * H and W2 == 2 * W
    Cout = params["conv_w"].shape[1]
    itemsize = x.dtype.itemsize

    def fits(th1):
        ws = (2 * H * W * Cx * itemsize                    # resident low-res x
              + 2 * th1 * W2 * Cs * itemsize               # skip (double-buffered)
              + 2 * th1 * W2 * Cout * itemsize             # out (double-buffered)
              + th1 * W2 * (3 * Cx + 2 * Cs + Cout) * 4    # f32 temporaries
              + 3 * th1 * W * Cx * 4                       # upsample intermediates
              + (Cs + Cx) * Cout * 2 + (H2 * H + W * W2) * 4)
        return ws <= _TILE_BUDGET

    TH1 = _pick_tile(H2, fits)

    ah = jnp.asarray(_interp_matrix(H, H2))                 # (H2, H)
    awt = jnp.asarray(_interp_matrix(W, W2).T)              # (W, W2)
    g, b0, wcv = params["ln0_g"], params["ln0_b"], params["conv_w"]
    gs, gx = g[:, :Cs], g[:, Cs:]
    bs, bx = b0[:, :Cs], b0[:, Cs:]
    ws_w = wcv[:Cs].astype(jnp.bfloat16)                    # bf16 MXU weights
    wx_w = wcv[Cs:].astype(jnp.bfloat16)

    kern = functools.partial(_up_ln_conv_kernel, H=H, W=W, Cx=Cx, Cs=Cs)
    return pl.pallas_call(
        kern,
        out_shape=jax.ShapeDtypeStruct((B, H2, W2, Cout), x.dtype),
        grid=(B, H2 // TH1),
        in_specs=[pl.BlockSpec((1, H, W, Cx), lambda b, h: (b, 0, 0, 0)),
                  pl.BlockSpec((1, TH1, W2, Cs), lambda b, h: (b, h, 0, 0)),
                  pl.BlockSpec((TH1, H), lambda b, h: (h, 0)),
                  pl.BlockSpec((W, W2), lambda b, h: (0, 0)),
                  pl.BlockSpec((1, Cs), lambda b, h: (0, 0)),
                  pl.BlockSpec((1, Cs), lambda b, h: (0, 0)),
                  pl.BlockSpec((1, Cx), lambda b, h: (0, 0)),
                  pl.BlockSpec((1, Cx), lambda b, h: (0, 0)),
                  pl.BlockSpec((Cs, Cout), lambda b, h: (0, 0)),
                  pl.BlockSpec((Cx, Cout), lambda b, h: (0, 0)),
                  pl.BlockSpec((1, Cout), lambda b, h: (0, 0))],
        out_specs=pl.BlockSpec((1, TH1, W2, Cout), lambda b, h: (b, h, 0, 0)),
        compiler_params=pltpu.CompilerParams(
            dimension_semantics=("parallel", "parallel"),
            vmem_limit_bytes=_VMEM_LIMIT),
    )(x, skip, ah, awt, gs, bs, gx, bx, ws_w, wx_w, params["conv_b"])


# -------- K3: ConvNeXt block, H-tiled; halos via two small manual DMAs -----------

def _convnext_kernel(cur_ref, x_hbm_ref, wdw_ref, bdw_ref, g_ref, be_ref,
                     w1_ref, b1_ref, w2_ref, b2_ref, *rest,
                     TH, H, W, C, add_emb):
    if add_emb:
        emb_ref, o_ref, halo_buf, sem = rest
    else:
        o_ref, halo_buf, sem = rest
        emb_ref = None

    b = pl.program_id(0)
    hi = pl.program_id(1)
    nh = pl.num_programs(1)

    # Fetch the 3-row top/bottom halos straight from HBM (clamped row windows).
    top0 = jnp.maximum(hi * TH - 3, 0)
    bot0 = jnp.minimum(hi * TH + TH, H - 3)
    cp_top = pltpu.make_async_copy(x_hbm_ref.at[b, pl.ds(top0, 3)],
                                   halo_buf.at[0], sem.at[0])
    cp_bot = pltpu.make_async_copy(x_hbm_ref.at[b, pl.ds(bot0, 3)],
                                   halo_buf.at[1], sem.at[1])
    cp_top.start()
    cp_bot.start()

    cur = cur_ref[0].astype(jnp.float32)                     # (TH, W, C)
    wdw = wdw_ref[...].astype(jnp.float32)                   # (49, C)

    cp_top.wait()
    cp_bot.wait()
    top = halo_buf[0].astype(jnp.float32)                    # (3, W, C)
    bot = halo_buf[1].astype(jnp.float32)
    top = jnp.where(hi > 0, top, 0.0)                        # image-boundary zeros
    bot = jnp.where(hi < nh - 1, bot, 0.0)
    xfull = jnp.concatenate([top, cur, bot], axis=0)         # (TH+6, W, C)

    # 7x7 depthwise conv: 7 XLU column rolls + static edge masks; only cheap
    # leading-axis dy slices feed the 49 VPU FMAs (no W zero-pad / concat).
    col = jax.lax.broadcasted_iota(jnp.int32, (1, W, 1), 1)
    acc = jnp.zeros((TH, W, C), jnp.float32) + bdw_ref[...]
    for dx in range(7):
        off = dx - 3
        if off == 0:
            sh = xfull
        else:
            sh = pltpu.roll(xfull, (-off) % W, axis=1)
            if off < 0:
                sh = jnp.where(col >= -off, sh, 0.0)
            else:
                sh = jnp.where(col < W - off, sh, 0.0)
        for dy in range(7):
            k = dy * 7 + dx
            acc = acc + sh[dy:dy + TH] * wdw[k:k + 1]

    # LayerNorm (channels_last over C)
    u = jnp.mean(acc, axis=-1, keepdims=True)
    d = acc - u
    s = jnp.mean(d * d, axis=-1, keepdims=True)
    xn = d * jax.lax.rsqrt(s + _EPS)
    xn = xn * g_ref[...] + be_ref[...]

    # pwconv1 -> GELU -> pwconv2 (bf16 MXU operands, f32 accumulation)
    # TODO(synk): if the 4C hidden dominates VMEM (v7x, big C), chunk this over
    # row groups to allow a larger TH.
    h = xn.reshape(TH * W, C).astype(jnp.bfloat16)
    h = jnp.dot(h, w1_ref[...], preferred_element_type=jnp.float32) + b1_ref[...]
    h = _gelu(h)
    h = jnp.dot(h.astype(jnp.bfloat16), w2_ref[...],
                preferred_element_type=jnp.float32) + b2_ref[...]

    out = h.reshape(TH, W, C) + cur
    if add_emb:                              # fused time-embedding broadcast add
        out = out + emb_ref[0]
    o_ref[0] = out.astype(o_ref.dtype)


def convnext_block(x, p, emb=None):
    # x: (B, H, W, C); emb: (B, C) only for the last block (fused add)
    B, H, W, C = x.shape
    assert H >= 3, "spatial height must be >= 3 for the 7x7 halo"
    itemsize = x.dtype.itemsize

    def fits(th):
        halo = th + 6
        ws = (4 * th * W * C * itemsize              # cur + out, double-buffered
              + 6 * W * C * itemsize                 # halo scratch
              + 2 * halo * W * C * 4                 # xfull + one shifted copy
              + 3 * th * W * C * 4                   # cur_f32 / acc / xn
              + th * W * 4 * C * 6                   # pwconv1 hidden (f32+bf16)
              + 8 * C * C * 2 + 70 * C * 4)          # weights
        return ws <= _TILE_BUDGET

    TH = _pick_tile(H, fits)
    add_emb = emb is not None
    w1 = p["w1"].astype(jnp.bfloat16)
    w2 = p["w2"].astype(jnp.bfloat16)

    in_specs = [pl.BlockSpec((1, TH, W, C), lambda b, h: (b, h, 0, 0)),
                pl.BlockSpec(memory_space=pl.ANY),   # raw HBM ref for halo DMAs
                pl.BlockSpec((49, C), lambda b, h: (0, 0)),
                pl.BlockSpec((1, C), lambda b, h: (0, 0)),
                pl.BlockSpec((1, C), lambda b, h: (0, 0)),
                pl.BlockSpec((1, C), lambda b, h: (0, 0)),
                pl.BlockSpec((C, 4 * C), lambda b, h: (0, 0)),
                pl.BlockSpec((1, 4 * C), lambda b, h: (0, 0)),
                pl.BlockSpec((4 * C, C), lambda b, h: (0, 0)),
                pl.BlockSpec((1, C), lambda b, h: (0, 0))]
    args = [x, x, p["dw_w"], p["dw_b"], p["ln_g"], p["ln_b"],
            w1, p["b1"], w2, p["b2"]]
    if add_emb:
        in_specs.append(pl.BlockSpec((1, 1, C), lambda b, h: (b, 0, 0)))
        args.append(emb.reshape(B, 1, C))

    kern = functools.partial(_convnext_kernel, TH=TH, H=H, W=W, C=C,
                             add_emb=add_emb)
    return pl.pallas_call(
        kern,
        out_shape=jax.ShapeDtypeStruct((B, H, W, C), x.dtype),
        grid=(B, H // TH),
        in_specs=in_specs,
        out_specs=pl.BlockSpec((1, TH, W, C), lambda b, h: (b, h, 0, 0)),
        scratch_shapes=[pltpu.VMEM((2, 3, W, C), x.dtype),
                        pltpu.SemaphoreType.DMA((2,))],
        compiler_params=pltpu.CompilerParams(
            dimension_semantics=("parallel", "parallel"),
            vmem_limit_bytes=_VMEM_LIMIT),
    )(*args)


# -------- full Up.forward --------------------------------------------------------

def up_forward(x, skip_x, t, params):
    y = up_ln_conv(x, skip_x, params)            # upsample + concat + LN + 1x1 conv
    # K2: emb = Linear(SiLU(t)) -- tiny (B,E)@(E,C), plain JAX is the right tool.
    emb = (jnp.dot(jax.nn.silu(t.astype(jnp.float32)), params["emb_w"])
           + params["emb_b"]).astype(y.dtype)
    blocks = params["blocks"]
    if not blocks:
        return y + emb[:, None, None, :]
    for i, p in enumerate(blocks):               # emb add fused into the last block
        y = convnext_block(y, p, emb if i == len(blocks) - 1 else None)
    return y
    # TODO(synk): for C < 128 a lane-dense (W*C-flattened) activation layout
    # would avoid masked partial stores; kept NHWC since production C >= 128.


def init_params(key, in_channels, out_channels, num_blocks, emb_dim):
    ks = iter(jax.random.split(key, 8 + 8 * num_blocks))

    def nrm(shape, scale=0.1):
        return scale * jax.random.normal(next(ks), shape, jnp.float32)

    C = out_channels
    params = {
        "ln0_g": 1.0 + nrm((1, in_channels)),        # channel order: [skip | x]
        "ln0_b": nrm((1, in_channels)),
        "conv_w": nrm((in_channels, out_channels)),  # Conv2d 1x1 as (Cin, Cout)
        "conv_b": nrm((1, out_channels)),
        "emb_w": nrm((emb_dim, out_channels)),
        "emb_b": nrm((1, out_channels)),
        "blocks": [],
    }
    for _ in range(num_blocks):
        params["blocks"].append({
            "dw_w": nrm((49, C)),                    # 7x7 depthwise, (ky*7+kx, C)
            "dw_b": nrm((1, C)),
            "ln_g": 1.0 + nrm((1, C)),
            "ln_b": nrm((1, C)),
            "w1": nrm((C, 4 * C)),
            "b1": nrm((1, 4 * C)),
            "w2": nrm((4 * C, C)),
            "b2": nrm((1, C)),
        })
    return params


if __name__ == "__main__":
    key = jax.random.PRNGKey(0)
    k1, k2, k3, kp = jax.random.split(key, 4)

    B, H, W = 2, 8, 8
    c_x, c_skip = 4, 4
    in_channels = c_x + c_skip              # channels after concat = 8
    out_channels = 8
    num_blocks = 2
    emb_dim = 32

    # layout: NHWC. PyTorch equivalents: x (2,4,8,8), skip_x (2,4,16,16), t (2,32)
    x = jax.random.normal(k1, (B, H, W, c_x), jnp.float32)
    skip_x = jax.random.normal(k2, (B, 2 * H, 2 * W, c_skip), jnp.float32)
    t = jax.random.normal(k3, (B, emb_dim), jnp.float32)

    params = init_params(kp, in_channels, out_channels, num_blocks, emb_dim)

    out = up_forward(x, skip_x, t, params)
    jax.block_until_ready(out)
    assert out.shape == (B, 2 * H, 2 * W, out_channels)
    assert bool(jnp.all(jnp.isfinite(out)))
    print("KERNEL_OK")
</pallas_src>

<mosaic_0001>
module attributes {stable_mosaic.version = 11 : i64} {
  func.func @_up_ln_conv_kernel(%arg0: i32, %arg1: i32, %arg2: memref<1x8x8x4xf32, #tpu.memory_space<vmem>>, %arg3: memref<1x16x16x4xf32, #tpu.memory_space<vmem>>, %arg4: memref<16x8xf32, #tpu.memory_space<vmem>>, %arg5: memref<8x16xf32, #tpu.memory_space<vmem>>, %arg6: memref<1x4xf32, #tpu.memory_space<vmem>>, %arg7: memref<1x4xf32, #tpu.memory_space<vmem>>, %arg8: memref<1x4xf32, #tpu.memory_space<vmem>>, %arg9: memref<1x4xf32, #tpu.memory_space<vmem>>, %arg10: memref<4x8xbf16, #tpu.memory_space<vmem>>, %arg11: memref<4x8xbf16, #tpu.memory_space<vmem>>, %arg12: memref<1x8xf32, #tpu.memory_space<vmem>>, %arg13: memref<1x16x16x8xf32, #tpu.memory_space<vmem>>) attributes {dimension_semantics = [#tpu.dimension_semantics<parallel>, #tpu.dimension_semantics<parallel>], iteration_bounds = array<i64: 2, 1>, scalar_prefetch = 0 : i64, scratch_operands = 0 : i64, tpu.core_type = #tpu.core_type<tc>, window_params = [{transform_indices = @transform_0, window_bounds = array<i64: 1, 8, 8, 4>}, {transform_indices = @transform_1, window_bounds = array<i64: 1, 16, 16, 4>}, {transform_indices = @transform_2, window_bounds = array<i64: 16, 8>}, {pipeline_mode = #tpu.pipeline_mode<synchronous>, transform_indices = @transform_3, window_bounds = array<i64: 8, 16>}, {pipeline_mode = #tpu.pipeline_mode<synchronous>, transform_indices = @transform_4, window_bounds = array<i64: 1, 4>}, {pipeline_mode = #tpu.pipeline_mode<synchronous>, transform_indices = @transform_5, window_bounds = array<i64: 1, 4>}, {pipeline_mode = #tpu.pipeline_mode<synchronous>, transform_indices = @transform_6, window_bounds = array<i64: 1, 4>}, {pipeline_mode = #tpu.pipeline_mode<synchronous>, transform_indices = @transform_7, window_bounds = array<i64: 1, 4>}, {pipeline_mode = #tpu.pipeline_mode<synchronous>, transform_indices = @transform_8, window_bounds = array<i64: 4, 8>}, {pipeline_mode = #tpu.pipeline_mode<synchronous>, transform_indices = @transform_9, window_bounds = array<i64: 4, 8>}, {pipeline_mode = #tpu.pipeline_mode<synchronous>, transform_indices = @transform_10, window_bounds = array<i64: 1, 8>}, {transform_indices = @transform_11, window_bounds = array<i64: 1, 16, 16, 8>}]} {
    %c0 = arith.constant 0 : index
    %c0_0 = arith.constant 0 : index
    %c0_1 = arith.constant 0 : index
    %c0_2 = arith.constant 0 : index
    %0 = vector.load %arg2[%c0, %c0_0, %c0_1, %c0_2] : memref<1x8x8x4xf32, #tpu.memory_space<vmem>>, vector<1x8x8x4xf32>
    %1 = vector.shape_cast %0 : vector<1x8x8x4xf32> to vector<8x8x4xf32>
    %c0_3 = arith.constant 0 : index
    %c0_4 = arith.constant 0 : index
    %2 = vector.load %arg4[%c0_3, %c0_4] : memref<16x8xf32, #tpu.memory_space<vmem>>, vector<16x8xf32>
    %c0_5 = arith.constant 0 : index
    %c0_6 = arith.constant 0 : index
    %3 = vector.load %arg5[%c0_5, %c0_6] : memref<8x16xf32, #tpu.memory_space<vmem>>, vector<8x16xf32>
    %4 = vector.shape_cast %1 : vector<8x8x4xf32> to vector<8x32xf32>
    %cst = arith.constant dense<0.000000e+00> : vector<16x32xf32>
    %5 = tpu.matmul %2, %4, %cst {dimension_numbers = #tpu.dot_dimension_numbers<[1], [0], [0], [1], [0, 0, 1, 1], [], []>} : vector<16x8xf32>, vector<8x32xf32>, vector<16x32xf32> -> vector<16x32xf32>
    %6 = vector.shape_cast %5 : vector<16x32xf32> to vector<16x8x4xf32>
    %7 = tpu.transpose %6, [0, 2, 1] : vector<16x8x4xf32> -> vector<16x4x8xf32>
    %8 = vector.shape_cast %7 : vector<16x4x8xf32> to vector<64x8xf32>
    %cst_7 = arith.constant dense<0.000000e+00> : vector<64x16xf32>
    %9 = tpu.matmul %8, %3, %cst_7 {dimension_numbers = #tpu.dot_dimension_numbers<[1], [0], [0], [1], [0, 0, 1, 1], [], []>} : vector<64x8xf32>, vector<8x16xf32>, vector<64x16xf32> -> vector<64x16xf32>
    %10 = vector.shape_cast %9 : vector<64x16xf32> to vector<16x4x16xf32>
    %11 = tpu.transpose %10, [0, 2, 1] : vector<16x4x16xf32> -> vector<16x16x4xf32>
    %c0_8 = arith.constant 0 : index
    %c0_9 = arith.constant 0 : index
    %c0_10 = arith.constant 0 : index
    %c0_11 = arith.constant 0 : index
    %12 = vector.load %arg3[%c0_8, %c0_9, %c0_10, %c0_11] : memref<1x16x16x4xf32, #tpu.memory_space<vmem>>, vector<1x16x16x4xf32>
    %13 = vector.shape_cast %12 : vector<1x16x16x4xf32> to vector<16x16x4xf32>
    %cst_12 = arith.constant dense<0.000000e+00> : vector<16x16xf32>
    %14 = vector.multi_reduction <add>, %13, %cst_12 [2] : vector<16x16x4xf32> to vector<16x16xf32>
    %15 = vector.shape_cast %14 : vector<16x16xf32> to vector<16x16x1xf32>
    %cst_13 = arith.constant dense<0.000000e+00> : vector<16x16xf32>
    %16 = vector.multi_reduction <add>, %11, %cst_13 [2] : vector<16x16x4xf32> to vector<16x16xf32>
    %17 = vector.shape_cast %16 : vector<16x16xf32> to vector<16x16x1xf32>
    %18 = arith.addf %15, %17 : vector<16x16x1xf32>
    %cst_14 = arith.constant 8.000000e+00 : f32
    %19 = vector.broadcast %cst_14 : f32 to vector<16x16x1xf32>
    %20 = arith.divf %18, %19 : vector<16x16x1xf32>
    %21 = vector.broadcast %20 : vector<16x16x1xf32> to vector<16x16x4xf32>
    %22 = arith.subf %13, %21 : vector<16x16x4xf32>
    %23 = vector.broadcast %20 : vector<16x16x1xf32> to vector<16x16x4xf32>
    %24 = arith.subf %11, %23 : vector<16x16x4xf32>
    %25 = arith.mulf %22, %22 : vector<16x16x4xf32>
    %cst_15 = arith.constant dense<0.000000e+00> : vector<16x16xf32>
    %26 = vector.multi_reduction <add>, %25, %cst_15 [2] : vector<16x16x4xf32> to vector<16x16xf32>
    %27 = vector.shape_cast %26 : vector<16x16xf32> to vector<16x16x1xf32>
    %28 = arith.mulf %24, %24 : vector<16x16x4xf32>
    %cst_16 = arith.constant dense<0.000000e+00> : vector<16x16xf32>
    %29 = vector.multi_reduction <add>, %28, %cst_16 [2] : vector<16x16x4xf32> to vector<16x16xf32>
    %30 = vector.shape_cast %29 : vector<16x16xf32> to vector<16x16x1xf32>
    %31 = arith.addf %27, %30 : vector<16x16x1xf32>
    %cst_17 = arith.constant 8.000000e+00 : f32
    %32 = vector.broadcast %cst_17 : f32 to vector<16x16x1xf32>
    %33 = arith.divf %31, %32 : vector<16x16x1xf32>
    %cst_18 = arith.constant 9.99999997E-7 : f32
    %34 = vector.broadcast %cst_18 : f32 to vector<16x16x1xf32>
    %35 = arith.addf %33, %34 : vector<16x16x1xf32>
    %36 = math.rsqrt %35 : vector<16x16x1xf32>
    %37 = vector.broadcast %36 : vector<16x16x1xf32> to vector<16x16x4xf32>
    %38 = arith.mulf %22, %37 : vector<16x16x4xf32>
    %c0_19 = arith.constant 0 : index
    %c0_20 = arith.constant 0 : index
    %39 = vector.load %arg6[%c0_19, %c0_20] : memref<1x4xf32, #tpu.memory_space<vmem>>, vector<1x4xf32>
    %40 = vector.shape_cast %39 : vector<1x4xf32> to vector<1x1x4xf32>
    %41 = vector.broadcast %40 : vector<1x1x4xf32> to vector<16x16x4xf32>
    %42 = arith.mulf %38, %41 : vector<16x16x4xf32>
    %c0_21 = arith.constant 0 : index
    %c0_22 = arith.constant 0 : index
    %43 = vector.load %arg7[%c0_21, %c0_22] : memref<1x4xf32, #tpu.memory_space<vmem>>, vector<1x4xf32>
    %44 = vector.shape_cast %43 : vector<1x4xf32> to vector<1x1x4xf32>
    %45 = vector.broadcast %44 : vector<1x1x4xf32> to vector<16x16x4xf32>
    %46 = arith.addf %42, %45 : vector<16x16x4xf32>
    %47 = vector.broadcast %36 : vector<16x16x1xf32> to vector<16x16x4xf32>
    %48 = arith.mulf %24, %47 : vector<16x16x4xf32>
    %c0_23 = arith.constant 0 : index
    %c0_24 = arith.constant 0 : index
    %49 = vector.load %arg8[%c0_23, %c0_24] : memref<1x4xf32, #tpu.memory_space<vmem>>, vector<1x4xf32>
    %50 = vector.shape_cast %49 : vector<1x4xf32> to vector<1x1x4xf32>
    %51 = vector.broadcast %50 : vector<1x1x4xf32> to vector<16x16x4xf32>
    %52 = arith.mulf %48, %51 : vector<16x16x4xf32>
    %c0_25 = arith.constant 0 : index
    %c0_26 = arith.constant 0 : index
    %53 = vector.load %arg9[%c0_25, %c0_26] : memref<1x4xf32, #tpu.memory_space<vmem>>, vector<1x4xf32>
    %54 = vector.shape_cast %53 : vector<1x4xf32> to vector<1x1x4xf32>
    %55 = vector.broadcast %54 : vector<1x1x4xf32> to vector<16x16x4xf32>
    %56 = arith.addf %52, %55 : vector<16x16x4xf32>
    %57 = vector.shape_cast %46 : vector<16x16x4xf32> to vector<256x4xf32>
    %58 = arith.truncf %57 : vector<256x4xf32> to vector<256x4xbf16>
    %c0_27 = arith.constant 0 : index
    %c0_28 = arith.constant 0 : index
    %59 = vector.load %arg10[%c0_27, %c0_28] : memref<4x8xbf16, #tpu.memory_space<vmem>>, vector<4x8xbf16>
    %cst_29 = arith.constant dense<0.000000e+00> : vector<256x8xf32>
    %60 = tpu.matmul %58, %59, %cst_29 {dimension_numbers = #tpu.dot_dimension_numbers<[1], [0], [0], [1], [0, 0, 1, 1], [], []>} : vector<256x4xbf16>, vector<4x8xbf16>, vector<256x8xf32> -> vector<256x8xf32>
    %61 = vector.shape_cast %56 : vector<16x16x4xf32> to vector<256x4xf32>
    %62 = arith.truncf %61 : vector<256x4xf32> to vector<256x4xbf16>
    %c0_30 = arith.constant 0 : index
    %c0_31 = arith.constant 0 : index
    %63 = vector.load %arg11[%c0_30, %c0_31] : memref<4x8xbf16, #tpu.memory_space<vmem>>, vector<4x8xbf16>
    %cst_32 = arith.constant dense<0.000000e+00> : vector<256x8xf32>
    %64 = tpu.matmul %62, %63, %cst_32 {dimension_numbers = #tpu.dot_dimension_numbers<[1], [0], [0], [1], [0, 0, 1, 1], [], []>} : vector<256x4xbf16>, vector<4x8xbf16>, vector<256x8xf32> -> vector<256x8xf32>
    %65 = arith.addf %60, %64 : vector<256x8xf32>
    %c0_33 = arith.constant 0 : index
    %c0_34 = arith.constant 0 : index
    %66 = vector.load %arg12[%c0_33, %c0_34] : memref<1x8xf32, #tpu.memory_space<vmem>>, vector<1x8xf32>
    %67 = vector.broadcast %66 : vector<1x8xf32> to vector<256x8xf32>
    %68 = arith.addf %65, %67 : vector<256x8xf32>
    %69 = vector.shape_cast %68 : vector<256x8xf32> to vector<16x16x8xf32>
    %c0_35 = arith.constant 0 : index
    %c0_36 = arith.constant 0 : index
    %c0_37 = arith.constant 0 : index
    %c0_38 = arith.constant 0 : index
    %70 = vector.load %arg13[%c0_35, %c0_36, %c0_37, %c0_38] : memref<1x16x16x8xf32, #tpu.memory_space<vmem>>, vector<1x16x16x8xf32>
    %71 = vector.shape_cast %70 : vector<1x16x16x8xf32> to vector<16x16x8xf32>
    %72 = vector.shape_cast %69 : vector<16x16x8xf32> to vector<1x16x16x8xf32>
    tpu.vector_store %arg13[%c0_35, %c0_36, %c0_37, %c0_38], %72 {strides = array<i32>} : memref<1x16x16x8xf32, #tpu.memory_space<vmem>>, vector<1x16x16x8xf32>,
    return
  }
  func.func @transform_0(%arg0: i32, %arg1: i32) -> (i32, i32, i32, i32) {
    %c0_i32 = arith.constant 0 : i32
    %c0_i32_0 = arith.constant 0 : i32
    %c0_i32_1 = arith.constant 0 : i32
    %c0_i32_2 = arith.constant 0 : i32
    return %arg0, %c0_i32, %c0_i32_0, %c0_i32_1 : i32, i32, i32, i32
  }
  func.func @transform_1(%arg0: i32, %arg1: i32) -> (i32, i32, i32, i32) {
    %c0_i32 = arith.constant 0 : i32
    %c0_i32_0 = arith.constant 0 : i32
    %c0_i32_1 = arith.constant 0 : i32
    return %arg0, %arg1, %c0_i32, %c0_i32_0 : i32, i32, i32, i32
  }
  func.func @transform_2(%arg0: i32, %arg1: i32) -> (i32, i32) {
    %c0_i32 = arith.constant 0 : i32
    %c0_i32_0 = arith.constant 0 : i32
    return %arg1, %c0_i32 : i32, i32
  }
  func.func @transform_3(%arg0: i32, %arg1: i32) -> (i32, i32) {
    %c0_i32 = arith.constant 0 : i32
    %c0_i32_0 = arith.constant 0 : i32
    %c0_i32_1 = arith.constant 0 : i32
    return %c0_i32, %c0_i32_0 : i32, i32
  }
  func.func @transform_4(%arg0: i32, %arg1: i32) -> (i32, i32) {
    %c0_i32 = arith.constant 0 : i32
    %c0_i32_0 = arith.constant 0 : i32
    %c0_i32_1 = arith.constant 0 : i32
    return %c0_i32, %c0_i32_0 : i32, i32
  }
  func.func @transform_5(%arg0: i32, %arg1: i32) -> (i32, i32) {
    %c0_i32 = arith.constant 0 : i32
    %c0_i32_0 = arith.constant 0 : i32
    %c0_i32_1 = arith.constant 0 : i32
    return %c0_i32, %c0_i32_0 : i32, i32
  }
  func.func @transform_6(%arg0: i32, %arg1: i32) -> (i32, i32) {
    %c0_i32 = arith.constant 0 : i32
    %c0_i32_0 = arith.constant 0 : i32
    %c0_i32_1 = arith.constant 0 : i32
    return %c0_i32, %c0_i32_0 : i32, i32
  }
  func.func @transform_7(%arg0: i32, %arg1: i32) -> (i32, i32) {
    %c0_i32 = arith.constant 0 : i32
    %c0_i32_0 = arith.constant 0 : i32
    %c0_i32_1 = arith.constant 0 : i32
    return %c0_i32, %c0_i32_0 : i32, i32
  }
  func.func @transform_8(%arg0: i32, %arg1: i32) -> (i32, i32) {
    %c0_i32 = arith.constant 0 : i32
    %c0_i32_0 = arith.constant 0 : i32
    %c0_i32_1 = arith.constant 0 : i32
    return %c0_i32, %c0_i32_0 : i32, i32
  }
  func.func @transform_9(%arg0: i32, %arg1: i32) -> (i32, i32) {
    %c0_i32 = arith.constant 0 : i32
    %c0_i32_0 = arith.constant 0 : i32
    %c0_i32_1 = arith.constant 0 : i32
    return %c0_i32, %c0_i32_0 : i32, i32
  }
  func.func @transform_10(%arg0: i32, %arg1: i32) -> (i32, i32) {
    %c0_i32 = arith.constant 0 : i32
    %c0_i32_0 = arith.constant 0 : i32
    %c0_i32_1 = arith.constant 0 : i32
    return %c0_i32, %c0_i32_0 : i32, i32
  }
  func.func @transform_11(%arg0: i32, %arg1: i32) -> (i32, i32, i32, i32) {
    %c0_i32 = arith.constant 0 : i32
    %c0_i32_0 = arith.constant 0 : i32
    %c0_i32_1 = arith.constant 0 : i32
    return %arg0, %arg1, %c0_i32, %c0_i32_0 : i32, i32, i32, i32
  }
}

</mosaic_0001>

<llo_original>
// kernel: tpu_custom_call.1
$region0: #{tpu_custom_call.1}
  #allocation0 [shape = 'u32[]', space=smem, size = 0x4, offset = 0x4, fixed_abs, tag = 'smem constant byte address 0x4 - core index']
  #allocation1 [shape = 'u32[72,128]{1,0:T(1,128)}', space=vmem, size = 0x9000, scoped, tag = 'internal scratch']
  %s0 = inlined_call_operand.vmem [shape: f32[2,8,8,4], index: 0, kind: input, shape index: {}]
  %s1 = inlined_call_operand.vmem [shape: f32[2,16,16,4], index: 1, kind: input, shape index: {}]
  %s2 = inlined_call_operand.vmem [shape: f32[16,8], index: 2, kind: input, shape index: {}]
  %s3 = inlined_call_operand.vmem [shape: f32[8,16], index: 3, kind: input, shape index: {}]
  %s4 = inlined_call_operand.vmem [shape: f32[1,4], index: 4, kind: input, shape index: {}]
  %s5 = inlined_call_operand.vmem [shape: f32[1,4], index: 5, kind: input, shape index: {}]
  %s6 = inlined_call_operand.vmem [shape: f32[1,4], index: 6, kind: input, shape index: {}]
  %s7 = inlined_call_operand.vmem [shape: f32[1,4], index: 7, kind: input, shape index: {}]
  %s8 = inlined_call_operand.vmem [shape: bf16[4,8], index: 8, kind: input, shape index: {}]
  %s9 = inlined_call_operand.vmem [shape: bf16[4,8], index: 9, kind: input, shape index: {}]
  %s10 = inlined_call_operand.vmem [shape: f32[1,8], index: 10, kind: input, shape index: {}]
  %s11 = inlined_call_operand.vmem [shape: f32[2,16,16,8], index: 11, kind: output, shape index: {}]
  %s12 = sld [smem:[#allocation0]]
  $region77: #{tpu_custom_call.1} parent=0
    _
  %s14 = ssub.s32 1, %s12
  %s15 = scalar_select 0, %s14, %s12
  loop: start=0, step=1, limit=4
  $region2: #{tpu_custom_call.1} parent=0 // loop_pre_header
    _
  $region3: #{tpu_custom_call.1} parent=0 // loop_header
    %s17 = sphi 0, %s21
    %p18 = scmp.ge.s32.totalorder %s17, 4
    %s24 = sphi 0, %s36
    %s25 = sphi 0, %s32
    %s26 = sphi 0, %s24
    %s27 = sphi 0, %s25
    %s28 = sphi 0, %s26
    %s29 = sphi 0, %s27
    %s39 = sphi 0, %s41
    %s42 = sphi 0, %s39
    %s43 = sphi 0, %s42
    %s59 = sphi 0, %s43
    %s67 = sphi 0, %s69
    %s70 = sphi 0, %s67
    %s71 = sphi 0, %s70
    %s87 = sphi 0, %s71
    %s93 = sphi 0, %s95
    %s96 = sphi 0, %s93
    %s97 = sphi 0, %s96
    %s113 = sphi 0, %s97
    %s117 = sphi 0, %s117
    %s119 = sphi 0, %s117
    %s120 = sphi 0, %s119
    %s134 = sphi 0, %s120
    %s138 = sphi 0, %s138
    %s140 = sphi 0, %s138
    %s141 = sphi 0, %s140
    %s155 = sphi 0, %s141
    %s159 = sphi 0, %s159
    %s161 = sphi 0, %s159
    %s162 = sphi 0, %s161
    %s176 = sphi 0, %s162
    %s180 = sphi 0, %s180
    %s182 = sphi 0, %s180
    %s183 = sphi 0, %s182
    %s197 = sphi 0, %s183
    %s201 = sphi 0, %s201
    %s203 = sphi 0, %s201
    %s204 = sphi 0, %s203
    %s218 = sphi 0, %s204
    %s222 = sphi 0, %s222
    %s224 = sphi 0, %s222
    %s225 = sphi 0, %s224
    %s239 = sphi 0, %s225
    %s243 = sphi 0, %s243
    %s245 = sphi 0, %s243
    %s246 = sphi 0, %s245
    %s260 = sphi 0, %s246
    %s264 = sphi 0, %s264
    %s266 = sphi 0, %s264
    %s267 = sphi 0, %s266
    %s281 = sphi 0, %s267
    %s289 = sphi 0, %s291
    %s292 = sphi 0, %s289
    %s293 = sphi 0, %s292
    %s309 = sphi 0, %s293
  $region4: #{tpu_custom_call.1} parent=0 // loop_header_branch
    %20 = sbr.rel (%p18) target = $region8
  $region5: #{tpu_custom_call.1} parent=0 // loop_body
    %s22 = ssub.s32 %s17, 1
    %s23 = ssub.s32 %s17, 2
    %s30 = sadd.s32 1, %s25
    %p31 = scmp.ge.s32.totalorder %s30, 1
    %s32 = scalar_select %p31, 0, %s30
    %s33 = sadd.s32 1, %s24
    %s34 = scalar_select %p31, %s33, %s24
    %p35 = scmp.ge.s32.totalorder %s34, 2
    %s36 = scalar_select %p35, 0, %s34
    %s37 = ssub.s32 %s24, %s36
    %p38 = scmp.eq.s32.totalorder %s37, 0
    %s40 = sadd.s32 %s39, 1
    %s41 = scalar_select %p38, %s39, %s40
    %p44 = pneg %p38
    %p45 = scmp.eq.s32.totalorder %s17, 1
    %p46 = por %p44, %p45
    %p47 = scmp.ne.s32.totalorder %s39, %s42
    %p48 = scmp.eq.s32.totalorder %s17, 0
    %p49 = por %p47, %p48
    %p50 = scmp.ne.s32.totalorder %s39, %s42
    %p51 = scmp.eq.s32.totalorder %s22, 1
    %p52 = por %p50, %p51
    %p53 = scmp.ne.s32.totalorder %s42, %s43
    %p54 = scmp.eq.s32.totalorder %s22, 0
    %p55 = por %p53, %p54
    %p56 = scmp.ne.s32.totalorder %s42, %s43
    %p57 = scmp.eq.s32.totalorder %s23, 1
    %p58 = por %p56, %p57
    %p60 = scmp.ne.s32.totalorder %s43, %s59
    %p61 = scmp.eq.s32.totalorder %s23, 0
    %p62 = por %p60, %p61
    %s63 = ssub.s32 %s24, %s36
    %s64 = ssub.s32 %s25, %s32
    %s65 = sor.u32 %s63, %s64
    %p66 = scmp.eq.s32.totalorder %s65, 0
    %s68 = sadd.s32 %s67, 1
    %s69 = scalar_select %p66, %s67, %s68
    %p72 = pneg %p66
    %p73 = scmp.eq.s32.totalorder %s17, 1
    %p74 = por %p72, %p73
    %p75 = scmp.ne.s32.totalorder %s67, %s70
    %p76 = scmp.eq.s32.totalorder %s17, 0
    %p77 = por %p75, %p76
    %p78 = scmp.ne.s32.totalorder %s67, %s70
    %p79 = scmp.eq.s32.totalorder %s22, 1
    %p80 = por %p78, %p79
    %p81 = scmp.ne.s32.totalorder %s70, %s71
    %p82 = scmp.eq.s32.totalorder %s22, 0
    %p83 = por %p81, %p82
    %p84 = scmp.ne.s32.totalorder %s70, %s71
    %p85 = scmp.eq.s32.totalorder %s23, 1
    %p86 = por %p84, %p85
    %p88 = scmp.ne.s32.totalorder %s71, %s87
    %p89 = scmp.eq.s32.totalorder %s23, 0
    %p90 = por %p88, %p89
    %s91 = ssub.s32 %s25, %s32
    %p92 = scmp.eq.s32.totalorder %s91, 0
    %s94 = sadd.s32 %s93, 1
    %s95 = scalar_select %p92, %s93, %s94
    %p98 = pneg %p92
    %p99 = scmp.eq.s32.totalorder %s17, 1
    %p100 = por %p98, %p99
    %p101 = scmp.ne.s32.totalorder %s93, %s96
    %p102 = scmp.eq.s32.totalorder %s17, 0
    %p103 = por %p101, %p102
    %p104 = scmp.ne.s32.totalorder %s93, %s96
    %p105 = scmp.eq.s32.totalorder %s22, 1
    %p106 = por %p104, %p105
    %p107 = scmp.ne.s32.totalorder %s96, %s97
    %p108 = scmp.eq.s32.totalorder %s22, 0
    %p109 = por %p107, %p108
    %p110 = scmp.ne.s32.totalorder %s96, %s97
    %p111 = scmp.eq.s32.totalorder %s23, 1
    %p112 = por %p110, %p111
    %p114 = scmp.ne.s32.totalorder %s97, %s113
    %p115 = scmp.eq.s32.totalorder %s23, 0
    %p116 = por %p114, %p115
    %s118 = sadd.s32 %s117, 1
    %p121 = scmp.eq.s32.totalorder %s17, 1
    %p122 = scmp.ne.s32.totalorder %s117, %s119
    %p123 = scmp.eq.s32.totalorder %s17, 0
    %p124 = por %p122, %p123
    %p125 = scmp.ne.s32.totalorder %s117, %s119
    %p126 = scmp.eq.s32.totalorder %s22, 1
    %p127 = por %p125, %p126
    %p128 = scmp.ne.s32.totalorder %s119, %s120
    %p129 = scmp.eq.s32.totalorder %s22, 0
    %p130 = por %p128, %p129
    %p131 = scmp.ne.s32.totalorder %s119, %s120
    %p132 = scmp.eq.s32.totalorder %s23, 1
    %p133 = por %p131, %p132
    %p135 = scmp.ne.s32.totalorder %s120, %s134
    %p136 = scmp.eq.s32.totalorder %s23, 0
    %p137 = por %p135, %p136
    %s139 = sadd.s32 %s138, 1
    %p142 = scmp.eq.s32.totalorder %s17, 1
    %p143 = scmp.ne.s32.totalorder %s138, %s140
    %p144 = scmp.eq.s32.totalorder %s17, 0
    %p145 = por %p143, %p144
    %p146 = scmp.ne.s32.totalorder %s138, %s140
    %p147 = scmp.eq.s32.totalorder %s22, 1
    %p148 = por %p146, %p147
    %p149 = scmp.ne.s32.totalorder %s140, %s141
    %p150 = scmp.eq.s32.totalorder %s22, 0
    %p151 = por %p149, %p150
    %p152 = scmp.ne.s32.totalorder %s140, %s141
    %p153 = scmp.eq.s32.totalorder %s23, 1
    %p154 = por %p152, %p153
    %p156 = scmp.ne.s32.totalorder %s141, %s155
    %p157 = scmp.eq.s32.totalorder %s23, 0
    %p158 = por %p156, %p157
    %s160 = sadd.s32 %s159, 1
    %p163 = scmp.eq.s32.totalorder %s17, 1
    %p164 = scmp.ne.s32.totalorder %s159, %s161
    %p165 = scmp.eq.s32.totalorder %s17, 0
    %p166 = por %p164, %p165
    %p167 = scmp.ne.s32.totalorder %s159, %s161
    %p168 = scmp.eq.s32.totalorder %s22, 1
    %p169 = por %p167, %p168
    %p170 = scmp.ne.s32.totalorder %s161, %s162
    %p171 = scmp.eq.s32.totalorder %s22, 0
    %p172 = por %p170, %p171
    %p173 = scmp.ne.s32.totalorder %s161, %s162
    %p174 = scmp.eq.s32.totalorder %s23, 1
    %p175 = por %p173, %p174
    %p177 = scmp.ne.s32.totalorder %s162, %s176
    %p178 = scmp.eq.s32.totalorder %s23, 0
    %p179 = por %p177, %p178
    %s181 = sadd.s32 %s180, 1
    %p184 = scmp.eq.s32.totalorder %s17, 1
    %p185 = scmp.ne.s32.totalorder %s180, %s182
    %p186 = scmp.eq.s32.totalorder %s17, 0
    %p187 = por %p185, %p186
    %p188 = scmp.ne.s32.totalorder %s180, %s182
    %p189 = scmp.eq.s32.totalorder %s22, 1
    %p190 = por %p188, %p189
    %p191 = scmp.ne.s32.totalorder %s182, %s183
    %p192 = scmp.eq.s32.totalorder %s22, 0
    %p193 = por %p191, %p192
    %p194 = scmp.ne.s32.totalorder %s182, %s183
    %p195 = scmp.eq.s32.totalorder %s23, 1
    %p196 = por %p194, %p195
    %p198 = scmp.ne.s32.totalorder %s183, %s197
    %p199 = scmp.eq.s32.totalorder %s23, 0
    %p200 = por %p198, %p199
    %s202 = sadd.s32 %s201, 1
    %p205 = scmp.eq.s32.totalorder %s17, 1
    %p206 = scmp.ne.s32.totalorder %s201, %s203
    %p207 = scmp.eq.s32.totalorder %s17, 0
    %p208 = por %p206, %p207
    %p209 = scmp.ne.s32.totalorder %s201, %s203
    %p210 = scmp.eq.s32.totalorder %s22, 1
    %p211 = por %p209, %p210
    %p212 = scmp.ne.s32.totalorder %s203, %s204
    %p213 = scmp.eq.s32.totalorder %s22, 0
    %p214 = por %p212, %p213
    %p215 = scmp.ne.s32.totalorder %s203, %s204
    %p216 = scmp.eq.s32.totalorder %s23, 1
    %p217 = por %p215, %p216
    %p219 = scmp.ne.s32.totalorder %s204, %s218
    %p220 = scmp.eq.s32.totalorder %s23, 0
    %p221 = por %p219, %p220
    %s223 = sadd.s32 %s222, 1
    %p226 = scmp.eq.s32.totalorder %s17, 1
    %p227 = scmp.ne.s32.totalorder %s222, %s224
    %p228 = scmp.eq.s32.totalorder %s17, 0
    %p229 = por %p227, %p228
    %p230 = scmp.ne.s32.totalorder %s222, %s224
    %p231 = scmp.eq.s32.totalorder %s22, 1
    %p232 = por %p230, %p231
    %p233 = scmp.ne.s32.totalorder %s224, %s225
    %p234 = scmp.eq.s32.totalorder %s22, 0
    %p235 = por %p233, %p234
    %p236 = scmp.ne.s32.totalorder %s224, %s225
    %p237 = scmp.eq.s32.totalorder %s23, 1
    %p238 = por %p236, %p237
    %p240 = scmp.ne.s32.totalorder %s225, %s239
    %p241 = scmp.eq.s32.totalorder %s23, 0
    %p242 = por %p240, %p241
    %s244 = sadd.s32 %s243, 1
    %p247 = scmp.eq.s32.totalorder %s17, 1
    %p248 = scmp.ne.s32.totalorder %s243, %s245
    %p249 = scmp.eq.s32.totalorder %s17, 0
    %p250 = por %p248, %p249
    %p251 = scmp.ne.s32.totalorder %s243, %s245
    %p252 = scmp.eq.s32.totalorder %s22, 1
    %p253 = por %p251, %p252
    %p254 = scmp.ne.s32.totalorder %s245, %s246
    %p255 = scmp.eq.s32.totalorder %s22, 0
    %p256 = por %p254, %p255
    %p257 = scmp.ne.s32.totalorder %s245, %s246
    %p258 = scmp.eq.s32.totalorder %s23, 1
    %p259 = por %p257, %p258
    %p261 = scmp.ne.s32.totalorder %s246, %s260
    %p262 = scmp.eq.s32.totalorder %s23, 0
    %p263 = por %p261, %p262
    %s265 = sadd.s32 %s264, 1
    %p268 = scmp.eq.s32.totalorder %s17, 1
    %p269 = scmp.ne.s32.totalorder %s264, %s266
    %p270 = scmp.eq.s32.totalorder %s17, 0
    %p271 = por %p269, %p270
    %p272 = scmp.ne.s32.totalorder %s264, %s266
    %p273 = scmp.eq.s32.totalorder %s22, 1
    %p274 = por %p272, %p273
    %p275 = scmp.ne.s32.totalorder %s266, %s267
    %p276 = scmp.eq.s32.totalorder %s22, 0
    %p277 = por %p275, %p276
    %p278 = scmp.ne.s32.totalorder %s266, %s267
    %p279 = scmp.eq.s32.totalorder %s23, 1
    %p280 = por %p278, %p279
    %p282 = scmp.ne.s32.totalorder %s267, %s281
    %p283 = scmp.eq.s32.totalorder %s23, 0
    %p284 = por %p282, %p283
    %s285 = ssub.s32 %s24, %s36
    %s286 = ssub.s32 %s25, %s32
    %s287 = sor.u32 %s285, %s286
    %p288 = scmp.eq.s32.totalorder %s287, 0
    %s290 = sadd.s32 %s289, 1
    %s291 = scalar_select %p288, %s289, %s290
    %p294 = pneg %p288
    %p295 = scmp.eq.s32.totalorder %s17, 1
    %p296 = por %p294, %p295
    %p297 = scmp.ne.s32.totalorder %s289, %s292
    %p298 = scmp.eq.s32.totalorder %s17, 0
    %p299 = por %p297, %p298
    %p300 = scmp.ne.s32.totalorder %s289, %s292
    %p301 = scmp.eq.s32.totalorder %s22, 1
    %p302 = por %p300, %p301
    %p303 = scmp.ne.s32.totalorder %s292, %s293
    %p304 = scmp.eq.s32.totalorder %s22, 0
    %p305 = por %p303, %p304
    %p306 = scmp.ne.s32.totalorder %s292, %s293
    %p307 = scmp.eq.s32.totalorder %s23, 1
    %p308 = por %p306, %p307
    %p310 = scmp.ne.s32.totalorder %s293, %s309
    %p311 = scmp.eq.s32.totalorder %s23, 0
    %p312 = por %p310, %p311
    %p313 = scmp.le.s32.totalorder 1, %s17
    %p314 = scmp.lt.s32.totalorder %s17, 3
    %p315 = pnand %p313, %p314
    %p316 = pneg %p315
    // Predicated region
    $region9: #{tpu_custom_call.1} parent=5 // pred_check
      _
    $region10: #{tpu_custom_call.1} parent=5 // pred_check_branch
      %318 = sbr.rel (%p315) target = $region12
    $region11: #{tpu_custom_call.1} parent=5 // pred_region
      %s319 = ssub.s32 %s17, 1
      // Predicated region
      $region13: #{tpu_custom_call.1} parent=11 // pred_check
        %p320 = pneg %p109
      $region14: #{tpu_custom_call.1} parent=11 // pred_check_branch
        %322 = sbr.rel (%p320) target = $region16
      $region15: #{tpu_custom_call.1} parent=11 // pred_region
        %s323 = smul.u32 2, %s27
        %p324 = scmp.lt.s32.totalorder %s323, 1
        %s325 = scalar_select %p324, %s323, 1
        %s326 = smul.addr %s325, 8
        %s327 = scalar_lea.vmem %s2, %s326
        %s328 = smul.u32 2, %s27
      $region16: #{tpu_custom_call.1} parent=11 // pred_fallthru
        _
      // Predicated region
      $region17: #{tpu_custom_call.1} parent=11 // pred_check
        %p329 = pneg %p130
      $region18: #{tpu_custom_call.1} parent=11 // pred_check_branch
        %331 = sbr.rel (%p329) target = $region20
      $region19: #{tpu_custom_call.1} parent=11 // pred_region
        _
      $region20: #{tpu_custom_call.1} parent=11 // pred_fallthru
        _
      // Predicated region
      $region21: #{tpu_custom_call.1} parent=11 // pred_check
        %p332 = pneg %p151
      $region22: #{tpu_custom_call.1} parent=11 // pred_check_branch
        %334 = sbr.rel (%p332) target = $region24
      $region23: #{tpu_custom_call.1} parent=11 // pred_region
        _
      $region24: #{tpu_custom_call.1} parent=11 // pred_fallthru
        _
      // Predicated region
      $region25: #{tpu_custom_call.1} parent=11 // pred_check
        %p335 = pneg %p172
      $region26: #{tpu_custom_call.1} parent=11 // pred_check_branch
        %337 = sbr.rel (%p335) target = $region28
      $region27: #{tpu_custom_call.1} parent=11 // pred_region
        _
      $region28: #{tpu_custom_call.1} parent=11 // pred_fallthru
        _
      // Predicated region
      $region29: #{tpu_custom_call.1} parent=11 // pred_check
        %p338 = pneg %p193
      $region30: #{tpu_custom_call.1} parent=11 // pred_check_branch
        %340 = sbr.rel (%p338) target = $region32
      $region31: #{tpu_custom_call.1} parent=11 // pred_region
        _
      $region32: #{tpu_custom_call.1} parent=11 // pred_fallthru
        _
      // Predicated region
      $region33: #{tpu_custom_call.1} parent=11 // pred_check
        %p341 = pneg %p214
      $region34: #{tpu_custom_call.1} parent=11 // pred_check_branch
        %343 = sbr.rel (%p341) target = $region36
      $region35: #{tpu_custom_call.1} parent=11 // pred_region
        _
      $region36: #{tpu_custom_call.1} parent=11 // pred_fallthru
        _
      // Predicated region
      $region37: #{tpu_custom_call.1} parent=11 // pred_check
        %p344 = pneg %p235
      $region38: #{tpu_custom_call.1} parent=11 // pred_check_branch
        %346 = sbr.rel (%p344) target = $region40
      $region39: #{tpu_custom_call.1} parent=11 // pred_region
        _
      $region40: #{tpu_custom_call.1} parent=11 // pred_fallthru
        _
      // Predicated region
      $region41: #{tpu_custom_call.1} parent=11 // pred_check
        %p347 = pneg %p256
      $region42: #{tpu_custom_call.1} parent=11 // pred_check_branch
        %349 = sbr.rel (%p347) target = $region44
      $region43: #{tpu_custom_call.1} parent=11 // pred_region
        _
      $region44: #{tpu_custom_call.1} parent=11 // pred_fallthru
        _
      // Predicated region
      $region45: #{tpu_custom_call.1} parent=11 // pred_check
        %p350 = pneg %p277
      $region46: #{tpu_custom_call.1} parent=11 // pred_check_branch
        %352 = sbr.rel (%p350) target = $region48
      $region47: #{tpu_custom_call.1} parent=11 // pred_region
        _
      $region48: #{tpu_custom_call.1} parent=11 // pred_fallthru
        _
    $region12: #{tpu_custom_call.1} parent=5 // pred_fallthru
      _
    %p353 = scmp.lt.s32.totalorder %s17, 2
    // Predicated region
    $region49: #{tpu_custom_call.1} parent=5 // pred_check
      %p354 = pneg %p353
    $region50: #{tpu_custom_call.1} parent=5 // pred_check_branch
      %356 = sbr.rel (%p354) target = $region52
    $region51: #{tpu_custom_call.1} parent=5 // pred_region
      // Predicated region
      $region53: #{tpu_custom_call.1} parent=51 // pred_check
        %p357 = pneg %p49
      $region54: #{tpu_custom_call.1} parent=51 // pred_check_branch
        %359 = sbr.rel (%p357) target = $region56
      $region55: #{tpu_custom_call.1} parent=51 // pred_region
        %p360 = scmp.lt.s32.totalorder %s24, 1
        %s361 = scalar_select %p360, %s24, 1
        %s362 = smul.addr %s361, 8
        %s363 = smul.addr %s362, 8
        %s364 = scalar_lea.vmem %s0, %s363
      $region56: #{tpu_custom_call.1} parent=51 // pred_fallthru
        _
      // Predicated region
      $region57: #{tpu_custom_call.1} parent=51 // pred_check
        %p365 = pneg %p77
      $region58: #{tpu_custom_call.1} parent=51 // pred_check_branch
        %367 = sbr.rel (%p365) target = $region60
      $region59: #{tpu_custom_call.1} parent=51 // pred_region
        %s368 = smul.u32 16, %s25
        %p369 = scmp.lt.s32.totalorder %s24, 1
        %s370 = scalar_select %p369, %s24, 1
        %p371 = scmp.lt.s32.totalorder %s368, 15
        %s372 = scalar_select %p371, %s368, 15
        %s373 = smul.addr %s372, 2
        %s374 = smul.addr %s370, 32
        %s375 = sadd.s32 %s373, %s374
        %s376 = smul.addr %s375, 8
        %s377 = scalar_lea.vmem %s1, %s376
        %s378 = smul.u32 16, %s25
      $region60: #{tpu_custom_call.1} parent=51 // pred_fallthru
        _
    $region52: #{tpu_custom_call.1} parent=5 // pred_fallthru
      _
    %p379 = scmp.le.s32.totalorder 1, %s17
    %p380 = scmp.lt.s32.totalorder %s17, 3
    %p381 = pnand %p379, %p380
    %p382 = pneg %p381
    // Predicated region
    $region61: #{tpu_custom_call.1} parent=5 // pred_check
      _
    $region62: #{tpu_custom_call.1} parent=5 // pred_check_branch
      %384 = sbr.rel (%p381) target = $region64
    $region63: #{tpu_custom_call.1} parent=5 // pred_region
      %s385 = ssub.s32 %s17, 1
      %p386 = scmp.lt.s32.totalorder %s26, 1
      %s387 = scalar_select %p386, %s26, 1
      %s388 = smul.addr %s387, 8
      %s389 = smul.addr %s388, 8
      %s390 = scalar_lea.vmem %s0, %s389
      %p391 = pneg %p55
      %p392 = pneg %p52
      %s393 = smul.u32 16, %s27
      %p394 = scmp.lt.s32.totalorder %s26, 1
      %s395 = scalar_select %p394, %s26, 1
      %p396 = scmp.lt.s32.totalorder %s393, 15
      %s397 = scalar_select %p396, %s393, 15
      %s398 = smul.addr %s397, 2
      %s399 = smul.addr %s395, 32
      %s400 = sadd.s32 %s398, %s399
      %s401 = smul.addr %s400, 8
      %s402 = scalar_lea.vmem %s1, %s401
      %p403 = pneg %p83
      %p404 = pneg %p80
      %s405 = smul.u32 2, %s27
      %p406 = scmp.lt.s32.totalorder %s405, 1
      %s407 = scalar_select %p406, %s405, 1
      %s408 = smul.addr %s407, 8
      %s409 = scalar_lea.vmem %s2, %s408
      %p410 = pneg %p109
      %p411 = pneg %p106
      %p412 = pneg %p130
      %p413 = pneg %p127
      %p414 = pneg %p151
      %p415 = pneg %p148
      %p416 = pneg %p172
      %p417 = pneg %p169
      %p418 = pneg %p193
      %p419 = pneg %p190
      %p420 = pneg %p214
      %p421 = pneg %p211
      %p422 = pneg %p235
      %p423 = pneg %p232
      %p424 = pneg %p256
      %p425 = pneg %p253
      %p426 = pneg %p277
      %p427 = pneg %p274
      %p428 = pneg %p305
      %p429 = pneg %p302
      %s430 = smul.u32 16, %s27
      %p431 = scmp.lt.s32.totalorder %s26, 1
      %s432 = scalar_select %p431, %s26, 1
      %p433 = scmp.lt.s32.totalorder %s430, 15
      %s434 = scalar_select %p433, %s430, 15
      %s435 = smul.addr %s434, 2
      %s436 = smul.addr %s432, 32
      %s437 = sadd.s32 %s435, %s436
      %s438 = smul.addr %s437, 8
      %s439 = scalar_lea.vmem %s11, %s438
      %p440 = scmp.lt.s32.totalorder %s26, 1
      %s441 = scalar_select %p440, %s26, 1
      %s442 = smul.addr %s441, 8
      %s443 = smul.addr %s442, 8
      %s444 = scalar_lea.vmem %s0, %s443
      %s445 = smul.u32 16, %s27
      %p446 = scmp.lt.s32.totalorder %s26, 1
      %s447 = scalar_select %p446, %s26, 1
      %p448 = scmp.lt.s32.totalorder %s445, 15
      %s449 = scalar_select %p448, %s445, 15
      %s450 = smul.addr %s449, 2
      %s451 = smul.addr %s447, 32
      %s452 = sadd.s32 %s450, %s451
      %s453 = smul.addr %s452, 8
      %s454 = scalar_lea.vmem %s1, %s453
      %s455 = smul.u32 16, %s27
      %s456 = smul.u32 2, %s27
      %p457 = scmp.lt.s32.totalorder %s456, 1
      %s458 = scalar_select %p457, %s456, 1
      %s459 = smul.addr %s458, 8
      %s460 = scalar_lea.vmem %s2, %s459
      %s461 = smul.u32 2, %s27
      %s462 = smul.u32 16, %s27
      %p463 = scmp.lt.s32.totalorder %s26, 1
      %s464 = scalar_select %p463, %s26, 1
      %p465 = scmp.lt.s32.totalorder %s462, 15
      %s466 = scalar_select %p465, %s462, 15
      %s467 = smul.addr %s466, 2
      %s468 = smul.addr %s464, 32
      %s469 = sadd.s32 %s467, %s468
      %s470 = smul.addr %s469, 8
      %s471 = scalar_lea.vmem %s11, %s470
      %s472 = smul.u32 16, %s27
      %v474 = vld [vmem:[%s444] sm:$0xff]
      %v475 = vld [vmem:[%s444 + $0x8] sm:$0xff]
      %v476 = vld [vmem:[%s444 + $0x10] sm:$0xff]
      %v477 = vld [vmem:[%s444 + $0x18] sm:$0xff]
      %v478 = vld [vmem:[%s444 + $0x20] sm:$0xff]
      %v479 = vld [vmem:[%s444 + $0x28] sm:$0xff]
      %v480 = vld [vmem:[%s444 + $0x30] sm:$0xff]
      %v481 = vld [vmem:[%s444 + $0x38] sm:$0xff]
      %v482 = vld [vmem:[%s460] sm:$0xff]
      %v483 = vld [vmem:[%s460 + $0x8] sm:$0xff]
      %v484 = vld [vmem:[%s3] sm:$0xff]
      %v485 = vrot.slane %v476, 4
      %vm486 = vcmask 1047556
      %v487 = vsel %vm486, %v485, %v474
      %v488 = vrot.slane %v474, 4
      %v489 = vsel %vm486, %v476, %v488
      %v491 = vunpack.c.l.s4 1983009808
      %v492 = vunpack.c.0.s8 %v491
      %v493 = vperm.slane %v487, %v492
      %v495 = vunpack.c.l.s4 1983009808
      %v496 = vunpack.c.0.s8 %v495
      %v497 = vperm.slane %v489, %v496
      %v498 = vrot.slane %v477, 4
      %v499 = vsel %vm486, %v498, %v475
      %v500 = vrot.slane %v475, 4
      %v501 = vsel %vm486, %v477, %v500
      %v503 = vunpack.c.l.s4 1983009808
      %v504 = vunpack.c.0.s8 %v503
      %v505 = vperm.slane %v499, %v504
      %v507 = vunpack.c.l.s4 1983009808
      %v508 = vunpack.c.0.s8 %v507
      %v509 = vperm.slane %v501, %v508
      %v510 = vrot.slane %v480, 4
      %v511 = vsel %vm486, %v510, %v478
      %v512 = vrot.slane %v478, 4
      %v513 = vsel %vm486, %v480, %v512
      %v515 = vunpack.c.l.s4 1983009808
      %v516 = vunpack.c.0.s8 %v515
      %v517 = vperm.slane %v511, %v516
      %v519 = vunpack.c.l.s4 1983009808
      %v520 = vunpack.c.0.s8 %v519
      %v521 = vperm.slane %v513, %v520
      %v522 = vrot.slane %v481, 4
      %v523 = vsel %vm486, %v522, %v479
      %v524 = vrot.slane %v479, 4
      %v525 = vsel %vm486, %v481, %v524
      %v527 = vunpack.c.l.s4 1983009808
      %v528 = vunpack.c.0.s8 %v527
      %v529 = vperm.slane %v523, %v528
      %v531 = vunpack.c.l.s4 1983009808
      %v532 = vunpack.c.0.s8 %v531
      %v533 = vperm.slane %v525, %v532
      %v534 = vrot.slane %v505, 4
      %v535 = vsel %vm486, %v534, %v493
      %v536 = vrot.slane %v493, 4
      %v537 = vsel %vm486, %v505, %v536
      %v539 = vunpack.c.l.s4 1934713408
      %v540 = vunpack.c.0.s8 %v539
      %v541 = vperm.slane %v535, %v540
      %v543 = vunpack.c.l.s4 1934713408
      %v544 = vunpack.c.0.s8 %v543
      %v545 = vperm.slane %v537, %v544
      %v546 = vrot.slane %v509, 4
      %v547 = vsel %vm486, %v546, %v497
      %v548 = vrot.slane %v497, 4
      %v549 = vsel %vm486, %v509, %v548
      %v551 = vunpack.c.l.s4 1934713408
      %v552 = vunpack.c.0.s8 %v551
      %v553 = vperm.slane %v547, %v552
      %v555 = vunpack.c.l.s4 1934713408
      %v556 = vunpack.c.0.s8 %v555
      %v557 = vperm.slane %v549, %v556
      %v558 = vrot.slane %v529, 4
      %v559 = vsel %vm486, %v558, %v517
      %v560 = vrot.slane %v517, 4
      %v561 = vsel %vm486, %v529, %v560
      %v563 = vunpack.c.l.s4 1934713408
      %v564 = vunpack.c.0.s8 %v563
      %v565 = vperm.slane %v559, %v564
      %v567 = vunpack.c.l.s4 1934713408
      %v568 = vunpack.c.0.s8 %v567
      %v569 = vperm.slane %v561, %v568
      %v570 = vrot.slane %v533, 4
      %v571 = vsel %vm486, %v570, %v521
      %v572 = vrot.slane %v521, 4
      %v573 = vsel %vm486, %v533, %v572
      %v575 = vunpack.c.l.s4 1934713408
      %v576 = vunpack.c.0.s8 %v575
      %v577 = vperm.slane %v571, %v576
      %v579 = vunpack.c.l.s4 1934713408
      %v580 = vunpack.c.0.s8 %v579
      %v581 = vperm.slane %v573, %v580
      %v582 = vrot.slane %v565, 4
      %v583 = vsel %vm486, %v582, %v541
      %v584 = vrot.slane %v541, 4
      %v585 = vsel %vm486, %v565, %v584
      %v586 = vrot.slane %v569, 4
      %v587 = vsel %vm486, %v586, %v545
      %v588 = vrot.slane %v545, 4
      %v589 = vsel %vm486, %v569, %v588
      %v590 = vrot.slane %v577, 4
      %v591 = vsel %vm486, %v590, %v553
      %v592 = vrot.slane %v553, 4
      %v593 = vsel %vm486, %v577, %v592
      %v594 = vrot.slane %v581, 4
      %v595 = vsel %vm486, %v594, %v557
      %v596 = vrot.slane %v557, 4
      %v597 = vsel %vm486, %v581, %v596
      %599 = vrot.lane.b32.xlu0 %v585, 4
      %v600 = vpop.permute.xlu0 %599
      %603 = vrot.lane.b32.xlu0 %v587, 8
      %v604 = vpop.permute.xlu0 %603
      %607 = vrot.lane.b32.xlu0 %v589, 12
      %v608 = vpop.permute.xlu0 %607
      %611 = vrot.lane.b32.xlu0 %v591, 16
      %v612 = vpop.permute.xlu0 %611
      %615 = vrot.lane.b32.xlu0 %v593, 20
      %v616 = vpop.permute.xlu0 %615
      %619 = vrot.lane.b32.xlu0 %v595, 24
      %v620 = vpop.permute.xlu0 %619
      %623 = vrot.lane.b32.xlu0 %v597, 28
      %v624 = vpop.permute.xlu0 %623
      %vm626 = vcmask 31744
      %v627 = vsel %vm626, %v583, %v600
      %vm628 = vcmask 64512
      %v629 = vsel %vm628, %v627, %v604
      %vm630 = vcmask 97280
      %v631 = vsel %vm630, %v629, %v608
      %vm632 = vcmask 130048
      %v633 = vsel %vm632, %v631, %v612
      %vm634 = vcmask 162816
      %v635 = vsel %vm634, %v633, %v616
      %vm636 = vcmask 195584
      %v637 = vsel %vm636, %v635, %v620
      %vm638 = vcmask 228352
      %v639 = vsel %vm638, %v637, %v624
      %v641 = vsel %vm628, %v482, 0
      %v644 = vsel %vm628, %v483, 0
      %646 = vmatpush.msra.mxu0 0.0
      %647 = vmatpush.msra.mxu0 0.0
      %648 = vmatpush.msra.mxu0 0.0
      %649 = vmatpush.msra.mxu0 0.0
      %650 = vmatpush.msra.mxu0 0.0
      %651 = vmatpush.msra.mxu0 0.0
      %652 = vmatpush.msra.mxu0 0.0
      %653 = vmatpush.msra.mxu0 0.0
      %654 = vmatpush.msra.mxu0 0.0
      %655 = vmatpush.msra.mxu0 0.0
      %656 = vmatpush.msra.mxu0 0.0
      %657 = vmatpush.msra.mxu0 0.0
      %658 = vmatpush.msra.mxu0 0.0
      %659 = vmatpush.msra.mxu0 0.0
      %660 = vmatpush.msra.mxu0 0.0
      %661 = vmatpush.msra.mxu0 %v639
      %662 = vmatmul.f32.gmra.mxu0 %v641
      %v663 = vpop.f32.mrf.mxu0
      %v664 = vadd.f32 0.0, %v663
      %665 = vmatmul.f32.gmra.mxu0 %v644
      %v666 = vpop.f32.mrf.mxu0
      %v667 = vadd.f32 0.0, %v666
      %668 = vdwg.mxu0
      %671 = vrot.lane.b32.xlu0 %v664, 124
      %v672 = vpop.permute.xlu0 %671
      %673 = vrot.lane.b32.xlu0 %v667, 124
      %v674 = vpop.permute.xlu0 %673
      %677 = vrot.lane.b32.xlu0 %v664, 120
      %v678 = vpop.permute.xlu0 %677
      %679 = vrot.lane.b32.xlu0 %v667, 120
      %v680 = vpop.permute.xlu0 %679
      %683 = vrot.lane.b32.xlu0 %v664, 116
      %v684 = vpop.permute.xlu0 %683
      %685 = vrot.lane.b32.xlu0 %v667, 116
      %v686 = vpop.permute.xlu0 %685
      %689 = vrot.lane.b32.xlu0 %v664, 112
      %v690 = vpop.permute.xlu0 %689
      %691 = vrot.lane.b32.xlu0 %v667, 112
      %v692 = vpop.permute.xlu0 %691
      %695 = vrot.lane.b32.xlu0 %v664, 108
      %v696 = vpop.permute.xlu0 %695
      %697 = vrot.lane.b32.xlu0 %v667, 108
      %v698 = vpop.permute.xlu0 %697
      %701 = vrot.lane.b32.xlu0 %v664, 104
      %v702 = vpop.permute.xlu0 %701
      %703 = vrot.lane.b32.xlu0 %v667, 104
      %v704 = vpop.permute.xlu0 %703
      %707 = vrot.lane.b32.xlu0 %v664, 100
      %v708 = vpop.permute.xlu0 %707
      %709 = vrot.lane.b32.xlu0 %v667, 100
      %v710 = vpop.permute.xlu0 %709
      %v713 = vrot.slane %v678, 4
      %v714 = vsel %vm486, %v713, %v664
      %v715 = vrot.slane %v664, 4
      %v716 = vsel %vm486, %v678, %v715
      %v718 = vunpack.c.l.s4 1983009808
      %v719 = vunpack.c.0.s8 %v718
      %v720 = vperm.slane %v714, %v719
      %v722 = vunpack.c.l.s4 1983009808
      %v723 = vunpack.c.0.s8 %v722
      %v724 = vperm.slane %v716, %v723
      %v725 = vrot.slane %v684, 4
      %v726 = vsel %vm486, %v725, %v672
      %v727 = vrot.slane %v672, 4
      %v728 = vsel %vm486, %v684, %v727
      %v730 = vunpack.c.l.s4 1983009808
      %v731 = vunpack.c.0.s8 %v730
      %v732 = vperm.slane %v726, %v731
      %v734 = vunpack.c.l.s4 1983009808
      %v735 = vunpack.c.0.s8 %v734
      %v736 = vperm.slane %v728, %v735
      %v737 = vrot.slane %v702, 4
      %v738 = vsel %vm486, %v737, %v690
      %v739 = vrot.slane %v690, 4
      %v740 = vsel %vm486, %v702, %v739
      %v742 = vunpack.c.l.s4 1983009808
      %v743 = vunpack.c.0.s8 %v742
      %v744 = vperm.slane %v738, %v743
      %v746 = vunpack.c.l.s4 1983009808
      %v747 = vunpack.c.0.s8 %v746
      %v748 = vperm.slane %v740, %v747
      %v749 = vrot.slane %v708, 4
      %v750 = vsel %vm486, %v749, %v696
      %v751 = vrot.slane %v696, 4
      %v752 = vsel %vm486, %v708, %v751
      %v754 = vunpack.c.l.s4 1983009808
      %v755 = vunpack.c.0.s8 %v754
      %v756 = vperm.slane %v750, %v755
      %v758 = vunpack.c.l.s4 1983009808
      %v759 = vunpack.c.0.s8 %v758
      %v760 = vperm.slane %v752, %v759
      %v761 = vrot.slane %v732, 4
      %v762 = vsel %vm486, %v761, %v720
      %v763 = vrot.slane %v720, 4
      %v764 = vsel %vm486, %v732, %v763
      %v766 = vunpack.c.l.s4 1934713408
      %v767 = vunpack.c.0.s8 %v766
      %v768 = vperm.slane %v762, %v767
      %v770 = vunpack.c.l.s4 1934713408
      %v771 = vunpack.c.0.s8 %v770
      %v772 = vperm.slane %v764, %v771
      %v773 = vrot.slane %v736, 4
      %v774 = vsel %vm486, %v773, %v724
      %v775 = vrot.slane %v724, 4
      %v776 = vsel %vm486, %v736, %v775
      %v778 = vunpack.c.l.s4 1934713408
      %v779 = vunpack.c.0.s8 %v778
      %v780 = vperm.slane %v774, %v779
      %v782 = vunpack.c.l.s4 1934713408
      %v783 = vunpack.c.0.s8 %v782
      %v784 = vperm.slane %v776, %v783
      %v785 = vrot.slane %v756, 4
      %v786 = vsel %vm486, %v785, %v744
      %v787 = vrot.slane %v744, 4
      %v788 = vsel %vm486, %v756, %v787
      %v790 = vunpack.c.l.s4 1934713408
      %v791 = vunpack.c.0.s8 %v790
      %v792 = vperm.slane %v786, %v791
      %v794 = vunpack.c.l.s4 1934713408
      %v795 = vunpack.c.0.s8 %v794
      %v796 = vperm.slane %v788, %v795
      %v797 = vrot.slane %v760, 4
      %v798 = vsel %vm486, %v797, %v748
      %v799 = vrot.slane %v748, 4
      %v800 = vsel %vm486, %v760, %v799
      %v802 = vunpack.c.l.s4 1934713408
      %v803 = vunpack.c.0.s8 %v802
      %v804 = vperm.slane %v798, %v803
      %v806 = vunpack.c.l.s4 1934713408
      %v807 = vunpack.c.0.s8 %v806
      %v808 = vperm.slane %v800, %v807
      %v809 = vrot.slane %v792, 4
      %v810 = vsel %vm486, %v809, %v768
      %v811 = vrot.slane %v768, 4
      %v812 = vsel %vm486, %v792, %v811
      %v813 = vrot.slane %v796, 4
      %v814 = vsel %vm486, %v813, %v772
      %v815 = vrot.slane %v772, 4
      %v816 = vsel %vm486, %v796, %v815
      %v817 = vrot.slane %v804, 4
      %v818 = vsel %vm486, %v817, %v780
      %v819 = vrot.slane %v780, 4
      %v820 = vsel %vm486, %v804, %v819
      %v821 = vrot.slane %v808, 4
      %v822 = vsel %vm486, %v821, %v784
      %v823 = vrot.slane %v784, 4
      %v824 = vsel %vm486, %v808, %v823
      %v825 = vrot.slane %v680, 4
      %v826 = vsel %vm486, %v825, %v667
      %v827 = vrot.slane %v667, 4
      %v828 = vsel %vm486, %v680, %v827
      %v830 = vunpack.c.l.s4 1983009808
      %v831 = vunpack.c.0.s8 %v830
      %v832 = vperm.slane %v826, %v831
      %v834 = vunpack.c.l.s4 1983009808
      %v835 = vunpack.c.0.s8 %v834
      %v836 = vperm.slane %v828, %v835
      %v837 = vrot.slane %v686, 4
      %v838 = vsel %vm486, %v837, %v674
      %v839 = vrot.slane %v674, 4
      %v840 = vsel %vm486, %v686, %v839
      %v842 = vunpack.c.l.s4 1983009808
      %v843 = vunpack.c.0.s8 %v842
      %v844 = vperm.slane %v838, %v843
      %v846 = vunpack.c.l.s4 1983009808
      %v847 = vunpack.c.0.s8 %v846
      %v848 = vperm.slane %v840, %v847
      %v849 = vrot.slane %v704, 4
      %v850 = vsel %vm486, %v849, %v692
      %v851 = vrot.slane %v692, 4
      %v852 = vsel %vm486, %v704, %v851
      %v854 = vunpack.c.l.s4 1983009808
      %v855 = vunpack.c.0.s8 %v854
      %v856 = vperm.slane %v850, %v855
      %v858 = vunpack.c.l.s4 1983009808
      %v859 = vunpack.c.0.s8 %v858
      %v860 = vperm.slane %v852, %v859
      %v861 = vrot.slane %v710, 4
      %v862 = vsel %vm486, %v861, %v698
      %v863 = vrot.slane %v698, 4
      %v864 = vsel %vm486, %v710, %v863
      %v866 = vunpack.c.l.s4 1983009808
      %v867 = vunpack.c.0.s8 %v866
      %v868 = vperm.slane %v862, %v867
      %v870 = vunpack.c.l.s4 1983009808
      %v871 = vunpack.c.0.s8 %v870
      %v872 = vperm.slane %v864, %v871
      %v873 = vrot.slane %v844, 4
      %v874 = vsel %vm486, %v873, %v832
      %v875 = vrot.slane %v832, 4
      %v876 = vsel %vm486, %v844, %v875
      %v878 = vunpack.c.l.s4 1934713408
      %v879 = vunpack.c.0.s8 %v878
      %v880 = vperm.slane %v874, %v879
      %v882 = vunpack.c.l.s4 1934713408
      %v883 = vunpack.c.0.s8 %v882
      %v884 = vperm.slane %v876, %v883
      %v885 = vrot.slane %v848, 4
      %v886 = vsel %vm486, %v885, %v836
      %v887 = vrot.slane %v836, 4
      %v888 = vsel %vm486, %v848, %v887
      %v890 = vunpack.c.l.s4 1934713408
      %v891 = vunpack.c.0.s8 %v890
      %v892 = vperm.slane %v886, %v891
      %v894 = vunpack.c.l.s4 1934713408
      %v895 = vunpack.c.0.s8 %v894
      %v896 = vperm.slane %v888, %v895
      %v897 = vrot.slane %v868, 4
      %v898 = vsel %vm486, %v897, %v856
      %v899 = vrot.slane %v856, 4
      %v900 = vsel %vm486, %v868, %v899
      %v902 = vunpack.c.l.s4 1934713408
      %v903 = vunpack.c.0.s8 %v902
      %v904 = vperm.slane %v898, %v903
      %v906 = vunpack.c.l.s4 1934713408
      %v907 = vunpack.c.0.s8 %v906
      %v908 = vperm.slane %v900, %v907
      %v909 = vrot.slane %v872, 4
      %v910 = vsel %vm486, %v909, %v860
      %v911 = vrot.slane %v860, 4
      %v912 = vsel %vm486, %v872, %v911
      %v914 = vunpack.c.l.s4 1934713408
      %v915 = vunpack.c.0.s8 %v914
      %v916 = vperm.slane %v910, %v915
      %v918 = vunpack.c.l.s4 1934713408
      %v919 = vunpack.c.0.s8 %v918
      %v920 = vperm.slane %v912, %v919
      %v921 = vrot.slane %v904, 4
      %v922 = vsel %vm486, %v921, %v880
      %v923 = vrot.slane %v880, 4
      %v924 = vsel %vm486, %v904, %v923
      %v925 = vrot.slane %v908, 4
      %v926 = vsel %vm486, %v925, %v884
      %v927 = vrot.slane %v884, 4
      %v928 = vsel %vm486, %v908, %v927
      %v929 = vrot.slane %v916, 4
      %v930 = vsel %vm486, %v929, %v892
      %v931 = vrot.slane %v892, 4
      %v932 = vsel %vm486, %v916, %v931
      %v933 = vrot.slane %v920, 4
      %v934 = vsel %vm486, %v933, %v896
      %v935 = vrot.slane %v896, 4
      %v936 = vsel %vm486, %v920, %v935
      %937 = vxpose.xlu0.b32.start [1/16] %v810, 128
      %938 = vxpose.xlu0.b32.cont [2/16] 0.0, 128
      %939 = vxpose.xlu0.b32.cont [3/16] 0.0, 128
      %940 = vxpose.xlu0.b32.cont [4/16] 0.0, 128
      %941 = vxpose.xlu0.b32.cont [5/16] 0.0, 128
      %942 = vxpose.xlu0.b32.cont [6/16] 0.0, 128
      %943 = vxpose.xlu0.b32.cont [7/16] 0.0, 128
      %944 = vxpose.xlu0.b32.cont [8/16] 0.0, 128
      %945 = vxpose.xlu0.b32.cont [9/16] 0.0, 128
      %946 = vxpose.xlu0.b32.cont [10/16] 0.0, 128
      %947 = vxpose.xlu0.b32.cont [11/16] 0.0, 128
      %948 = vxpose.xlu0.b32.cont [12/16] 0.0, 128
      %949 = vxpose.xlu0.b32.cont [13/16] 0.0, 128
      %950 = vxpose.xlu0.b32.cont [14/16] 0.0, 128
      %951 = vxpose.xlu0.b32.cont [15/16] 0.0, 128
      %952 = vxpose.xlu0.b32.end [16/16] 0.0, 128
      %v953 = vpop.trf.xlu0
      %v954 = vpop.trf.xlu0
      %v955 = vpop.trf.xlu0
      %v956 = vpop.trf.xlu0
      %v957 = vpop.trf.xlu0
      %v958 = vpop.trf.xlu0
      %v959 = vpop.trf.xlu0
      %v960 = vpop.trf.xlu0
      %v961 = vpop.trf.xlu0
      %v962 = vpop.trf.xlu0
      %v963 = vpop.trf.xlu0
      %v964 = vpop.trf.xlu0
      %v965 = vpop.trf.xlu0
      %v966 = vpop.trf.xlu0
      %v967 = vpop.trf.xlu0
      %v968 = vpop.trf.xlu0
      %969 = vxpose.xlu0.b32.start [1/16] %v812, 128
      %970 = vxpose.xlu0.b32.cont [2/16] 0.0, 128
      %971 = vxpose.xlu0.b32.cont [3/16] 0.0, 128
      %972 = vxpose.xlu0.b32.cont [4/16] 0.0, 128
      %973 = vxpose.xlu0.b32.cont [5/16] 0.0, 128
      %974 = vxpose.xlu0.b32.cont [6/16] 0.0, 128
      %975 = vxpose.xlu0.b32.cont [7/16] 0.0, 128
      %976 = vxpose.xlu0.b32.cont [8/16] 0.0, 128
      %977 = vxpose.xlu0.b32.cont [9/16] 0.0, 128
      %978 = vxpose.xlu0.b32.cont [10/16] 0.0, 128
      %979 = vxpose.xlu0.b32.cont [11/16] 0.0, 128
      %980 = vxpose.xlu0.b32.cont [12/16] 0.0, 128
      %981 = vxpose.xlu0.b32.cont [13/16] 0.0, 128
      %982 = vxpose.xlu0.b32.cont [14/16] 0.0, 128
      %983 = vxpose.xlu0.b32.cont [15/16] 0.0, 128
      %984 = vxpose.xlu0.b32.end [16/16] 0.0, 128
      %v985 = vpop.trf.xlu0
      %v986 = vpop.trf.xlu0
      %v987 = vpop.trf.xlu0
      %v988 = vpop.trf.xlu0
      %v989 = vpop.trf.xlu0
      %v990 = vpop.trf.xlu0
      %v991 = vpop.trf.xlu0
      %v992 = vpop.trf.xlu0
      %v993 = vpop.trf.xlu0
      %v994 = vpop.trf.xlu0
      %v995 = vpop.trf.xlu0
      %v996 = vpop.trf.xlu0
      %v997 = vpop.trf.xlu0
      %v998 = vpop.trf.xlu0
      %v999 = vpop.trf.xlu0
      %v1000 = vpop.trf.xlu0
      %1001 = vxpose.xlu0.b32.start [1/16] %v814, 128
      %1002 = vxpose.xlu0.b32.cont [2/16] 0.0, 128
      %1003 = vxpose.xlu0.b32.cont [3/16] 0.0, 128
      %1004 = vxpose.xlu0.b32.cont [4/16] 0.0, 128
      %1005 = vxpose.xlu0.b32.cont [5/16] 0.0, 128
      %1006 = vxpose.xlu0.b32.cont [6/16] 0.0, 128
      %1007 = vxpose.xlu0.b32.cont [7/16] 0.0, 128
      %1008 = vxpose.xlu0.b32.cont [8/16] 0.0, 128
      %1009 = vxpose.xlu0.b32.cont [9/16] 0.0, 128
      %1010 = vxpose.xlu0.b32.cont [10/16] 0.0, 128
      %1011 = vxpose.xlu0.b32.cont [11/16] 0.0, 128
      %1012 = vxpose.xlu0.b32.cont [12/16] 0.0, 128
      %1013 = vxpose.xlu0.b32.cont [13/16] 0.0, 128
      %1014 = vxpose.xlu0.b32.cont [14/16] 0.0, 128
      %1015 = vxpose.xlu0.b32.cont [15/16] 0.0, 128
      %1016 = vxpose.xlu0.b32.end [16/16] 0.0, 128
      %v1017 = vpop.trf.xlu0
      %v1018 = vpop.trf.xlu0
      %v1019 = vpop.trf.xlu0
      %v1020 = vpop.trf.xlu0
      %v1021 = vpop.trf.xlu0
      %v1022 = vpop.trf.xlu0
      %v1023 = vpop.trf.xlu0
      %v1024 = vpop.trf.xlu0
      %v1025 = vpop.trf.xlu0
      %v1026 = vpop.trf.xlu0
      %v1027 = vpop.trf.xlu0
      %v1028 = vpop.trf.xlu0
      %v1029 = vpop.trf.xlu0
      %v1030 = vpop.trf.xlu0
      %v1031 = vpop.trf.xlu0
      %v1032 = vpop.trf.xlu0
      %1033 = vxpose.xlu0.b32.start [1/16] %v816, 128
      %1034 = vxpose.xlu0.b32.cont [2/16] 0.0, 128
      %1035 = vxpose.xlu0.b32.cont [3/16] 0.0, 128
      %1036 = vxpose.xlu0.b32.cont [4/16] 0.0, 128
      %1037 = vxpose.xlu0.b32.cont [5/16] 0.0, 128
      %1038 = vxpose.xlu0.b32.cont [6/16] 0.0, 128
      %1039 = vxpose.xlu0.b32.cont [7/16] 0.0, 128
      %1040 = vxpose.xlu0.b32.cont [8/16] 0.0, 128
      %1041 = vxpose.xlu0.b32.cont [9/16] 0.0, 128
      %1042 = vxpose.xlu0.b32.cont [10/16] 0.0, 128
      %1043 = vxpose.xlu0.b32.cont [11/16] 0.0, 128
      %1044 = vxpose.xlu0.b32.cont [12/16] 0.0, 128
      %1045 = vxpose.xlu0.b32.cont [13/16] 0.0, 128
      %1046 = vxpose.xlu0.b32.cont [14/16] 0.0, 128
      %1047 = vxpose.xlu0.b32.cont [15/16] 0.0, 128
      %1048 = vxpose.xlu0.b32.end [16/16] 0.0, 128
      %v1049 = vpop.trf.xlu0
      %v1050 = vpop.trf.xlu0
      %v1051 = vpop.trf.xlu0
      %v1052 = vpop.trf.xlu0
      %v1053 = vpop.trf.xlu0
      %v1054 = vpop.trf.xlu0
      %v1055 = vpop.trf.xlu0
      %v1056 = vpop.trf.xlu0
      %v1057 = vpop.trf.xlu0
      %v1058 = vpop.trf.xlu0
      %v1059 = vpop.trf.xlu0
      %v1060 = vpop.trf.xlu0
      %v1061 = vpop.trf.xlu0
      %v1062 = vpop.trf.xlu0
      %v1063 = vpop.trf.xlu0
      %v1064 = vpop.trf.xlu0
      %1065 = vxpose.xlu0.b32.start [1/16] %v818, 128
      %1066 = vxpose.xlu0.b32.cont [2/16] 0.0, 128
      %1067 = vxpose.xlu0.b32.cont [3/16] 0.0, 128
      %1068 = vxpose.xlu0.b32.cont [4/16] 0.0, 128
      %1069 = vxpose.xlu0.b32.cont [5/16] 0.0, 128
      %1070 = vxpose.xlu0.b32.cont [6/16] 0.0, 128
      %1071 = vxpose.xlu0.b32.cont [7/16] 0.0, 128
      %1072 = vxpose.xlu0.b32.cont [8/16] 0.0, 128
      %1073 = vxpose.xlu0.b32.cont [9/16] 0.0, 128
      %1074 = vxpose.xlu0.b32.cont [10/16] 0.0, 128
      %1075 = vxpose.xlu0.b32.cont [11/16] 0.0, 128
      %1076 = vxpose.xlu0.b32.cont [12/16] 0.0, 128
      %1077 = vxpose.xlu0.b32.cont [13/16] 0.0, 128
      %1078 = vxpose.xlu0.b32.cont [14/16] 0.0, 128
      %1079 = vxpose.xlu0.b32.cont [15/16] 0.0, 128
      %1080 = vxpose.xlu0.b32.end [16/16] 0.0, 128
      %v1081 = vpop.trf.xlu0
      %v1082 = vpop.trf.xlu0
      %v1083 = vpop.trf.xlu0
      %v1084 = vpop.trf.xlu0
      %v1085 = vpop.trf.xlu0
      %v1086 = vpop.trf.xlu0
      %v1087 = vpop.trf.xlu0
      %v1088 = vpop.trf.xlu0
      %v1089 = vpop.trf.xlu0
      %v1090 = vpop.trf.xlu0
      %v1091 = vpop.trf.xlu0
      %v1092 = vpop.trf.xlu0
      %v1093 = vpop.trf.xlu0
      %v1094 = vpop.trf.xlu0
      %v1095 = vpop.trf.xlu0
      %v1096 = vpop.trf.xlu0
      %1097 = vxpose.xlu0.b32.start [1/16] %v820, 128
      %1098 = vxpose.xlu0.b32.cont [2/16] 0.0, 128
      %1099 = vxpose.xlu0.b32.cont [3/16] 0.0, 128
      %1100 = vxpose.xlu0.b32.cont [4/16] 0.0, 128
      %1101 = vxpose.xlu0.b32.cont [5/16] 0.0, 128
      %1102 = vxpose.xlu0.b32.cont [6/16] 0.0, 128
      %1103 = vxpose.xlu0.b32.cont [7/16] 0.0, 128
      %1104 = vxpose.xlu0.b32.cont [8/16] 0.0, 128
      %1105 = vxpose.xlu0.b32.cont [9/16] 0.0, 128
      %1106 = vxpose.xlu0.b32.cont [10/16] 0.0, 128
      %1107 = vxpose.xlu0.b32.cont [11/16] 0.0, 128
      %1108 = vxpose.xlu0.b32.cont [12/16] 0.0, 128
      %1109 = vxpose.xlu0.b32.cont [13/16] 0.0, 128
      %1110 = vxpose.xlu0.b32.cont [14/16] 0.0, 128
      %1111 = vxpose.xlu0.b32.cont [15/16] 0.0, 128
      %1112 = vxpose.xlu0.b32.end [16/16] 0.0, 128
      %v1113 = vpop.trf.xlu0
      %v1114 = vpop.trf.xlu0
      %v1115 = vpop.trf.xlu0
      %v1116 = vpop.trf.xlu0
      %v1117 = vpop.trf.xlu0
      %v1118 = vpop.trf.xlu0
      %v1119 = vpop.trf.xlu0
      %v1120 = vpop.trf.xlu0
      %v1121 = vpop.trf.xlu0
      %v1122 = vpop.trf.xlu0
      %v1123 = vpop.trf.xlu0
      %v1124 = vpop.trf.xlu0
      %v1125 = vpop.trf.xlu0
      %v1126 = vpop.trf.xlu0
      %v1127 = vpop.trf.xlu0
      %v1128 = vpop.trf.xlu0
      %1129 = vxpose.xlu0.b32.start [1/16] %v822, 128
      %1130 = vxpose.xlu0.b32.cont [2/16] 0.0, 128
      %1131 = vxpose.xlu0.b32.cont [3/16] 0.0, 128
      %1132 = vxpose.xlu0.b32.cont [4/16] 0.0, 128
      %1133 = vxpose.xlu0.b32.cont [5/16] 0.0, 128
      %1134 = vxpose.xlu0.b32.cont [6/16] 0.0, 128
      %1135 = vxpose.xlu0.b32.cont [7/16] 0.0, 128
      %1136 = vxpose.xlu0.b32.cont [8/16] 0.0, 128
      %1137 = vxpose.xlu0.b32.cont [9/16] 0.0, 128
      %1138 = vxpose.xlu0.b32.cont [10/16] 0.0, 128
      %1139 = vxpose.xlu0.b32.cont [11/16] 0.0, 128
      %1140 = vxpose.xlu0.b32.cont [12/16] 0.0, 128
      %1141 = vxpose.xlu0.b32.cont [13/16] 0.0, 128
      %1142 = vxpose.xlu0.b32.cont [14/16] 0.0, 128
      %1143 = vxpose.xlu0.b32.cont [15/16] 0.0, 128
      %1144 = vxpose.xlu0.b32.end [16/16] 0.0, 128
      %v1145 = vpop.trf.xlu0
      %v1146 = vpop.trf.xlu0
      %v1147 = vpop.trf.xlu0
      %v1148 = vpop.trf.xlu0
      %v1149 = vpop.trf.xlu0
      %v1150 = vpop.trf.xlu0
      %v1151 = vpop.trf.xlu0
      %v1152 = vpop.trf.xlu0
      %v1153 = vpop.trf.xlu0
      %v1154 = vpop.trf.xlu0
      %v1155 = vpop.trf.xlu0
      %v1156 = vpop.trf.xlu0
      %v1157 = vpop.trf.xlu0
      %v1158 = vpop.trf.xlu0
      %v1159 = vpop.trf.xlu0
      %v1160 = vpop.trf.xlu0
      %1161 = vxpose.xlu0.b32.start [1/16] %v824, 128
      %1162 = vxpose.xlu0.b32.cont [2/16] 0.0, 128
      %1163 = vxpose.xlu0.b32.cont [3/16] 0.0, 128
      %1164 = vxpose.xlu0.b32.cont [4/16] 0.0, 128
      %1165 = vxpose.xlu0.b32.cont [5/16] 0.0, 128
      %1166 = vxpose.xlu0.b32.cont [6/16] 0.0, 128
      %1167 = vxpose.xlu0.b32.cont [7/16] 0.0, 128
      %1168 = vxpose.xlu0.b32.cont [8/16] 0.0, 128
      %1169 = vxpose.xlu0.b32.cont [9/16] 0.0, 128
      %1170 = vxpose.xlu0.b32.cont [10/16] 0.0, 128
      %1171 = vxpose.xlu0.b32.cont [11/16] 0.0, 128
      %1172 = vxpose.xlu0.b32.cont [12/16] 0.0, 128
      %1173 = vxpose.xlu0.b32.cont [13/16] 0.0, 128
      %1174 = vxpose.xlu0.b32.cont [14/16] 0.0, 128
      %1175 = vxpose.xlu0.b32.cont [15/16] 0.0, 128
      %1176 = vxpose.xlu0.b32.end [16/16] 0.0, 128
      %v1177 = vpop.trf.xlu0
      %v1178 = vpop.trf.xlu0
      %v1179 = vpop.trf.xlu0
      %v1180 = vpop.trf.xlu0
      %v1181 = vpop.trf.xlu0
      %v1182 = vpop.trf.xlu0
      %v1183 = vpop.trf.xlu0
      %v1184 = vpop.trf.xlu0
      %v1185 = vpop.trf.xlu0
      %v1186 = vpop.trf.xlu0
      %v1187 = vpop.trf.xlu0
      %v1188 = vpop.trf.xlu0
      %v1189 = vpop.trf.xlu0
      %v1190 = vpop.trf.xlu0
      %v1191 = vpop.trf.xlu0
      %v1192 = vpop.trf.xlu0
      %1193 = vxpose.xlu0.b32.start [1/16] %v922, 128
      %1194 = vxpose.xlu0.b32.cont [2/16] 0.0, 128
      %1195 = vxpose.xlu0.b32.cont [3/16] 0.0, 128
      %1196 = vxpose.xlu0.b32.cont [4/16] 0.0, 128
      %1197 = vxpose.xlu0.b32.cont [5/16] 0.0, 128
      %1198 = vxpose.xlu0.b32.cont [6/16] 0.0, 128
      %1199 = vxpose.xlu0.b32.cont [7/16] 0.0, 128
      %1200 = vxpose.xlu0.b32.cont [8/16] 0.0, 128
      %1201 = vxpose.xlu0.b32.cont [9/16] 0.0, 128
      %1202 = vxpose.xlu0.b32.cont [10/16] 0.0, 128
      %1203 = vxpose.xlu0.b32.cont [11/16] 0.0, 128
      %1204 = vxpose.xlu0.b32.cont [12/16] 0.0, 128
      %1205 = vxpose.xlu0.b32.cont [13/16] 0.0, 128
      %1206 = vxpose.xlu0.b32.cont [14/16] 0.0, 128
      %1207 = vxpose.xlu0.b32.cont [15/16] 0.0, 128
      %1208 = vxpose.xlu0.b32.end [16/16] 0.0, 128
      %v1209 = vpop.trf.xlu0
      %v1210 = vpop.trf.xlu0
      %v1211 = vpop.trf.xlu0
      %v1212 = vpop.trf.xlu0
      %v1213 = vpop.trf.xlu0
      %v1214 = vpop.trf.xlu0
      %v1215 = vpop.trf.xlu0
      %v1216 = vpop.trf.xlu0
      %v1217 = vpop.trf.xlu0
      %v1218 = vpop.trf.xlu0
      %v1219 = vpop.trf.xlu0
      %v1220 = vpop.trf.xlu0
      %v1221 = vpop.trf.xlu0
      %v1222 = vpop.trf.xlu0
      %v1223 = vpop.trf.xlu0
      %v1224 = vpop.trf.xlu0
      %1225 = vxpose.xlu0.b32.start [1/16] %v924, 128
      %1226 = vxpose.xlu0.b32.cont [2/16] 0.0, 128
      %1227 = vxpose.xlu0.b32.cont [3/16] 0.0, 128
      %1228 = vxpose.xlu0.b32.cont [4/16] 0.0, 128
      %1229 = vxpose.xlu0.b32.cont [5/16] 0.0, 128
      %1230 = vxpose.xlu0.b32.cont [6/16] 0.0, 128
      %1231 = vxpose.xlu0.b32.cont [7/16] 0.0, 128
      %1232 = vxpose.xlu0.b32.cont [8/16] 0.0, 128
      %1233 = vxpose.xlu0.b32.cont [9/16] 0.0, 128
      %1234 = vxpose.xlu0.b32.cont [10/16] 0.0, 128
      %1235 = vxpose.xlu0.b32.cont [11/16] 0.0, 128
      %1236 = vxpose.xlu0.b32.cont [12/16] 0.0, 128
      %1237 = vxpose.xlu0.b32.cont [13/16] 0.0, 128
      %1238 = vxpose.xlu0.b32.cont [14/16] 0.0, 128
      %1239 = vxpose.xlu0.b32.cont [15/16] 0.0, 128
      %1240 = vxpose.xlu0.b32.end [16/16] 0.0, 128
      %v1241 = vpop.trf.xlu0
      %v1242 = vpop.trf.xlu0
      %v1243 = vpop.trf.xlu0
      %v1244 = vpop.trf.xlu0
      %v1245 = vpop.trf.xlu0
      %v1246 = vpop.trf.xlu0
      %v1247 = vpop.trf.xlu0
      %v1248 = vpop.trf.xlu0
      %v1249 = vpop.trf.xlu0
      %v1250 = vpop.trf.xlu0
      %v1251 = vpop.trf.xlu0
      %v1252 = vpop.trf.xlu0
      %v1253 = vpop.trf.xlu0
      %v1254 = vpop.trf.xlu0
      %v1255 = vpop.trf.xlu0
      %v1256 = vpop.trf.xlu0
      %1257 = vxpose.xlu0.b32.start [1/16] %v926, 128
      %1258 = vxpose.xlu0.b32.cont [2/16] 0.0, 128
      %1259 = vxpose.xlu0.b32.cont [3/16] 0.0, 128
      %1260 = vxpose.xlu0.b32.cont [4/16] 0.0, 128
      %1261 = vxpose.xlu0.b32.cont [5/16] 0.0, 128
      %1262 = vxpose.xlu0.b32.cont [6/16] 0.0, 128
      %1263 = vxpose.xlu0.b32.cont [7/16] 0.0, 128
      %1264 = vxpose.xlu0.b32.cont [8/16] 0.0, 128
      %1265 = vxpose.xlu0.b32.cont [9/16] 0.0, 128
      %1266 = vxpose.xlu0.b32.cont [10/16] 0.0, 128
      %1267 = vxpose.xlu0.b32.cont [11/16] 0.0, 128
      %1268 = vxpose.xlu0.b32.cont [12/16] 0.0, 128
      %1269 = vxpose.xlu0.b32.cont [13/16] 0.0, 128
      %1270 = vxpose.xlu0.b32.cont [14/16] 0.0, 128
      %1271 = vxpose.xlu0.b32.cont [15/16] 0.0, 128
      %1272 = vxpose.xlu0.b32.end [16/16] 0.0, 128
      %v1273 = vpop.trf.xlu0
      %v1274 = vpop.trf.xlu0
      %v1275 = vpop.trf.xlu0
      %v1276 = vpop.trf.xlu0
      %v1277 = vpop.trf.xlu0
      %v1278 = vpop.trf.xlu0
      %v1279 = vpop.trf.xlu0
      %v1280 = vpop.trf.xlu0
      %v1281 = vpop.trf.xlu0
      %v1282 = vpop.trf.xlu0
      %v1283 = vpop.trf.xlu0
      %v1284 = vpop.trf.xlu0
      %v1285 = vpop.trf.xlu0
      %v1286 = vpop.trf.xlu0
      %v1287 = vpop.trf.xlu0
      %v1288 = vpop.trf.xlu0
      %1289 = vxpose.xlu0.b32.start [1/16] %v928, 128
      %1290 = vxpose.xlu0.b32.cont [2/16] 0.0, 128
      %1291 = vxpose.xlu0.b32.cont [3/16] 0.0, 128
      %1292 = vxpose.xlu0.b32.cont [4/16] 0.0, 128
      %1293 = vxpose.xlu0.b32.cont [5/16] 0.0, 128
      %1294 = vxpose.xlu0.b32.cont [6/16] 0.0, 128
      %1295 = vxpose.xlu0.b32.cont [7/16] 0.0, 128
      %1296 = vxpose.xlu0.b32.cont [8/16] 0.0, 128
      %1297 = vxpose.xlu0.b32.cont [9/16] 0.0, 128
      %1298 = vxpose.xlu0.b32.cont [10/16] 0.0, 128
      %1299 = vxpose.xlu0.b32.cont [11/16] 0.0, 128
      %1300 = vxpose.xlu0.b32.cont [12/16] 0.0, 128
      %1301 = vxpose.xlu0.b32.cont [13/16] 0.0, 128
      %1302 = vxpose.xlu0.b32.cont [14/16] 0.0, 128
      %1303 = vxpose.xlu0.b32.cont [15/16] 0.0, 128
      %1304 = vxpose.xlu0.b32.end [16/16] 0.0, 128
      %v1305 = vpop.trf.xlu0
      %v1306 = vpop.trf.xlu0
      %v1307 = vpop.trf.xlu0
      %v1308 = vpop.trf.xlu0
      %v1309 = vpop.trf.xlu0
      %v1310 = vpop.trf.xlu0
      %v1311 = vpop.trf.xlu0
      %v1312 = vpop.trf.xlu0
      %v1313 = vpop.trf.xlu0
      %v1314 = vpop.trf.xlu0
      %v1315 = vpop.trf.xlu0
      %v1316 = vpop.trf.xlu0
      %v1317 = vpop.trf.xlu0
      %v1318 = vpop.trf.xlu0
      %v1319 = vpop.trf.xlu0
      %v1320 = vpop.trf.xlu0
      %1321 = vxpose.xlu0.b32.start [1/16] %v930, 128
      %1322 = vxpose.xlu0.b32.cont [2/16] 0.0, 128
      %1323 = vxpose.xlu0.b32.cont [3/16] 0.0, 128
      %1324 = vxpose.xlu0.b32.cont [4/16] 0.0, 128
      %1325 = vxpose.xlu0.b32.cont [5/16] 0.0, 128
      %1326 = vxpose.xlu0.b32.cont [6/16] 0.0, 128
      %1327 = vxpose.xlu0.b32.cont [7/16] 0.0, 128
      %1328 = vxpose.xlu0.b32.cont [8/16] 0.0, 128
      %1329 = vxpose.xlu0.b32.cont [9/16] 0.0, 128
      %1330 = vxpose.xlu0.b32.cont [10/16] 0.0, 128
      %1331 = vxpose.xlu0.b32.cont [11/16] 0.0, 128
      %1332 = vxpose.xlu0.b32.cont [12/16] 0.0, 128
      %1333 = vxpose.xlu0.b32.cont [13/16] 0.0, 128
      %1334 = vxpose.xlu0.b32.cont [14/16] 0.0, 128
      %1335 = vxpose.xlu0.b32.cont [15/16] 0.0, 128
      %1336 = vxpose.xlu0.b32.end [16/16] 0.0, 128
      %v1337 = vpop.trf.xlu0
      %v1338 = vpop.trf.xlu0
      %v1339 = vpop.trf.xlu0
      %v1340 = vpop.trf.xlu0
      %v1341 = vpop.trf.xlu0
      %v1342 = vpop.trf.xlu0
      %v1343 = vpop.trf.xlu0
      %v1344 = vpop.trf.xlu0
      %v1345 = vpop.trf.xlu0
      %v1346 = vpop.trf.xlu0
      %v1347 = vpop.trf.xlu0
      %v1348 = vpop.trf.xlu0
      %v1349 = vpop.trf.xlu0
      %v1350 = vpop.trf.xlu0
      %v1351 = vpop.trf.xlu0
      %v1352 = vpop.trf.xlu0
      %1353 = vxpose.xlu0.b32.start [1/16] %v932, 128
      %1354 = vxpose.xlu0.b32.cont [2/16] 0.0, 128
      %1355 = vxpose.xlu0.b32.cont [3/16] 0.0, 128
      %1356 = vxpose.xlu0.b32.cont [4/16] 0.0, 128
      %1357 = vxpose.xlu0.b32.cont [5/16] 0.0, 128
      %1358 = vxpose.xlu0.b32.cont [6/16] 0.0, 128
      %1359 = vxpose.xlu0.b32.cont [7/16] 0.0, 128
      %1360 = vxpose.xlu0.b32.cont [8/16] 0.0, 128
      %1361 = vxpose.xlu0.b32.cont [9/16] 0.0, 128
      %1362 = vxpose.xlu0.b32.cont [10/16] 0.0, 128
      %1363 = vxpose.xlu0.b32.cont [11/16] 0.0, 128
      %1364 = vxpose.xlu0.b32.cont [12/16] 0.0, 128
      %1365 = vxpose.xlu0.b32.cont [13/16] 0.0, 128
      %1366 = vxpose.xlu0.b32.cont [14/16] 0.0, 128
      %1367 = vxpose.xlu0.b32.cont [15/16] 0.0, 128
      %1368 = vxpose.xlu0.b32.end [16/16] 0.0, 128
      %v1369 = vpop.trf.xlu0
      %v1370 = vpop.trf.xlu0
      %v1371 = vpop.trf.xlu0
      %v1372 = vpop.trf.xlu0
      %v1373 = vpop.trf.xlu0
      %v1374 = vpop.trf.xlu0
      %v1375 = vpop.trf.xlu0
      %v1376 = vpop.trf.xlu0
      %v1377 = vpop.trf.xlu0
      %v1378 = vpop.trf.xlu0
      %v1379 = vpop.trf.xlu0
      %v1380 = vpop.trf.xlu0
      %v1381 = vpop.trf.xlu0
      %v1382 = vpop.trf.xlu0
      %v1383 = vpop.trf.xlu0
      %v1384 = vpop.trf.xlu0
      %1385 = vxpose.xlu0.b32.start [1/16] %v934, 128
      %1386 = vxpose.xlu0.b32.cont [2/16] 0.0, 128
      %1387 = vxpose.xlu0.b32.cont [3/16] 0.0, 128
      %1388 = vxpose.xlu0.b32.cont [4/16] 0.0, 128
      %1389 = vxpose.xlu0.b32.cont [5/16] 0.0, 128
      %1390 = vxpose.xlu0.b32.cont [6/16] 0.0, 128
      %1391 = vxpose.xlu0.b32.cont [7/16] 0.0, 128
      %1392 = vxpose.xlu0.b32.cont [8/16] 0.0, 128
      %1393 = vxpose.xlu0.b32.cont [9/16] 0.0, 128
      %1394 = vxpose.xlu0.b32.cont [10/16] 0.0, 128
      %1395 = vxpose.xlu0.b32.cont [11/16] 0.0, 128
      %1396 = vxpose.xlu0.b32.cont [12/16] 0.0, 128
      %1397 = vxpose.xlu0.b32.cont [13/16] 0.0, 128
      %1398 = vxpose.xlu0.b32.cont [14/16] 0.0, 128
      %1399 = vxpose.xlu0.b32.cont [15/16] 0.0, 128
      %1400 = vxpose.xlu0.b32.end [16/16] 0.0, 128
      %v1401 = vpop.trf.xlu0
      %v1402 = vpop.trf.xlu0
      %v1403 = vpop.trf.xlu0
      %v1404 = vpop.trf.xlu0
      %v1405 = vpop.trf.xlu0
      %v1406 = vpop.trf.xlu0
      %v1407 = vpop.trf.xlu0
      %v1408 = vpop.trf.xlu0
      %v1409 = vpop.trf.xlu0
      %v1410 = vpop.trf.xlu0
      %v1411 = vpop.trf.xlu0
      %v1412 = vpop.trf.xlu0
      %v1413 = vpop.trf.xlu0
      %v1414 = vpop.trf.xlu0
      %v1415 = vpop.trf.xlu0
      %v1416 = vpop.trf.xlu0
      %1417 = vxpose.xlu0.b32.start [1/16] %v936, 128
      %1418 = vxpose.xlu0.b32.cont [2/16] 0.0, 128
      %1419 = vxpose.xlu0.b32.cont [3/16] 0.0, 128
      %1420 = vxpose.xlu0.b32.cont [4/16] 0.0, 128
      %1421 = vxpose.xlu0.b32.cont [5/16] 0.0, 128
      %1422 = vxpose.xlu0.b32.cont [6/16] 0.0, 128
      %1423 = vxpose.xlu0.b32.cont [7/16] 0.0, 128
      %1424 = vxpose.xlu0.b32.cont [8/16] 0.0, 128
      %1425 = vxpose.xlu0.b32.cont [9/16] 0.0, 128
      %1426 = vxpose.xlu0.b32.cont [10/16] 0.0, 128
      %1427 = vxpose.xlu0.b32.cont [11/16] 0.0, 128
      %1428 = vxpose.xlu0.b32.cont [12/16] 0.0, 128
      %1429 = vxpose.xlu0.b32.cont [13/16] 0.0, 128
      %1430 = vxpose.xlu0.b32.cont [14/16] 0.0, 128
      %1431 = vxpose.xlu0.b32.cont [15/16] 0.0, 128
      %1432 = vxpose.xlu0.b32.end [16/16] 0.0, 128
      %v1433 = vpop.trf.xlu0
      %v1434 = vpop.trf.xlu0
      %v1435 = vpop.trf.xlu0
      %v1436 = vpop.trf.xlu0
      %v1437 = vpop.trf.xlu0
      %v1438 = vpop.trf.xlu0
      %v1439 = vpop.trf.xlu0
      %v1440 = vpop.trf.xlu0
      %v1441 = vpop.trf.xlu0
      %v1442 = vpop.trf.xlu0
      %v1443 = vpop.trf.xlu0
      %v1444 = vpop.trf.xlu0
      %v1445 = vpop.trf.xlu0
      %v1446 = vpop.trf.xlu0
      %v1447 = vpop.trf.xlu0
      %v1448 = vpop.trf.xlu0
      %1465 = vst [vmem:[#allocation1] ss:$2 sm:$0xff] %v953
      %s1466 = scalar_lea.vmem [#allocation1], 1
      %1467 = vst [vmem:[%s1466] ss:$2 sm:$0xff] %v985
      %s1468 = scalar_lea.vmem [#allocation1], 16
      %1469 = vst [vmem:[%s1468] ss:$2 sm:$0xff] %v1017
      %s1470 = scalar_lea.vmem [#allocation1], 17
      %1471 = vst [vmem:[%s1470] ss:$2 sm:$0xff] %v1049
      %s1472 = scalar_lea.vmem [#allocation1], 32
      %1473 = vst [vmem:[%s1472] ss:$2 sm:$0xff] %v1081
      %s1474 = scalar_lea.vmem [#allocation1], 33
      %1475 = vst [vmem:[%s1474] ss:$2 sm:$0xff] %v1113
      %s1476 = scalar_lea.vmem [#allocation1], 48
      %1477 = vst [vmem:[%s1476] ss:$2 sm:$0xff] %v1145
      %s1478 = scalar_lea.vmem [#allocation1], 49
      %1479 = vst [vmem:[%s1478] ss:$2 sm:$0xff] %v1177
      %v1480 = vld.sshfl [vmem:[#allocation1] sm:$0xff pattern:$0x75316420]
      %v1481 = vld.sshfl [vmem:[#allocation1 + $0x10] sm:$0xff pattern:$0x75316420]
      %v1482 = vld.sshfl [vmem:[#allocation1 + $0x20] sm:$0xff pattern:$0x75316420]
      %v1483 = vld.sshfl [vmem:[#allocation1 + $0x30] sm:$0xff pattern:$0x75316420]
      %1484 = vst [vmem:[#allocation1] ss:$2 sm:$0xff] %v1209
      %1485 = vst [vmem:[%s1466] ss:$2 sm:$0xff] %v1241
      %1486 = vst [vmem:[%s1468] ss:$2 sm:$0xff] %v1273
      %1487 = vst [vmem:[%s1470] ss:$2 sm:$0xff] %v1305
      %1488 = vst [vmem:[%s1472] ss:$2 sm:$0xff] %v1337
      %1489 = vst [vmem:[%s1474] ss:$2 sm:$0xff] %v1369
      %1490 = vst [vmem:[%s1476] ss:$2 sm:$0xff] %v1401
      %1491 = vst [vmem:[%s1478] ss:$2 sm:$0xff] %v1433
      %v1492 = vld.sshfl [vmem:[#allocation1] sm:$0xff pattern:$0x75316420]
      %v1493 = vld.sshfl [vmem:[#allocation1 + $0x10] sm:$0xff pattern:$0x75316420]
      %v1494 = vld.sshfl [vmem:[#allocation1 + $0x20] sm:$0xff pattern:$0x75316420]
      %v1495 = vld.sshfl [vmem:[#allocation1 + $0x30] sm:$0xff pattern:$0x75316420]
      %v1496 = vsel %vm628, %v1480, 0
      %v1498 = vsel %vm628, %v1481, 0
      %v1500 = vsel %vm628, %v1482, 0
      %v1502 = vsel %vm628, %v1483, 0
      %v1504 = vsel %vm628, %v1492, 0
      %v1506 = vsel %vm628, %v1493, 0
      %v1508 = vsel %vm628, %v1494, 0
      %v1510 = vsel %vm628, %v1495, 0
      %1512 = vmatpush.msra.mxu0 0.0
      %1513 = vmatpush.msra.mxu0 0.0
      %1514 = vmatpush.msra.mxu0 0.0
      %1515 = vmatpush.msra.mxu0 0.0
      %1516 = vmatpush.msra.mxu0 0.0
      %1517 = vmatpush.msra.mxu0 0.0
      %1518 = vmatpush.msra.mxu0 0.0
      %1519 = vmatpush.msra.mxu0 0.0
      %1520 = vmatpush.msra.mxu0 0.0
      %1521 = vmatpush.msra.mxu0 0.0
      %1522 = vmatpush.msra.mxu0 0.0
      %1523 = vmatpush.msra.mxu0 0.0
      %1524 = vmatpush.msra.mxu0 0.0
      %1525 = vmatpush.msra.mxu0 0.0
      %1526 = vmatpush.msra.mxu0 0.0
      %1527 = vmatpush.msra.mxu0 %v484
      %1528 = vmatmul.f32.gmra.mxu0 %v1496
      %v1529 = vpop.f32.mrf.mxu0
      %v1530 = vadd.f32 0.0, %v1529
      %1531 = vmatmul.f32.gmra.mxu0 %v1498
      %v1532 = vpop.f32.mrf.mxu0
      %v1533 = vadd.f32 0.0, %v1532
      %1534 = vmatmul.f32.gmra.mxu0 %v1500
      %v1535 = vpop.f32.mrf.mxu0
      %v1536 = vadd.f32 0.0, %v1535
      %1537 = vmatmul.f32.gmra.mxu0 %v1502
      %v1538 = vpop.f32.mrf.mxu0
      %v1539 = vadd.f32 0.0, %v1538
      %1540 = vmatmul.f32.gmra.mxu0 %v1504
      %v1541 = vpop.f32.mrf.mxu0
      %v1542 = vadd.f32 0.0, %v1541
      %1543 = vmatmul.f32.gmra.mxu0 %v1506
      %v1544 = vpop.f32.mrf.mxu0
      %v1545 = vadd.f32 0.0, %v1544
      %1546 = vmatmul.f32.gmra.mxu0 %v1508
      %v1547 = vpop.f32.mrf.mxu0
      %v1548 = vadd.f32 0.0, %v1547
      %1549 = vmatmul.f32.gmra.mxu0 %v1510
      %v1550 = vpop.f32.mrf.mxu0
      %v1551 = vadd.f32 0.0, %v1550
      %1552 = vdwg.mxu0
      %v1561 = vrot.slane %v1530, 4
      %v1562 = vrot.slane %v1533, 4
      %v1563 = vrot.slane %v1536, 4
      %v1564 = vrot.slane %v1539, 4
      %v1565 = vrot.slane %v1542, 4
      %v1566 = vrot.slane %v1545, 4
      %v1567 = vrot.slane %v1548, 4
      %v1568 = vrot.slane %v1551, 4
      %1577 = vxpose.xlu0.b32.start [1/16] %v1530, 128
      %1578 = vxpose.xlu0.b32.cont [2/16] 0.0, 128
      %1579 = vxpose.xlu0.b32.cont [3/16] 0.0, 128
      %1580 = vxpose.xlu0.b32.cont [4/16] 0.0, 128
      %1581 = vxpose.xlu0.b32.cont [5/16] 0.0, 128
      %1582 = vxpose.xlu0.b32.cont [6/16] 0.0, 128
      %1583 = vxpose.xlu0.b32.cont [7/16] 0.0, 128
      %1584 = vxpose.xlu0.b32.cont [8/16] 0.0, 128
      %1585 = vxpose.xlu0.b32.cont [9/16] 0.0, 128
      %1586 = vxpose.xlu0.b32.cont [10/16] 0.0, 128
      %1587 = vxpose.xlu0.b32.cont [11/16] 0.0, 128
      %1588 = vxpose.xlu0.b32.cont [12/16] 0.0, 128
      %1589 = vxpose.xlu0.b32.cont [13/16] 0.0, 128
      %1590 = vxpose.xlu0.b32.cont [14/16] 0.0, 128
      %1591 = vxpose.xlu0.b32.cont [15/16] 0.0, 128
      %1592 = vxpose.xlu0.b32.end [16/16] 0.0, 128
      %v1593 = vpop.trf.xlu0
      %v1594 = vpop.trf.xlu0
      %v1595 = vpop.trf.xlu0
      %v1596 = vpop.trf.xlu0
      %v1597 = vpop.trf.xlu0
      %v1598 = vpop.trf.xlu0
      %v1599 = vpop.trf.xlu0
      %v1600 = vpop.trf.xlu0
      %v1601 = vpop.trf.xlu0
      %v1602 = vpop.trf.xlu0
      %v1603 = vpop.trf.xlu0
      %v1604 = vpop.trf.xlu0
      %v1605 = vpop.trf.xlu0
      %v1606 = vpop.trf.xlu0
      %v1607 = vpop.trf.xlu0
      %v1608 = vpop.trf.xlu0
      %1609 = vxpose.xlu0.b32.start [1/16] %v1561, 128
      %1610 = vxpose.xlu0.b32.cont [2/16] 0.0, 128
      %1611 = vxpose.xlu0.b32.cont [3/16] 0.0, 128
      %1612 = vxpose.xlu0.b32.cont [4/16] 0.0, 128
      %1613 = vxpose.xlu0.b32.cont [5/16] 0.0, 128
      %1614 = vxpose.xlu0.b32.cont [6/16] 0.0, 128
      %1615 = vxpose.xlu0.b32.cont [7/16] 0.0, 128
      %1616 = vxpose.xlu0.b32.cont [8/16] 0.0, 128
      %1617 = vxpose.xlu0.b32.cont [9/16] 0.0, 128
      %1618 = vxpose.xlu0.b32.cont [10/16] 0.0, 128
      %1619 = vxpose.xlu0.b32.cont [11/16] 0.0, 128
      %1620 = vxpose.xlu0.b32.cont [12/16] 0.0, 128
      %1621 = vxpose.xlu0.b32.cont [13/16] 0.0, 128
      %1622 = vxpose.xlu0.b32.cont [14/16] 0.0, 128
      %1623 = vxpose.xlu0.b32.cont [15/16] 0.0, 128
      %1624 = vxpose.xlu0.b32.end [16/16] 0.0, 128
      %v1625 = vpop.trf.xlu0
      %v1626 = vpop.trf.xlu0
      %v1627 = vpop.trf.xlu0
      %v1628 = vpop.trf.xlu0
      %v1629 = vpop.trf.xlu0
      %v1630 = vpop.trf.xlu0
      %v1631 = vpop.trf.xlu0
      %v1632 = vpop.trf.xlu0
      %v1633 = vpop.trf.xlu0
      %v1634 = vpop.trf.xlu0
      %v1635 = vpop.trf.xlu0
      %v1636 = vpop.trf.xlu0
      %v1637 = vpop.trf.xlu0
      %v1638 = vpop.trf.xlu0
      %v1639 = vpop.trf.xlu0
      %v1640 = vpop.trf.xlu0
      %1641 = vxpose.xlu0.b32.start [1/16] %v1533, 128
      %1642 = vxpose.xlu0.b32.cont [2/16] 0.0, 128
      %1643 = vxpose.xlu0.b32.cont [3/16] 0.0, 128
      %1644 = vxpose.xlu0.b32.cont [4/16] 0.0, 128
      %1645 = vxpose.xlu0.b32.cont [5/16] 0.0, 128
      %1646 = vxpose.xlu0.b32.cont [6/16] 0.0, 128
      %1647 = vxpose.xlu0.b32.cont [7/16] 0.0, 128
      %1648 = vxpose.xlu0.b32.cont [8/16] 0.0, 128
      %1649 = vxpose.xlu0.b32.cont [9/16] 0.0, 128
      %1650 = vxpose.xlu0.b32.cont [10/16] 0.0, 128
      %1651 = vxpose.xlu0.b32.cont [11/16] 0.0, 128
      %1652 = vxpose.xlu0.b32.cont [12/16] 0.0, 128
      %1653 = vxpose.xlu0.b32.cont [13/16] 0.0, 128
      %1654 = vxpose.xlu0.b32.cont [14/16] 0.0, 128
      %1655 = vxpose.xlu0.b32.cont [15/16] 0.0, 128
      %1656 = vxpose.xlu0.b32.end [16/16] 0.0, 128
      %v1657 = vpop.trf.xlu0
      %v1658 = vpop.trf.xlu0
      %v1659 = vpop.trf.xlu0
      %v1660 = vpop.trf.xlu0
      %v1661 = vpop.trf.xlu0
      %v1662 = vpop.trf.xlu0
      %v1663 = vpop.trf.xlu0
      %v1664 = vpop.trf.xlu0
      %v1665 = vpop.trf.xlu0
      %v1666 = vpop.trf.xlu0
      %v1667 = vpop.trf.xlu0
      %v1668 = vpop.trf.xlu0
      %v1669 = vpop.trf.xlu0
      %v1670 = vpop.trf.xlu0
      %v1671 = vpop.trf.xlu0
      %v1672 = vpop.trf.xlu0
      %1673 = vxpose.xlu0.b32.start [1/16] %v1562, 128
      %1674 = vxpose.xlu0.b32.cont [2/16] 0.0, 128
      %1675 = vxpose.xlu0.b32.cont [3/16] 0.0, 128
      %1676 = vxpose.xlu0.b32.cont [4/16] 0.0, 128
      %1677 = vxpose.xlu0.b32.cont [5/16] 0.0, 128
      %1678 = vxpose.xlu0.b32.cont [6/16] 0.0, 128
      %1679 = vxpose.xlu0.b32.cont [7/16] 0.0, 128
      %1680 = vxpose.xlu0.b32.cont [8/16] 0.0, 128
      %1681 = vxpose.xlu0.b32.cont [9/16] 0.0, 128
      %1682 = vxpose.xlu0.b32.cont [10/16] 0.0, 128
      %1683 = vxpose.xlu0.b32.cont [11/16] 0.0, 128
      %1684 = vxpose.xlu0.b32.cont [12/16] 0.0, 128
      %1685 = vxpose.xlu0.b32.cont [13/16] 0.0, 128
      %1686 = vxpose.xlu0.b32.cont [14/16] 0.0, 128
      %1687 = vxpose.xlu0.b32.cont [15/16] 0.0, 128
      %1688 = vxpose.xlu0.b32.end [16/16] 0.0, 128
      %v1689 = vpop.trf.xlu0
      %v1690 = vpop.trf.xlu0
      %v1691 = vpop.trf.xlu0
      %v1692 = vpop.trf.xlu0
      %v1693 = vpop.trf.xlu0
      %v1694 = vpop.trf.xlu0
      %v1695 = vpop.trf.xlu0
      %v1696 = vpop.trf.xlu0
      %v1697 = vpop.trf.xlu0
      %v1698 = vpop.trf.xlu0
      %v1699 = vpop.trf.xlu0
      %v1700 = vpop.trf.xlu0
      %v1701 = vpop.trf.xlu0
      %v1702 = vpop.trf.xlu0
      %v1703 = vpop.trf.xlu0
      %v1704 = vpop.trf.xlu0
      %1705 = vxpose.xlu0.b32.start [1/16] %v1536, 128
      %1706 = vxpose.xlu0.b32.cont [2/16] 0.0, 128
      %1707 = vxpose.xlu0.b32.cont [3/16] 0.0, 128
      %1708 = vxpose.xlu0.b32.cont [4/16] 0.0, 128
      %1709 = vxpose.xlu0.b32.cont [5/16] 0.0, 128
      %1710 = vxpose.xlu0.b32.cont [6/16] 0.0, 128
      %1711 = vxpose.xlu0.b32.cont [7/16] 0.0, 128
      %1712 = vxpose.xlu0.b32.cont [8/16] 0.0, 128
      %1713 = vxpose.xlu0.b32.cont [9/16] 0.0, 128
      %1714 = vxpose.xlu0.b32.cont [10/16] 0.0, 128
      %1715 = vxpose.xlu0.b32.cont [11/16] 0.0, 128
      %1716 = vxpose.xlu0.b32.cont [12/16] 0.0, 128
      %1717 = vxpose.xlu0.b32.cont [13/16] 0.0, 128
      %1718 = vxpose.xlu0.b32.cont [14/16] 0.0, 128
      %1719 = vxpose.xlu0.b32.cont [15/16] 0.0, 128
      %1720 = vxpose.xlu0.b32.end [16/16] 0.0, 128
      %v1721 = vpop.trf.xlu0
      %v1722 = vpop.trf.xlu0
      %v1723 = vpop.trf.xlu0
      %v1724 = vpop.trf.xlu0
      %v1725 = vpop.trf.xlu0
      %v1726 = vpop.trf.xlu0
      %v1727 = vpop.trf.xlu0
      %v1728 = vpop.trf.xlu0
      %v1729 = vpop.trf.xlu0
      %v1730 = vpop.trf.xlu0
      %v1731 = vpop.trf.xlu0
      %v1732 = vpop.trf.xlu0
      %v1733 = vpop.trf.xlu0
      %v1734 = vpop.trf.xlu0
      %v1735 = vpop.trf.xlu0
      %v1736 = vpop.trf.xlu0
      %1737 = vxpose.xlu0.b32.start [1/16] %v1563, 128
      %1738 = vxpose.xlu0.b32.cont [2/16] 0.0, 128
      %1739 = vxpose.xlu0.b32.cont [3/16] 0.0, 128
      %1740 = vxpose.xlu0.b32.cont [4/16] 0.0, 128
      %1741 = vxpose.xlu0.b32.cont [5/16] 0.0, 128
      %1742 = vxpose.xlu0.b32.cont [6/16] 0.0, 128
      %1743 = vxpose.xlu0.b32.cont [7/16] 0.0, 128
      %1744 = vxpose.xlu0.b32.cont [8/16] 0.0, 128
      %1745 = vxpose.xlu0.b32.cont [9/16] 0.0, 128
      %1746 = vxpose.xlu0.b32.cont [10/16] 0.0, 128
      %1747 = vxpose.xlu0.b32.cont [11/16] 0.0, 128
      %1748 = vxpose.xlu0.b32.cont [12/16] 0.0, 128
      %1749 = vxpose.xlu0.b32.cont [13/16] 0.0, 128
      %1750 = vxpose.xlu0.b32.cont [14/16] 0.0, 128
      %1751 = vxpose.xlu0.b32.cont [15/16] 0.0, 128
      %1752 = vxpose.xlu0.b32.end [16/16] 0.0, 128
      %v1753 = vpop.trf.xlu0
      %v1754 = vpop.trf.xlu0
      %v1755 = vpop.trf.xlu0
      %v1756 = vpop.trf.xlu0
      %v1757 = vpop.trf.xlu0
      %v1758 = vpop.trf.xlu0
      %v1759 = vpop.trf.xlu0
      %v1760 = vpop.trf.xlu0
      %v1761 = vpop.trf.xlu0
      %v1762 = vpop.trf.xlu0
      %v1763 = vpop.trf.xlu0
      %v1764 = vpop.trf.xlu0
      %v1765 = vpop.trf.xlu0
      %v1766 = vpop.trf.xlu0
      %v1767 = vpop.trf.xlu0
      %v1768 = vpop.trf.xlu0
      %1769 = vxpose.xlu0.b32.start [1/16] %v1539, 128
      %1770 = vxpose.xlu0.b32.cont [2/16] 0.0, 128
      %1771 = vxpose.xlu0.b32.cont [3/16] 0.0, 128
      %1772 = vxpose.xlu0.b32.cont [4/16] 0.0, 128
      %1773 = vxpose.xlu0.b32.cont [5/16] 0.0, 128
      %1774 = vxpose.xlu0.b32.cont [6/16] 0.0, 128
      %1775 = vxpose.xlu0.b32.cont [7/16] 0.0, 128
      %1776 = vxpose.xlu0.b32.cont [8/16] 0.0, 128
      %1777 = vxpose.xlu0.b32.cont [9/16] 0.0, 128
      %1778 = vxpose.xlu0.b32.cont [10/16] 0.0, 128
      %1779 = vxpose.xlu0.b32.cont [11/16] 0.0, 128
      %1780 = vxpose.xlu0.b32.cont [12/16] 0.0, 128
      %1781 = vxpose.xlu0.b32.cont [13/16] 0.0, 128
      %1782 = vxpose.xlu0.b32.cont [14/16] 0.0, 128
      %1783 = vxpose.xlu0.b32.cont [15/16] 0.0, 128
      %1784 = vxpose.xlu0.b32.end [16/16] 0.0, 128
      %v1785 = vpop.trf.xlu0
      %v1786 = vpop.trf.xlu0
      %v1787 = vpop.trf.xlu0
      %v1788 = vpop.trf.xlu0
      %v1789 = vpop.trf.xlu0
      %v1790 = vpop.trf.xlu0
      %v1791 = vpop.trf.xlu0
      %v1792 = vpop.trf.xlu0
      %v1793 = vpop.trf.xlu0
      %v1794 = vpop.trf.xlu0
      %v1795 = vpop.trf.xlu0
      %v1796 = vpop.trf.xlu0
      %v1797 = vpop.trf.xlu0
      %v1798 = vpop.trf.xlu0
      %v1799 = vpop.trf.xlu0
      %v1800 = vpop.trf.xlu0
      %1801 = vxpose.xlu0.b32.start [1/16] %v1564, 128
      %1802 = vxpose.xlu0.b32.cont [2/16] 0.0, 128
      %1803 = vxpose.xlu0.b32.cont [3/16] 0.0, 128
      %1804 = vxpose.xlu0.b32.cont [4/16] 0.0, 128
      %1805 = vxpose.xlu0.b32.cont [5/16] 0.0, 128
      %1806 = vxpose.xlu0.b32.cont [6/16] 0.0, 128
      %1807 = vxpose.xlu0.b32.cont [7/16] 0.0, 128
      %1808 = vxpose.xlu0.b32.cont [8/16] 0.0, 128
      %1809 = vxpose.xlu0.b32.cont [9/16] 0.0, 128
      %1810 = vxpose.xlu0.b32.cont [10/16] 0.0, 128
      %1811 = vxpose.xlu0.b32.cont [11/16] 0.0, 128
      %1812 = vxpose.xlu0.b32.cont [12/16] 0.0, 128
      %1813 = vxpose.xlu0.b32.cont [13/16] 0.0, 128
      %1814 = vxpose.xlu0.b32.cont [14/16] 0.0, 128
      %1815 = vxpose.xlu0.b32.cont [15/16] 0.0, 128
      %1816 = vxpose.xlu0.b32.end [16/16] 0.0, 128
      %v1817 = vpop.trf.xlu0
      %v1818 = vpop.trf.xlu0
      %v1819 = vpop.trf.xlu0
      %v1820 = vpop.trf.xlu0
      %v1821 = vpop.trf.xlu0
      %v1822 = vpop.trf.xlu0
      %v1823 = vpop.trf.xlu0
      %v1824 = vpop.trf.xlu0
      %v1825 = vpop.trf.xlu0
      %v1826 = vpop.trf.xlu0
      %v1827 = vpop.trf.xlu0
      %v1828 = vpop.trf.xlu0
      %v1829 = vpop.trf.xlu0
      %v1830 = vpop.trf.xlu0
      %v1831 = vpop.trf.xlu0
      %v1832 = vpop.trf.xlu0
      %1833 = vxpose.xlu0.b32.start [1/16] %v1542, 128
      %1834 = vxpose.xlu0.b32.cont [2/16] 0.0, 128
      %1835 = vxpose.xlu0.b32.cont [3/16] 0.0, 128
      %1836 = vxpose.xlu0.b32.cont [4/16] 0.0, 128
      %1837 = vxpose.xlu0.b32.cont [5/16] 0.0, 128
      %1838 = vxpose.xlu0.b32.cont [6/16] 0.0, 128
      %1839 = vxpose.xlu0.b32.cont [7/16] 0.0, 128
      %1840 = vxpose.xlu0.b32.cont [8/16] 0.0, 128
      %1841 = vxpose.xlu0.b32.cont [9/16] 0.0, 128
      %1842 = vxpose.xlu0.b32.cont [10/16] 0.0, 128
      %1843 = vxpose.xlu0.b32.cont [11/16] 0.0, 128
      %1844 = vxpose.xlu0.b32.cont [12/16] 0.0, 128
      %1845 = vxpose.xlu0.b32.cont [13/16] 0.0, 128
      %1846 = vxpose.xlu0.b32.cont [14/16] 0.0, 128
      %1847 = vxpose.xlu0.b32.cont [15/16] 0.0, 128
      %1848 = vxpose.xlu0.b32.end [16/16] 0.0, 128
      %v1849 = vpop.trf.xlu0
      %v1850 = vpop.trf.xlu0
      %v1851 = vpop.trf.xlu0
      %v1852 = vpop.trf.xlu0
      %v1853 = vpop.trf.xlu0
      %v1854 = vpop.trf.xlu0
      %v1855 = vpop.trf.xlu0
      %v1856 = vpop.trf.xlu0
      %v1857 = vpop.trf.xlu0
      %v1858 = vpop.trf.xlu0
      %v1859 = vpop.trf.xlu0
      %v1860 = vpop.trf.xlu0
      %v1861 = vpop.trf.xlu0
      %v1862 = vpop.trf.xlu0
      %v1863 = vpop.trf.xlu0
      %v1864 = vpop.trf.xlu0
      %1865 = vxpose.xlu0.b32.start [1/16] %v1565, 128
      %1866 = vxpose.xlu0.b32.cont [2/16] 0.0, 128
      %1867 = vxpose.xlu0.b32.cont [3/16] 0.0, 128
      %1868 = vxpose.xlu0.b32.cont [4/16] 0.0, 128
      %1869 = vxpose.xlu0.b32.cont [5/16] 0.0, 128
      %1870 = vxpose.xlu0.b32.cont [6/16] 0.0, 128
      %1871 = vxpose.xlu0.b32.cont [7/16] 0.0, 128
      %1872 = vxpose.xlu0.b32.cont [8/16] 0.0, 128
      %1873 = vxpose.xlu0.b32.cont [9/16] 0.0, 128
      %1874 = vxpose.xlu0.b32.cont [10/16] 0.0, 128
      %1875 = vxpose.xlu0.b32.cont [11/16] 0.0, 128
      %1876 = vxpose.xlu0.b32.cont [12/16] 0.0, 128
      %1877 = vxpose.xlu0.b32.cont [13/16] 0.0, 128
      %1878 = vxpose.xlu0.b32.cont [14/16] 0.0, 128
      %1879 = vxpose.xlu0.b32.cont [15/16] 0.0, 128
      %1880 = vxpose.xlu0.b32.end [16/16] 0.0, 128
      %v1881 = vpop.trf.xlu0
      %v1882 = vpop.trf.xlu0
      %v1883 = vpop.trf.xlu0
      %v1884 = vpop.trf.xlu0
      %v1885 = vpop.trf.xlu0
      %v1886 = vpop.trf.xlu0
      %v1887 = vpop.trf.xlu0
      %v1888 = vpop.trf.xlu0
      %v1889 = vpop.trf.xlu0
      %v1890 = vpop.trf.xlu0
      %v1891 = vpop.trf.xlu0
      %v1892 = vpop.trf.xlu0
      %v1893 = vpop.trf.xlu0
      %v1894 = vpop.trf.xlu0
      %v1895 = vpop.trf.xlu0
      %v1896 = vpop.trf.xlu0
      %1897 = vxpose.xlu0.b32.start [1/16] %v1545, 128
      %1898 = vxpose.xlu0.b32.cont [2/16] 0.0, 128
      %1899 = vxpose.xlu0.b32.cont [3/16] 0.0, 128
      %1900 = vxpose.xlu0.b32.cont [4/16] 0.0, 128
      %1901 = vxpose.xlu0.b32.cont [5/16] 0.0, 128
      %1902 = vxpose.xlu0.b32.cont [6/16] 0.0, 128
      %1903 = vxpose.xlu0.b32.cont [7/16] 0.0, 128
      %1904 = vxpose.xlu0.b32.cont [8/16] 0.0, 128
      %1905 = vxpose.xlu0.b32.cont [9/16] 0.0, 128
      %1906 = vxpose.xlu0.b32.cont [10/16] 0.0, 128
      %1907 = vxpose.xlu0.b32.cont [11/16] 0.0, 128
      %1908 = vxpose.xlu0.b32.cont [12/16] 0.0, 128
      %1909 = vxpose.xlu0.b32.cont [13/16] 0.0, 128
      %1910 = vxpose.xlu0.b32.cont [14/16] 0.0, 128
      %1911 = vxpose.xlu0.b32.cont [15/16] 0.0, 128
      %1912 = vxpose.xlu0.b32.end [16/16] 0.0, 128
      %v1913 = vpop.trf.xlu0
      %v1914 = vpop.trf.xlu0
      %v1915 = vpop.trf.xlu0
      %v1916 = vpop.trf.xlu0
      %v1917 = vpop.trf.xlu0
      %v1918 = vpop.trf.xlu0
      %v1919 = vpop.trf.xlu0
      %v1920 = vpop.trf.xlu0
      %v1921 = vpop.trf.xlu0
      %v1922 = vpop.trf.xlu0
      %v1923 = vpop.trf.xlu0
      %v1924 = vpop.trf.xlu0
      %v1925 = vpop.trf.xlu0
      %v1926 = vpop.trf.xlu0
      %v1927 = vpop.trf.xlu0
      %v1928 = vpop.trf.xlu0
      %1929 = vxpose.xlu0.b32.start [1/16] %v1566, 128
      %1930 = vxpose.xlu0.b32.cont [2/16] 0.0, 128
      %1931 = vxpose.xlu0.b32.cont [3/16] 0.0, 128
      %1932 = vxpose.xlu0.b32.cont [4/16] 0.0, 128
      %1933 = vxpose.xlu0.b32.cont [5/16] 0.0, 128
      %1934 = vxpose.xlu0.b32.cont [6/16] 0.0, 128
      %1935 = vxpose.xlu0.b32.cont [7/16] 0.0, 128
      %1936 = vxpose.xlu0.b32.cont [8/16] 0.0, 128
      %1937 = vxpose.xlu0.b32.cont [9/16] 0.0, 128
      %1938 = vxpose.xlu0.b32.cont [10/16] 0.0, 128
      %1939 = vxpose.xlu0.b32.cont [11/16] 0.0, 128
      %1940 = vxpose.xlu0.b32.cont [12/16] 0.0, 128
      %1941 = vxpose.xlu0.b32.cont [13/16] 0.0, 128
      %1942 = vxpose.xlu0.b32.cont [14/16] 0.0, 128
      %1943 = vxpose.xlu0.b32.cont [15/16] 0.0, 128
      %1944 = vxpose.xlu0.b32.end [16/16] 0.0, 128
      %v1945 = vpop.trf.xlu0
      %v1946 = vpop.trf.xlu0
      %v1947 = vpop.trf.xlu0
      %v1948 = vpop.trf.xlu0
      %v1949 = vpop.trf.xlu0
      %v1950 = vpop.trf.xlu0
      %v1951 = vpop.trf.xlu0
      %v1952 = vpop.trf.xlu0
      %v1953 = vpop.trf.xlu0
      %v1954 = vpop.trf.xlu0
      %v1955 = vpop.trf.xlu0
      %v1956 = vpop.trf.xlu0
      %v1957 = vpop.trf.xlu0
      %v1958 = vpop.trf.xlu0
      %v1959 = vpop.trf.xlu0
      %v1960 = vpop.trf.xlu0
      %1961 = vxpose.xlu0.b32.start [1/16] %v1548, 128
      %1962 = vxpose.xlu0.b32.cont [2/16] 0.0, 128
      %1963 = vxpose.xlu0.b32.cont [3/16] 0.0, 128
      %1964 = vxpose.xlu0.b32.cont [4/16] 0.0, 128
      %1965 = vxpose.xlu0.b32.cont [5/16] 0.0, 128
      %1966 = vxpose.xlu0.b32.cont [6/16] 0.0, 128
      %1967 = vxpose.xlu0.b32.cont [7/16] 0.0, 128
      %1968 = vxpose.xlu0.b32.cont [8/16] 0.0, 128
      %1969 = vxpose.xlu0.b32.cont [9/16] 0.0, 128
      %1970 = vxpose.xlu0.b32.cont [10/16] 0.0, 128
      %1971 = vxpose.xlu0.b32.cont [11/16] 0.0, 128
      %1972 = vxpose.xlu0.b32.cont [12/16] 0.0, 128
      %1973 = vxpose.xlu0.b32.cont [13/16] 0.0, 128
      %1974 = vxpose.xlu0.b32.cont [14/16] 0.0, 128
      %1975 = vxpose.xlu0.b32.cont [15/16] 0.0, 128
      %1976 = vxpose.xlu0.b32.end [16/16] 0.0, 128
      %v1977 = vpop.trf.xlu0
      %v1978 = vpop.trf.xlu0
      %v1979 = vpop.trf.xlu0
      %v1980 = vpop.trf.xlu0
      %v1981 = vpop.trf.xlu0
      %v1982 = vpop.trf.xlu0
      %v1983 = vpop.trf.xlu0
      %v1984 = vpop.trf.xlu0
      %v1985 = vpop.trf.xlu0
      %v1986 = vpop.trf.xlu0
      %v1987 = vpop.trf.xlu0
      %v1988 = vpop.trf.xlu0
      %v1989 = vpop.trf.xlu0
      %v1990 = vpop.trf.xlu0
      %v1991 = vpop.trf.xlu0
      %v1992 = vpop.trf.xlu0
      %1993 = vxpose.xlu0.b32.start [1/16] %v1567, 128
      %1994 = vxpose.xlu0.b32.cont [2/16] 0.0, 128
      %1995 = vxpose.xlu0.b32.cont [3/16] 0.0, 128
      %1996 = vxpose.xlu0.b32.cont [4/16] 0.0, 128
      %1997 = vxpose.xlu0.b32.cont [5/16] 0.0, 128
      %1998 = vxpose.xlu0.b32.cont [6/16] 0.0, 128
      %1999 = vxpose.xlu0.b32.cont [7/16] 0.0, 128
      %2000 = vxpose.xlu0.b32.cont [8/16] 0.0, 128
      %2001 = vxpose.xlu0.b32.cont [9/16] 0.0, 128
      %2002 = vxpose.xlu0.b32.cont [10/16] 0.0, 128
      %2003 = vxpose.xlu0.b32.cont [11/16] 0.0, 128
      %2004 = vxpose.xlu0.b32.cont [12/16] 0.0, 128
      %2005 = vxpose.xlu0.b32.cont [13/16] 0.0, 128
      %2006 = vxpose.xlu0.b32.cont [14/16] 0.0, 128
      %2007 = vxpose.xlu0.b32.cont [15/16] 0.0, 128
      %2008 = vxpose.xlu0.b32.end [16/16] 0.0, 128
      %v2009 = vpop.trf.xlu0
      %v2010 = vpop.trf.xlu0
      %v2011 = vpop.trf.xlu0
      %v2012 = vpop.trf.xlu0
      %v2013 = vpop.trf.xlu0
      %v2014 = vpop.trf.xlu0
      %v2015 = vpop.trf.xlu0
      %v2016 = vpop.trf.xlu0
      %v2017 = vpop.trf.xlu0
      %v2018 = vpop.trf.xlu0
      %v2019 = vpop.trf.xlu0
      %v2020 = vpop.trf.xlu0
      %v2021 = vpop.trf.xlu0
      %v2022 = vpop.trf.xlu0
      %v2023 = vpop.trf.xlu0
      %v2024 = vpop.trf.xlu0
      %2025 = vxpose.xlu0.b32.start [1/16] %v1551, 128
      %2026 = vxpose.xlu0.b32.cont [2/16] 0.0, 128
      %2027 = vxpose.xlu0.b32.cont [3/16] 0.0, 128
      %2028 = vxpose.xlu0.b32.cont [4/16] 0.0, 128
      %2029 = vxpose.xlu0.b32.cont [5/16] 0.0, 128
      %2030 = vxpose.xlu0.b32.cont [6/16] 0.0, 128
      %2031 = vxpose.xlu0.b32.cont [7/16] 0.0, 128
      %2032 = vxpose.xlu0.b32.cont [8/16] 0.0, 128
      %2033 = vxpose.xlu0.b32.cont [9/16] 0.0, 128
      %2034 = vxpose.xlu0.b32.cont [10/16] 0.0, 128
      %2035 = vxpose.xlu0.b32.cont [11/16] 0.0, 128
      %2036 = vxpose.xlu0.b32.cont [12/16] 0.0, 128
      %2037 = vxpose.xlu0.b32.cont [13/16] 0.0, 128
      %2038 = vxpose.xlu0.b32.cont [14/16] 0.0, 128
      %2039 = vxpose.xlu0.b32.cont [15/16] 0.0, 128
      %2040 = vxpose.xlu0.b32.end [16/16] 0.0, 128
      %v2041 = vpop.trf.xlu0
      %v2042 = vpop.trf.xlu0
      %v2043 = vpop.trf.xlu0
      %v2044 = vpop.trf.xlu0
      %v2045 = vpop.trf.xlu0
      %v2046 = vpop.trf.xlu0
      %v2047 = vpop.trf.xlu0
      %v2048 = vpop.trf.xlu0
      %v2049 = vpop.trf.xlu0
      %v2050 = vpop.trf.xlu0
      %v2051 = vpop.trf.xlu0
      %v2052 = vpop.trf.xlu0
      %v2053 = vpop.trf.xlu0
      %v2054 = vpop.trf.xlu0
      %v2055 = vpop.trf.xlu0
      %v2056 = vpop.trf.xlu0
      %2057 = vxpose.xlu0.b32.start [1/16] %v1568, 128
      %2058 = vxpose.xlu0.b32.cont [2/16] 0.0, 128
      %2059 = vxpose.xlu0.b32.cont [3/16] 0.0, 128
      %2060 = vxpose.xlu0.b32.cont [4/16] 0.0, 128
      %2061 = vxpose.xlu0.b32.cont [5/16] 0.0, 128
      %2062 = vxpose.xlu0.b32.cont [6/16] 0.0, 128
      %2063 = vxpose.xlu0.b32.cont [7/16] 0.0, 128
      %2064 = vxpose.xlu0.b32.cont [8/16] 0.0, 128
      %2065 = vxpose.xlu0.b32.cont [9/16] 0.0, 128
      %2066 = vxpose.xlu0.b32.cont [10/16] 0.0, 128
      %2067 = vxpose.xlu0.b32.cont [11/16] 0.0, 128
      %2068 = vxpose.xlu0.b32.cont [12/16] 0.0, 128
      %2069 = vxpose.xlu0.b32.cont [13/16] 0.0, 128
      %2070 = vxpose.xlu0.b32.cont [14/16] 0.0, 128
      %2071 = vxpose.xlu0.b32.cont [15/16] 0.0, 128
      %2072 = vxpose.xlu0.b32.end [16/16] 0.0, 128
      %v2073 = vpop.trf.xlu0
      %v2074 = vpop.trf.xlu0
      %v2075 = vpop.trf.xlu0
      %v2076 = vpop.trf.xlu0
      %v2077 = vpop.trf.xlu0
      %v2078 = vpop.trf.xlu0
      %v2079 = vpop.trf.xlu0
      %v2080 = vpop.trf.xlu0
      %v2081 = vpop.trf.xlu0
      %v2082 = vpop.trf.xlu0
      %v2083 = vpop.trf.xlu0
      %v2084 = vpop.trf.xlu0
      %v2085 = vpop.trf.xlu0
      %v2086 = vpop.trf.xlu0
      %v2087 = vpop.trf.xlu0
      %v2088 = vpop.trf.xlu0
      %v2089 = vld [vmem:[%s454] sm:$0xff]
      %v2090 = vld [vmem:[%s454 + $0x8] sm:$0xff]
      %v2091 = vld [vmem:[%s454 + $0x10] sm:$0xff]
      %v2092 = vld [vmem:[%s454 + $0x18] sm:$0xff]
      %v2093 = vld [vmem:[%s454 + $0x20] sm:$0xff]
      %v2094 = vld [vmem:[%s454 + $0x28] sm:$0xff]
      %v2095 = vld [vmem:[%s454 + $0x30] sm:$0xff]
      %v2096 = vld [vmem:[%s454 + $0x38] sm:$0xff]
      %v2097 = vld [vmem:[%s454 + $0x40] sm:$0xff]
      %v2098 = vld [vmem:[%s454 + $0x48] sm:$0xff]
      %v2099 = vld [vmem:[%s454 + $0x50] sm:$0xff]
      %v2100 = vld [vmem:[%s454 + $0x58] sm:$0xff]
      %v2101 = vld [vmem:[%s454 + $0x60] sm:$0xff]
      %v2102 = vld [vmem:[%s454 + $0x68] sm:$0xff]
      %v2103 = vld [vmem:[%s454 + $0x70] sm:$0xff]
      %v2104 = vld [vmem:[%s454 + $0x78] sm:$0xff]
      %v2105 = vld [vmem:[%s454 + $0x80] sm:$0xff]
      %v2106 = vld [vmem:[%s454 + $0x88] sm:$0xff]
      %v2107 = vld [vmem:[%s454 + $0x90] sm:$0xff]
      %v2108 = vld [vmem:[%s454 + $0x98] sm:$0xff]
      %v2109 = vld [vmem:[%s454 + $0xa0] sm:$0xff]
      %v2110 = vld [vmem:[%s454 + $0xa8] sm:$0xff]
      %v2111 = vld [vmem:[%s454 + $0xb0] sm:$0xff]
      %v2112 = vld [vmem:[%s454 + $0xb8] sm:$0xff]
      %v2113 = vld [vmem:[%s454 + $0xc0] sm:$0xff]
      %v2114 = vld [vmem:[%s454 + $0xc8] sm:$0xff]
      %v2115 = vld [vmem:[%s454 + $0xd0] sm:$0xff]
      %v2116 = vld [vmem:[%s454 + $0xd8] sm:$0xff]
      %v2117 = vld [vmem:[%s454 + $0xe0] sm:$0xff]
      %v2118 = vld [vmem:[%s454 + $0xe8] sm:$0xff]
      %v2119 = vld [vmem:[%s454 + $0xf0] sm:$0xff]
      %v2120 = vld [vmem:[%s454 + $0xf8] sm:$0xff]
      %v2121 = vsel %vm626, %v2089, 0.0
      %2122 = vadd.xlane.f32.xlu0 %v2121
      %v2123 = vpop.xlane.xlu0 %2122
      %v2124 = vsel %vm626, %v2090, 0.0
      %2125 = vadd.xlane.f32.xlu0 %v2124
      %v2126 = vpop.xlane.xlu0 %2125
      %v2127 = vsel %vm626, %v2091, 0.0
      %2128 = vadd.xlane.f32.xlu0 %v2127
      %v2129 = vpop.xlane.xlu0 %2128
      %v2130 = vsel %vm626, %v2092, 0.0
      %2131 = vadd.xlane.f32.xlu0 %v2130
      %v2132 = vpop.xlane.xlu0 %2131
      %v2133 = vsel %vm626, %v2093, 0.0
      %2134 = vadd.xlane.f32.xlu0 %v2133
      %v2135 = vpop.xlane.xlu0 %2134
      %v2136 = vsel %vm626, %v2094, 0.0
      %2137 = vadd.xlane.f32.xlu0 %v2136
      %v2138 = vpop.xlane.xlu0 %2137
      %v2139 = vsel %vm626, %v2095, 0.0
      %2140 = vadd.xlane.f32.xlu0 %v2139
      %v2141 = vpop.xlane.xlu0 %2140
      %v2142 = vsel %vm626, %v2096, 0.0
      %2143 = vadd.xlane.f32.xlu0 %v2142
      %v2144 = vpop.xlane.xlu0 %2143
      %v2145 = vsel %vm626, %v2097, 0.0
      %2146 = vadd.xlane.f32.xlu0 %v2145
      %v2147 = vpop.xlane.xlu0 %2146
      %v2148 = vsel %vm626, %v2098, 0.0
      %2149 = vadd.xlane.f32.xlu0 %v2148
      %v2150 = vpop.xlane.xlu0 %2149
      %v2151 = vsel %vm626, %v2099, 0.0
      %2152 = vadd.xlane.f32.xlu0 %v2151
      %v2153 = vpop.xlane.xlu0 %2152
      %v2154 = vsel %vm626, %v2100, 0.0
      %2155 = vadd.xlane.f32.xlu0 %v2154
      %v2156 = vpop.xlane.xlu0 %2155
      %v2157 = vsel %vm626, %v2101, 0.0
      %2158 = vadd.xlane.f32.xlu0 %v2157
      %v2159 = vpop.xlane.xlu0 %2158
      %v2160 = vsel %vm626, %v2102, 0.0
      %2161 = vadd.xlane.f32.xlu0 %v2160
      %v2162 = vpop.xlane.xlu0 %2161
      %v2163 = vsel %vm626, %v2103, 0.0
      %2164 = vadd.xlane.f32.xlu0 %v2163
      %v2165 = vpop.xlane.xlu0 %2164
      %v2166 = vsel %vm626, %v2104, 0.0
      %2167 = vadd.xlane.f32.xlu0 %v2166
      %v2168 = vpop.xlane.xlu0 %2167
      %v2169 = vsel %vm626, %v2105, 0.0
      %2170 = vadd.xlane.f32.xlu0 %v2169
      %v2171 = vpop.xlane.xlu0 %2170
      %v2172 = vsel %vm626, %v2106, 0.0
      %2173 = vadd.xlane.f32.xlu0 %v2172
      %v2174 = vpop.xlane.xlu0 %2173
      %v2175 = vsel %vm626, %v2107, 0.0
      %2176 = vadd.xlane.f32.xlu0 %v2175
      %v2177 = vpop.xlane.xlu0 %2176
      %v2178 = vsel %vm626, %v2108, 0.0
      %2179 = vadd.xlane.f32.xlu0 %v2178
      %v2180 = vpop.xlane.xlu0 %2179
      %v2181 = vsel %vm626, %v2109, 0.0
      %2182 = vadd.xlane.f32.xlu0 %v2181
      %v2183 = vpop.xlane.xlu0 %2182
      %v2184 = vsel %vm626, %v2110, 0.0
      %2185 = vadd.xlane.f32.xlu0 %v2184
      %v2186 = vpop.xlane.xlu0 %2185
      %v2187 = vsel %vm626, %v2111, 0.0
      %2188 = vadd.xlane.f32.xlu0 %v2187
      %v2189 = vpop.xlane.xlu0 %2188
      %v2190 = vsel %vm626, %v2112, 0.0
      %2191 = vadd.xlane.f32.xlu0 %v2190
      %v2192 = vpop.xlane.xlu0 %2191
      %v2193 = vsel %vm626, %v2113, 0.0
      %2194 = vadd.xlane.f32.xlu0 %v2193
      %v2195 = vpop.xlane.xlu0 %2194
      %v2196 = vsel %vm626, %v2114, 0.0
      %2197 = vadd.xlane.f32.xlu0 %v2196
      %v2198 = vpop.xlane.xlu0 %2197
      %v2199 = vsel %vm626, %v2115, 0.0
      %2200 = vadd.xlane.f32.xlu0 %v2199
      %v2201 = vpop.xlane.xlu0 %2200
      %v2202 = vsel %vm626, %v2116, 0.0
      %2203 = vadd.xlane.f32.xlu0 %v2202
      %v2204 = vpop.xlane.xlu0 %2203
      %v2205 = vsel %vm626, %v2117, 0.0
      %2206 = vadd.xlane.f32.xlu0 %v2205
      %v2207 = vpop.xlane.xlu0 %2206
      %v2208 = vsel %vm626, %v2118, 0.0
      %2209 = vadd.xlane.f32.xlu0 %v2208
      %v2210 = vpop.xlane.xlu0 %2209
      %v2211 = vsel %vm626, %v2119, 0.0
      %2212 = vadd.xlane.f32.xlu0 %v2211
      %v2213 = vpop.xlane.xlu0 %2212
      %v2214 = vsel %vm626, %v2120, 0.0
      %2215 = vadd.xlane.f32.xlu0 %v2214
      %v2216 = vpop.xlane.xlu0 %2215
      %v2217 = vsel %vm626, %v1593, 0.0
      %2218 = vadd.xlane.f32.xlu0 %v2217
      %v2219 = vpop.xlane.xlu0 %2218
      %v2220 = vsel %vm626, %v1594, 0.0
      %2221 = vadd.xlane.f32.xlu0 %v2220
      %v2222 = vpop.xlane.xlu0 %2221
      %v2223 = vsel %vm626, %v1625, 0.0
      %2224 = vadd.xlane.f32.xlu0 %v2223
      %v2225 = vpop.xlane.xlu0 %2224
      %v2226 = vsel %vm626, %v1626, 0.0
      %2227 = vadd.xlane.f32.xlu0 %v2226
      %v2228 = vpop.xlane.xlu0 %2227
      %v2229 = vsel %vm626, %v1657, 0.0
      %2230 = vadd.xlane.f32.xlu0 %v2229
      %v2231 = vpop.xlane.xlu0 %2230
      %v2232 = vsel %vm626, %v1658, 0.0
      %2233 = vadd.xlane.f32.xlu0 %v2232
      %v2234 = vpop.xlane.xlu0 %2233
      %v2235 = vsel %vm626, %v1689, 0.0
      %2236 = vadd.xlane.f32.xlu0 %v2235
      %v2237 = vpop.xlane.xlu0 %2236
      %v2238 = vsel %vm626, %v1690, 0.0
      %2239 = vadd.xlane.f32.xlu0 %v2238
      %v2240 = vpop.xlane.xlu0 %2239
      %v2241 = vsel %vm626, %v1721, 0.0
      %2242 = vadd.xlane.f32.xlu0 %v2241
      %v2243 = vpop.xlane.xlu0 %2242
      %v2244 = vsel %vm626, %v1722, 0.0
      %2245 = vadd.xlane.f32.xlu0 %v2244
      %v2246 = vpop.xlane.xlu0 %2245
      %v2247 = vsel %vm626, %v1753, 0.0
      %2248 = vadd.xlane.f32.xlu0 %v2247
      %v2249 = vpop.xlane.xlu0 %2248
      %v2250 = vsel %vm626, %v1754, 0.0
      %2251 = vadd.xlane.f32.xlu0 %v2250
      %v2252 = vpop.xlane.xlu0 %2251
      %v2253 = vsel %vm626, %v1785, 0.0
      %2254 = vadd.xlane.f32.xlu0 %v2253
      %v2255 = vpop.xlane.xlu0 %2254
      %v2256 = vsel %vm626, %v1786, 0.0
      %2257 = vadd.xlane.f32.xlu0 %v2256
      %v2258 = vpop.xlane.xlu0 %2257
      %v2259 = vsel %vm626, %v1817, 0.0
      %2260 = vadd.xlane.f32.xlu0 %v2259
      %v2261 = vpop.xlane.xlu0 %2260
      %v2262 = vsel %vm626, %v1818, 0.0
      %2263 = vadd.xlane.f32.xlu0 %v2262
      %v2264 = vpop.xlane.xlu0 %2263
      %v2265 = vsel %vm626, %v1849, 0.0
      %2266 = vadd.xlane.f32.xlu0 %v2265
      %v2267 = vpop.xlane.xlu0 %2266
      %v2268 = vsel %vm626, %v1850, 0.0
      %2269 = vadd.xlane.f32.xlu0 %v2268
      %v2270 = vpop.xlane.xlu0 %2269
      %v2271 = vsel %vm626, %v1881, 0.0
      %2272 = vadd.xlane.f32.xlu0 %v2271
      %v2273 = vpop.xlane.xlu0 %2272
      %v2274 = vsel %vm626, %v1882, 0.0
      %2275 = vadd.xlane.f32.xlu0 %v2274
      %v2276 = vpop.xlane.xlu0 %2275
      %v2277 = vsel %vm626, %v1913, 0.0
      %2278 = vadd.xlane.f32.xlu0 %v2277
      %v2279 = vpop.xlane.xlu0 %2278
      %v2280 = vsel %vm626, %v1914, 0.0
      %2281 = vadd.xlane.f32.xlu0 %v2280
      %v2282 = vpop.xlane.xlu0 %2281
      %v2283 = vsel %vm626, %v1945, 0.0
      %2284 = vadd.xlane.f32.xlu0 %v2283
      %v2285 = vpop.xlane.xlu0 %2284
      %v2286 = vsel %vm626, %v1946, 0.0
      %2287 = vadd.xlane.f32.xlu0 %v2286
      %v2288 = vpop.xlane.xlu0 %2287
      %v2289 = vsel %vm626, %v1977, 0.0
      %2290 = vadd.xlane.f32.xlu0 %v2289
      %v2291 = vpop.xlane.xlu0 %2290
      %v2292 = vsel %vm626, %v1978, 0.0
      %2293 = vadd.xlane.f32.xlu0 %v2292
      %v2294 = vpop.xlane.xlu0 %2293
      %v2295 = vsel %vm626, %v2009, 0.0
      %2296 = vadd.xlane.f32.xlu0 %v2295
      %v2297 = vpop.xlane.xlu0 %2296
      %v2298 = vsel %vm626, %v2010, 0.0
      %2299 = vadd.xlane.f32.xlu0 %v2298
      %v2300 = vpop.xlane.xlu0 %2299
      %v2301 = vsel %vm626, %v2041, 0.0
      %2302 = vadd.xlane.f32.xlu0 %v2301
      %v2303 = vpop.xlane.xlu0 %2302
      %v2304 = vsel %vm626, %v2042, 0.0
      %2305 = vadd.xlane.f32.xlu0 %v2304
      %v2306 = vpop.xlane.xlu0 %2305
      %v2307 = vsel %vm626, %v2073, 0.0
      %2308 = vadd.xlane.f32.xlu0 %v2307
      %v2309 = vpop.xlane.xlu0 %2308
      %v2310 = vsel %vm626, %v2074, 0.0
      %2311 = vadd.xlane.f32.xlu0 %v2310
      %v2312 = vpop.xlane.xlu0 %2311
      %v2313 = vadd.f32 %v2123, %v2219
      %v2314 = vadd.f32 %v2126, %v2222
      %v2315 = vadd.f32 %v2129, %v2225
      %v2316 = vadd.f32 %v2132, %v2228
      %v2317 = vadd.f32 %v2135, %v2231
      %v2318 = vadd.f32 %v2138, %v2234
      %v2319 = vadd.f32 %v2141, %v2237
      %v2320 = vadd.f32 %v2144, %v2240
      %v2321 = vadd.f32 %v2147, %v2243
      %v2322 = vadd.f32 %v2150, %v2246
      %v2323 = vadd.f32 %v2153, %v2249
      %v2324 = vadd.f32 %v2156, %v2252
      %v2325 = vadd.f32 %v2159, %v2255
      %v2326 = vadd.f32 %v2162, %v2258
      %v2327 = vadd.f32 %v2165, %v2261
      %v2328 = vadd.f32 %v2168, %v2264
      %v2329 = vadd.f32 %v2171, %v2267
      %v2330 = vadd.f32 %v2174, %v2270
      %v2331 = vadd.f32 %v2177, %v2273
      %v2332 = vadd.f32 %v2180, %v2276
      %v2333 = vadd.f32 %v2183, %v2279
      %v2334 = vadd.f32 %v2186, %v2282
      %v2335 = vadd.f32 %v2189, %v2285
      %v2336 = vadd.f32 %v2192, %v2288
      %v2337 = vadd.f32 %v2195, %v2291
      %v2338 = vadd.f32 %v2198, %v2294
      %v2339 = vadd.f32 %v2201, %v2297
      %v2340 = vadd.f32 %v2204, %v2300
      %v2341 = vadd.f32 %v2207, %v2303
      %v2342 = vadd.f32 %v2210, %v2306
      %v2343 = vadd.f32 %v2213, %v2309
      %v2344 = vadd.f32 %v2216, %v2312
      %v2345 = vrcp.pop 8.0
      %v2346 = vmul.f32 8.0, %v2345
      %v2347 = vsub.f32 1.0, %v2346
      %v2348 = vmul.f32 %v2345, %v2347
      %v2349 = vadd.f32 %v2345, %v2348
      %vm2350 = vweird.f32 %v2345
      %v2351 = vsel %vm2350, %v2345, %v2349
      %v2352 = vmul.f32 %v2313, %v2351
      %v2353 = vmul.f32 %v2314, %v2351
      %v2354 = vmul.f32 %v2315, %v2351
      %v2355 = vmul.f32 %v2316, %v2351
      %v2356 = vmul.f32 %v2317, %v2351
      %v2357 = vmul.f32 %v2318, %v2351
      %v2358 = vmul.f32 %v2319, %v2351
      %v2359 = vmul.f32 %v2320, %v2351
      %v2360 = vmul.f32 %v2321, %v2351
      %v2361 = vmul.f32 %v2322, %v2351
      %v2362 = vmul.f32 %v2323, %v2351
      %v2363 = vmul.f32 %v2324, %v2351
      %v2364 = vmul.f32 %v2325, %v2351
      %v2365 = vmul.f32 %v2326, %v2351
      %v2366 = vmul.f32 %v2327, %v2351
      %v2367 = vmul.f32 %v2328, %v2351
      %v2368 = vmul.f32 %v2329, %v2351
      %v2369 = vmul.f32 %v2330, %v2351
      %v2370 = vmul.f32 %v2331, %v2351
      %v2371 = vmul.f32 %v2332, %v2351
      %v2372 = vmul.f32 %v2333, %v2351
      %v2373 = vmul.f32 %v2334, %v2351
      %v2374 = vmul.f32 %v2335, %v2351
      %v2375 = vmul.f32 %v2336, %v2351
      %v2376 = vmul.f32 %v2337, %v2351
      %v2377 = vmul.f32 %v2338, %v2351
      %v2378 = vmul.f32 %v2339, %v2351
      %v2379 = vmul.f32 %v2340, %v2351
      %v2380 = vmul.f32 %v2341, %v2351
      %v2381 = vmul.f32 %v2342, %v2351
      %v2382 = vmul.f32 %v2343, %v2351
      %v2383 = vmul.f32 %v2344, %v2351
      %v2384 = vsub.f32 %v2089, %v2352
      %v2385 = vsub.f32 %v2090, %v2353
      %v2386 = vsub.f32 %v2091, %v2354
      %v2387 = vsub.f32 %v2092, %v2355
      %v2388 = vsub.f32 %v2093, %v2356
      %v2389 = vsub.f32 %v2094, %v2357
      %v2390 = vsub.f32 %v2095, %v2358
      %v2391 = vsub.f32 %v2096, %v2359
      %v2392 = vsub.f32 %v2097, %v2360
      %v2393 = vsub.f32 %v2098, %v2361
      %v2394 = vsub.f32 %v2099, %v2362
      %v2395 = vsub.f32 %v2100, %v2363
      %v2396 = vsub.f32 %v2101, %v2364
      %v2397 = vsub.f32 %v2102, %v2365
      %v2398 = vsub.f32 %v2103, %v2366
      %v2399 = vsub.f32 %v2104, %v2367
      %v2400 = vsub.f32 %v2105, %v2368
      %v2401 = vsub.f32 %v2106, %v2369
      %v2402 = vsub.f32 %v2107, %v2370
      %v2403 = vsub.f32 %v2108, %v2371
      %v2404 = vsub.f32 %v2109, %v2372
      %v2405 = vsub.f32 %v2110, %v2373
      %v2406 = vsub.f32 %v2111, %v2374
      %v2407 = vsub.f32 %v2112, %v2375
      %v2408 = vsub.f32 %v2113, %v2376
      %v2409 = vsub.f32 %v2114, %v2377
      %v2410 = vsub.f32 %v2115, %v2378
      %v2411 = vsub.f32 %v2116, %v2379
      %v2412 = vsub.f32 %v2117, %v2380
      %v2413 = vsub.f32 %v2118, %v2381
      %v2414 = vsub.f32 %v2119, %v2382
      %v2415 = vsub.f32 %v2120, %v2383
      %v2416 = vsub.f32 %v1593, %v2352
      %v2417 = vsub.f32 %v1594, %v2353
      %v2418 = vsub.f32 %v1625, %v2354
      %v2419 = vsub.f32 %v1626, %v2355
      %v2420 = vsub.f32 %v1657, %v2356
      %v2421 = vsub.f32 %v1658, %v2357
      %v2422 = vsub.f32 %v1689, %v2358
      %v2423 = vsub.f32 %v1690, %v2359
      %v2424 = vsub.f32 %v1721, %v2360
      %v2425 = vsub.f32 %v1722, %v2361
      %v2426 = vsub.f32 %v1753, %v2362
      %v2427 = vsub.f32 %v1754, %v2363
      %v2428 = vsub.f32 %v1785, %v2364
      %v2429 = vsub.f32 %v1786, %v2365
      %v2430 = vsub.f32 %v1817, %v2366
      %v2431 = vsub.f32 %v1818, %v2367
      %v2432 = vsub.f32 %v1849, %v2368
      %v2433 = vsub.f32 %v1850, %v2369
      %v2434 = vsub.f32 %v1881, %v2370
      %v2435 = vsub.f32 %v1882, %v2371
      %v2436 = vsub.f32 %v1913, %v2372
      %v2437 = vsub.f32 %v1914, %v2373
      %v2438 = vsub.f32 %v1945, %v2374
      %v2439 = vsub.f32 %v1946, %v2375
      %v2440 = vsub.f32 %v1977, %v2376
      %v2441 = vsub.f32 %v1978, %v2377
      %v2442 = vsub.f32 %v2009, %v2378
      %v2443 = vsub.f32 %v2010, %v2379
      %v2444 = vsub.f32 %v2041, %v2380
      %v2445 = vsub.f32 %v2042, %v2381
      %v2446 = vsub.f32 %v2073, %v2382
      %v2447 = vsub.f32 %v2074, %v2383
      %v2448 = vmul.f32 %v2384, %v2384
      %v2449 = vmul.f32 %v2385, %v2385
      %v2450 = vmul.f32 %v2386, %v2386
      %v2451 = vmul.f32 %v2387, %v2387
      %v2452 = vmul.f32 %v2388, %v2388
      %v2453 = vmul.f32 %v2389, %v2389
      %v2454 = vmul.f32 %v2390, %v2390
      %v2455 = vmul.f32 %v2391, %v2391
      %v2456 = vmul.f32 %v2392, %v2392
      %v2457 = vmul.f32 %v2393, %v2393
      %v2458 = vmul.f32 %v2394, %v2394
      %v2459 = vmul.f32 %v2395, %v2395
      %v2460 = vmul.f32 %v2396, %v2396
      %v2461 = vmul.f32 %v2397, %v2397
      %v2462 = vmul.f32 %v2398, %v2398
      %v2463 = vmul.f32 %v2399, %v2399
      %v2464 = vmul.f32 %v2400, %v2400
      %v2465 = vmul.f32 %v2401, %v2401
      %v2466 = vmul.f32 %v2402, %v2402
      %v2467 = vmul.f32 %v2403, %v2403
      %v2468 = vmul.f32 %v2404, %v2404
      %v2469 = vmul.f32 %v2405, %v2405
      %v2470 = vmul.f32 %v2406, %v2406
      %v2471 = vmul.f32 %v2407, %v2407
      %v2472 = vmul.f32 %v2408, %v2408
      %v2473 = vmul.f32 %v2409, %v2409
      %v2474 = vmul.f32 %v2410, %v2410
      %v2475 = vmul.f32 %v2411, %v2411
      %v2476 = vmul.f32 %v2412, %v2412
      %v2477 = vmul.f32 %v2413, %v2413
      %v2478 = vmul.f32 %v2414, %v2414
      %v2479 = vmul.f32 %v2415, %v2415
      %v2480 = vsel %vm626, %v2448, 0.0
      %2481 = vadd.xlane.f32.xlu0 %v2480
      %v2482 = vpop.xlane.xlu0 %2481
      %v2483 = vsel %vm626, %v2449, 0.0
      %2484 = vadd.xlane.f32.xlu0 %v2483
      %v2485 = vpop.xlane.xlu0 %2484
      %v2486 = vsel %vm626, %v2450, 0.0
      %2487 = vadd.xlane.f32.xlu0 %v2486
      %v2488 = vpop.xlane.xlu0 %2487
      %v2489 = vsel %vm626, %v2451, 0.0
      %2490 = vadd.xlane.f32.xlu0 %v2489
      %v2491 = vpop.xlane.xlu0 %2490
      %v2492 = vsel %vm626, %v2452, 0.0
      %2493 = vadd.xlane.f32.xlu0 %v2492
      %v2494 = vpop.xlane.xlu0 %2493
      %v2495 = vsel %vm626, %v2453, 0.0
      %2496 = vadd.xlane.f32.xlu0 %v2495
      %v2497 = vpop.xlane.xlu0 %2496
      %v2498 = vsel %vm626, %v2454, 0.0
      %2499 = vadd.xlane.f32.xlu0 %v2498
      %v2500 = vpop.xlane.xlu0 %2499
      %v2501 = vsel %vm626, %v2455, 0.0
      %2502 = vadd.xlane.f32.xlu0 %v2501
      %v2503 = vpop.xlane.xlu0 %2502
      %v2504 = vsel %vm626, %v2456, 0.0
      %2505 = vadd.xlane.f32.xlu0 %v2504
      %v2506 = vpop.xlane.xlu0 %2505
      %v2507 = vsel %vm626, %v2457, 0.0
      %2508 = vadd.xlane.f32.xlu0 %v2507
      %v2509 = vpop.xlane.xlu0 %2508
      %v2510 = vsel %vm626, %v2458, 0.0
      %2511 = vadd.xlane.f32.xlu0 %v2510
      %v2512 = vpop.xlane.xlu0 %2511
      %v2513 = vsel %vm626, %v2459, 0.0
      %2514 = vadd.xlane.f32.xlu0 %v2513
      %v2515 = vpop.xlane.xlu0 %2514
      %v2516 = vsel %vm626, %v2460, 0.0
      %2517 = vadd.xlane.f32.xlu0 %v2516
      %v2518 = vpop.xlane.xlu0 %2517
      %v2519 = vsel %vm626, %v2461, 0.0
      %2520 = vadd.xlane.f32.xlu0 %v2519
      %v2521 = vpop.xlane.xlu0 %2520
      %v2522 = vsel %vm626, %v2462, 0.0
      %2523 = vadd.xlane.f32.xlu0 %v2522
      %v2524 = vpop.xlane.xlu0 %2523
      %v2525 = vsel %vm626, %v2463, 0.0
      %2526 = vadd.xlane.f32.xlu0 %v2525
      %v2527 = vpop.xlane.xlu0 %2526
      %v2528 = vsel %vm626, %v2464, 0.0
      %2529 = vadd.xlane.f32.xlu0 %v2528
      %v2530 = vpop.xlane.xlu0 %2529
      %v2531 = vsel %vm626, %v2465, 0.0
      %2532 = vadd.xlane.f32.xlu0 %v2531
      %v2533 = vpop.xlane.xlu0 %2532
      %v2534 = vsel %vm626, %v2466, 0.0
      %2535 = vadd.xlane.f32.xlu0 %v2534
      %v2536 = vpop.xlane.xlu0 %2535
      %v2537 = vsel %vm626, %v2467, 0.0
      %2538 = vadd.xlane.f32.xlu0 %v2537
      %v2539 = vpop.xlane.xlu0 %2538
      %v2540 = vsel %vm626, %v2468, 0.0
      %2541 = vadd.xlane.f32.xlu0 %v2540
      %v2542 = vpop.xlane.xlu0 %2541
      %v2543 = vsel %vm626, %v2469, 0.0
      %2544 = vadd.xlane.f32.xlu0 %v2543
      %v2545 = vpop.xlane.xlu0 %2544
      %v2546 = vsel %vm626, %v2470, 0.0
      %2547 = vadd.xlane.f32.xlu0 %v2546
      %v2548 = vpop.xlane.xlu0 %2547
      %v2549 = vsel %vm626, %v2471, 0.0
      %2550 = vadd.xlane.f32.xlu0 %v2549
      %v2551 = vpop.xlane.xlu0 %2550
      %v2552 = vsel %vm626, %v2472, 0.0
      %2553 = vadd.xlane.f32.xlu0 %v2552
      %v2554 = vpop.xlane.xlu0 %2553
      %v2555 = vsel %vm626, %v2473, 0.0
      %2556 = vadd.xlane.f32.xlu0 %v2555
      %v2557 = vpop.xlane.xlu0 %2556
      %v2558 = vsel %vm626, %v2474, 0.0
      %2559 = vadd.xlane.f32.xlu0 %v2558
      %v2560 = vpop.xlane.xlu0 %2559
      %v2561 = vsel %vm626, %v2475, 0.0
      %2562 = vadd.xlane.f32.xlu0 %v2561
      %v2563 = vpop.xlane.xlu0 %2562
      %v2564 = vsel %vm626, %v2476, 0.0
      %2565 = vadd.xlane.f32.xlu0 %v2564
      %v2566 = vpop.xlane.xlu0 %2565
      %v2567 = vsel %vm626, %v2477, 0.0
      %2568 = vadd.xlane.f32.xlu0 %v2567
      %v2569 = vpop.xlane.xlu0 %2568
      %v2570 = vsel %vm626, %v2478, 0.0
      %2571 = vadd.xlane.f32.xlu0 %v2570
      %v2572 = vpop.xlane.xlu0 %2571
      %v2573 = vsel %vm626, %v2479, 0.0
      %2574 = vadd.xlane.f32.xlu0 %v2573
      %v2575 = vpop.xlane.xlu0 %2574
      %v2576 = vmul.f32 %v2416, %v2416
      %v2577 = vmul.f32 %v2417, %v2417
      %v2578 = vmul.f32 %v2418, %v2418
      %v2579 = vmul.f32 %v2419, %v2419
      %v2580 = vmul.f32 %v2420, %v2420
      %v2581 = vmul.f32 %v2421, %v2421
      %v2582 = vmul.f32 %v2422, %v2422
      %v2583 = vmul.f32 %v2423, %v2423
      %v2584 = vmul.f32 %v2424, %v2424
      %v2585 = vmul.f32 %v2425, %v2425
      %v2586 = vmul.f32 %v2426, %v2426
      %v2587 = vmul.f32 %v2427, %v2427
      %v2588 = vmul.f32 %v2428, %v2428
      %v2589 = vmul.f32 %v2429, %v2429
      %v2590 = vmul.f32 %v2430, %v2430
      %v2591 = vmul.f32 %v2431, %v2431
      %v2592 = vmul.f32 %v2432, %v2432
      %v2593 = vmul.f32 %v2433, %v2433
      %v2594 = vmul.f32 %v2434, %v2434
      %v2595 = vmul.f32 %v2435, %v2435
      %v2596 = vmul.f32 %v2436, %v2436
      %v2597 = vmul.f32 %v2437, %v2437
      %v2598 = vmul.f32 %v2438, %v2438
      %v2599 = vmul.f32 %v2439, %v2439
      %v2600 = vmul.f32 %v2440, %v2440
      %v2601 = vmul.f32 %v2441, %v2441
      %v2602 = vmul.f32 %v2442, %v2442
      %v2603 = vmul.f32 %v2443, %v2443
      %v2604 = vmul.f32 %v2444, %v2444
      %v2605 = vmul.f32 %v2445, %v2445
      %v2606 = vmul.f32 %v2446, %v2446
      %v2607 = vmul.f32 %v2447, %v2447
      %v2608 = vsel %vm626, %v2576, 0.0
      %2609 = vadd.xlane.f32.xlu0 %v2608
      %v2610 = vpop.xlane.xlu0 %2609
      %v2611 = vsel %vm626, %v2577, 0.0
      %2612 = vadd.xlane.f32.xlu0 %v2611
      %v2613 = vpop.xlane.xlu0 %2612
      %v2614 = vsel %vm626, %v2578, 0.0
      %2615 = vadd.xlane.f32.xlu0 %v2614
      %v2616 = vpop.xlane.xlu0 %2615
      %v2617 = vsel %vm626, %v2579, 0.0
      %2618 = vadd.xlane.f32.xlu0 %v2617
      %v2619 = vpop.xlane.xlu0 %2618
      %v2620 = vsel %vm626, %v2580, 0.0
      %2621 = vadd.xlane.f32.xlu0 %v2620
      %v2622 = vpop.xlane.xlu0 %2621
      %v2623 = vsel %vm626, %v2581, 0.0
      %2624 = vadd.xlane.f32.xlu0 %v2623
      %v2625 = vpop.xlane.xlu0 %2624
      %v2626 = vsel %vm626, %v2582, 0.0
      %2627 = vadd.xlane.f32.xlu0 %v2626
      %v2628 = vpop.xlane.xlu0 %2627
      %v2629 = vsel %vm626, %v2583, 0.0
      %2630 = vadd.xlane.f32.xlu0 %v2629
      %v2631 = vpop.xlane.xlu0 %2630
      %v2632 = vsel %vm626, %v2584, 0.0
      %2633 = vadd.xlane.f32.xlu0 %v2632
      %v2634 = vpop.xlane.xlu0 %2633
      %v2635 = vsel %vm626, %v2585, 0.0
      %2636 = vadd.xlane.f32.xlu0 %v2635
      %v2637 = vpop.xlane.xlu0 %2636
      %v2638 = vsel %vm626, %v2586, 0.0
      %2639 = vadd.xlane.f32.xlu0 %v2638
      %v2640 = vpop.xlane.xlu0 %2639
      %v2641 = vsel %vm626, %v2587, 0.0
      %2642 = vadd.xlane.f32.xlu0 %v2641
      %v2643 = vpop.xlane.xlu0 %2642
      %v2644 = vsel %vm626, %v2588, 0.0
      %2645 = vadd.xlane.f32.xlu0 %v2644
      %v2646 = vpop.xlane.xlu0 %2645
      %v2647 = vsel %vm626, %v2589, 0.0
      %2648 = vadd.xlane.f32.xlu0 %v2647
      %v2649 = vpop.xlane.xlu0 %2648
      %v2650 = vsel %vm626, %v2590, 0.0
      %2651 = vadd.xlane.f32.xlu0 %v2650
      %v2652 = vpop.xlane.xlu0 %2651
      %v2653 = vsel %vm626, %v2591, 0.0
      %2654 = vadd.xlane.f32.xlu0 %v2653
      %v2655 = vpop.xlane.xlu0 %2654
      %v2656 = vsel %vm626, %v2592, 0.0
      %2657 = vadd.xlane.f32.xlu0 %v2656
      %v2658 = vpop.xlane.xlu0 %2657
      %v2659 = vsel %vm626, %v2593, 0.0
      %2660 = vadd.xlane.f32.xlu0 %v2659
      %v2661 = vpop.xlane.xlu0 %2660
      %v2662 = vsel %vm626, %v2594, 0.0
      %2663 = vadd.xlane.f32.xlu0 %v2662
      %v2664 = vpop.xlane.xlu0 %2663
      %v2665 = vsel %vm626, %v2595, 0.0
      %2666 = vadd.xlane.f32.xlu0 %v2665
      %v2667 = vpop.xlane.xlu0 %2666
      %v2668 = vsel %vm626, %v2596, 0.0
      %2669 = vadd.xlane.f32.xlu0 %v2668
      %v2670 = vpop.xlane.xlu0 %2669
      %v2671 = vsel %vm626, %v2597, 0.0
      %2672 = vadd.xlane.f32.xlu0 %v2671
      %v2673 = vpop.xlane.xlu0 %2672
      %v2674 = vsel %vm626, %v2598, 0.0
      %2675 = vadd.xlane.f32.xlu0 %v2674
      %v2676 = vpop.xlane.xlu0 %2675
      %v2677 = vsel %vm626, %v2599, 0.0
      %2678 = vadd.xlane.f32.xlu0 %v2677
      %v2679 = vpop.xlane.xlu0 %2678
      %v2680 = vsel %vm626, %v2600, 0.0
      %2681 = vadd.xlane.f32.xlu0 %v2680
      %v2682 = vpop.xlane.xlu0 %2681
      %v2683 = vsel %vm626, %v2601, 0.0
      %2684 = vadd.xlane.f32.xlu0 %v2683
      %v2685 = vpop.xlane.xlu0 %2684
      %v2686 = vsel %vm626, %v2602, 0.0
      %2687 = vadd.xlane.f32.xlu0 %v2686
      %v2688 = vpop.xlane.xlu0 %2687
      %v2689 = vsel %vm626, %v2603, 0.0
      %2690 = vadd.xlane.f32.xlu0 %v2689
      %v2691 = vpop.xlane.xlu0 %2690
      %v2692 = vsel %vm626, %v2604, 0.0
      %2693 = vadd.xlane.f32.xlu0 %v2692
      %v2694 = vpop.xlane.xlu0 %2693
      %v2695 = vsel %vm626, %v2605, 0.0
      %2696 = vadd.xlane.f32.xlu0 %v2695
      %v2697 = vpop.xlane.xlu0 %2696
      %v2698 = vsel %vm626, %v2606, 0.0
      %2699 = vadd.xlane.f32.xlu0 %v2698
      %v2700 = vpop.xlane.xlu0 %2699
      %v2701 = vsel %vm626, %v2607, 0.0
      %2702 = vadd.xlane.f32.xlu0 %v2701
      %v2703 = vpop.xlane.xlu0 %2702
      %v2704 = vadd.f32 %v2482, %v2610
      %v2705 = vadd.f32 %v2485, %v2613
      %v2706 = vadd.f32 %v2488, %v2616
      %v2707 = vadd.f32 %v2491, %v2619
      %v2708 = vadd.f32 %v2494, %v2622
      %v2709 = vadd.f32 %v2497, %v2625
      %v2710 = vadd.f32 %v2500, %v2628
      %v2711 = vadd.f32 %v2503, %v2631
      %v2712 = vadd.f32 %v2506, %v2634
      %v2713 = vadd.f32 %v2509, %v2637
      %v2714 = vadd.f32 %v2512, %v2640
      %v2715 = vadd.f32 %v2515, %v2643
      %v2716 = vadd.f32 %v2518, %v2646
      %v2717 = vadd.f32 %v2521, %v2649
      %v2718 = vadd.f32 %v2524, %v2652
      %v2719 = vadd.f32 %v2527, %v2655
      %v2720 = vadd.f32 %v2530, %v2658
      %v2721 = vadd.f32 %v2533, %v2661
      %v2722 = vadd.f32 %v2536, %v2664
      %v2723 = vadd.f32 %v2539, %v2667
      %v2724 = vadd.f32 %v2542, %v2670
      %v2725 = vadd.f32 %v2545, %v2673
      %v2726 = vadd.f32 %v2548, %v2676
      %v2727 = vadd.f32 %v2551, %v2679
      %v2728 = vadd.f32 %v2554, %v2682
      %v2729 = vadd.f32 %v2557, %v2685
      %v2730 = vadd.f32 %v2560, %v2688
      %v2731 = vadd.f32 %v2563, %v2691
      %v2732 = vadd.f32 %v2566, %v2694
      %v2733 = vadd.f32 %v2569, %v2697
      %v2734 = vadd.f32 %v2572, %v2700
      %v2735 = vadd.f32 %v2575, %v2703
      %v2736 = vmul.f32 %v2704, %v2351
      %v2737 = vmul.f32 %v2705, %v2351
      %v2738 = vmul.f32 %v2706, %v2351
      %v2739 = vmul.f32 %v2707, %v2351
      %v2740 = vmul.f32 %v2708, %v2351
      %v2741 = vmul.f32 %v2709, %v2351
      %v2742 = vmul.f32 %v2710, %v2351
      %v2743 = vmul.f32 %v2711, %v2351
      %v2744 = vmul.f32 %v2712, %v2351
      %v2745 = vmul.f32 %v2713, %v2351
      %v2746 = vmul.f32 %v2714, %v2351
      %v2747 = vmul.f32 %v2715, %v2351
      %v2748 = vmul.f32 %v2716, %v2351
      %v2749 = vmul.f32 %v2717, %v2351
      %v2750 = vmul.f32 %v2718, %v2351
      %v2751 = vmul.f32 %v2719, %v2351
      %v2752 = vmul.f32 %v2720, %v2351
      %v2753 = vmul.f32 %v2721, %v2351
      %v2754 = vmul.f32 %v2722, %v2351
      %v2755 = vmul.f32 %v2723, %v2351
      %v2756 = vmul.f32 %v2724, %v2351
      %v2757 = vmul.f32 %v2725, %v2351
      %v2758 = vmul.f32 %v2726, %v2351
      %v2759 = vmul.f32 %v2727, %v2351
      %v2760 = vmul.f32 %v2728, %v2351
      %v2761 = vmul.f32 %v2729, %v2351
      %v2762 = vmul.f32 %v2730, %v2351
      %v2763 = vmul.f32 %v2731, %v2351
      %v2764 = vmul.f32 %v2732, %v2351
      %v2765 = vmul.f32 %v2733, %v2351
      %v2766 = vmul.f32 %v2734, %v2351
      %v2767 = vmul.f32 %v2735, %v2351
      %v2768 = vadd.f32 %v2736, 1e-06
      %v2769 = vadd.f32 %v2737, 1e-06
      %v2770 = vadd.f32 %v2738, 1e-06
      %v2771 = vadd.f32 %v2739, 1e-06
      %v2772 = vadd.f32 %v2740, 1e-06
      %v2773 = vadd.f32 %v2741, 1e-06
      %v2774 = vadd.f32 %v2742, 1e-06
      %v2775 = vadd.f32 %v2743, 1e-06
      %v2776 = vadd.f32 %v2744, 1e-06
      %v2777 = vadd.f32 %v2745, 1e-06
      %v2778 = vadd.f32 %v2746, 1e-06
      %v2779 = vadd.f32 %v2747, 1e-06
      %v2780 = vadd.f32 %v2748, 1e-06
      %v2781 = vadd.f32 %v2749, 1e-06
      %v2782 = vadd.f32 %v2750, 1e-06
      %v2783 = vadd.f32 %v2751, 1e-06
      %v2784 = vadd.f32 %v2752, 1e-06
      %v2785 = vadd.f32 %v2753, 1e-06
      %v2786 = vadd.f32 %v2754, 1e-06
      %v2787 = vadd.f32 %v2755, 1e-06
      %v2788 = vadd.f32 %v2756, 1e-06
      %v2789 = vadd.f32 %v2757, 1e-06
      %v2790 = vadd.f32 %v2758, 1e-06
      %v2791 = vadd.f32 %v2759, 1e-06
      %v2792 = vadd.f32 %v2760, 1e-06
      %v2793 = vadd.f32 %v2761, 1e-06
      %v2794 = vadd.f32 %v2762, 1e-06
      %v2795 = vadd.f32 %v2763, 1e-06
      %v2796 = vadd.f32 %v2764, 1e-06
      %v2797 = vadd.f32 %v2765, 1e-06
      %v2798 = vadd.f32 %v2766, 1e-06
      %v2799 = vadd.f32 %v2767, 1e-06
      %v2800 = vrsqrt.pop %v2768
      %v2801 = vmul.f32 %v2800, %v2768
      %v2802 = vmul.f32 %v2801, %v2800
      %v2803 = vmul.f32 0.5, %v2802
      %v2804 = vsub.f32 1.5, %v2803
      %v2805 = vmul.f32 %v2800, %v2804
      %vm2806 = vweird.f32 %v2768
      %vm2807 = vweird.f32 %v2800
      %vm2808 = vmor %vm2806, %vm2807
      %v2809 = vsel %vm2808, %v2800, %v2805
      %v2810 = vrsqrt.pop %v2769
      %v2811 = vmul.f32 %v2810, %v2769
      %v2812 = vmul.f32 %v2811, %v2810
      %v2813 = vmul.f32 0.5, %v2812
      %v2814 = vsub.f32 1.5, %v2813
      %v2815 = vmul.f32 %v2810, %v2814
      %vm2816 = vweird.f32 %v2769
      %vm2817 = vweird.f32 %v2810
      %vm2818 = vmor %vm2816, %vm2817
      %v2819 = vsel %vm2818, %v2810, %v2815
      %v2820 = vrsqrt.pop %v2770
      %v2821 = vmul.f32 %v2820, %v2770
      %v2822 = vmul.f32 %v2821, %v2820
      %v2823 = vmul.f32 0.5, %v2822
      %v2824 = vsub.f32 1.5, %v2823
      %v2825 = vmul.f32 %v2820, %v2824
      %vm2826 = vweird.f32 %v2770
      %vm2827 = vweird.f32 %v2820
      %vm2828 = vmor %vm2826, %vm2827
      %v2829 = vsel %vm2828, %v2820, %v2825
      %v2830 = vrsqrt.pop %v2771
      %v2831 = vmul.f32 %v2830, %v2771
      %v2832 = vmul.f32 %v2831, %v2830
      %v2833 = vmul.f32 0.5, %v2832
      %v2834 = vsub.f32 1.5, %v2833
      %v2835 = vmul.f32 %v2830, %v2834
      %vm2836 = vweird.f32 %v2771
      %vm2837 = vweird.f32 %v2830
      %vm2838 = vmor %vm2836, %vm2837
      %v2839 = vsel %vm2838, %v2830, %v2835
      %v2840 = vrsqrt.pop %v2772
      %v2841 = vmul.f32 %v2840, %v2772
      %v2842 = vmul.f32 %v2841, %v2840
      %v2843 = vmul.f32 0.5, %v2842
      %v2844 = vsub.f32 1.5, %v2843
      %v2845 = vmul.f32 %v2840, %v2844
      %vm2846 = vweird.f32 %v2772
      %vm2847 = vweird.f32 %v2840
      %vm2848 = vmor %vm2846, %vm2847
      %v2849 = vsel %vm2848, %v2840, %v2845
      %v2850 = vrsqrt.pop %v2773
      %v2851 = vmul.f32 %v2850, %v2773
      %v2852 = vmul.f32 %v2851, %v2850
      %v2853 = vmul.f32 0.5, %v2852
      %v2854 = vsub.f32 1.5, %v2853
      %v2855 = vmul.f32 %v2850, %v2854
      %vm2856 = vweird.f32 %v2773
      %vm2857 = vweird.f32 %v2850
      %vm2858 = vmor %vm2856, %vm2857
      %v2859 = vsel %vm2858, %v2850, %v2855
      %v2860 = vrsqrt.pop %v2774
      %v2861 = vmul.f32 %v2860, %v2774
      %v2862 = vmul.f32 %v2861, %v2860
      %v2863 = vmul.f32 0.5, %v2862
      %v2864 = vsub.f32 1.5, %v2863
      %v2865 = vmul.f32 %v2860, %v2864
      %vm2866 = vweird.f32 %v2774
      %vm2867 = vweird.f32 %v2860
      %vm2868 = vmor %vm2866, %vm2867
      %v2869 = vsel %vm2868, %v2860, %v2865
      %v2870 = vrsqrt.pop %v2775
      %v2871 = vmul.f32 %v2870, %v2775
      %v2872 = vmul.f32 %v2871, %v2870
      %v2873 = vmul.f32 0.5, %v2872
      %v2874 = vsub.f32 1.5, %v2873
      %v2875 = vmul.f32 %v2870, %v2874
      %vm2876 = vweird.f32 %v2775
      %vm2877 = vweird.f32 %v2870
      %vm2878 = vmor %vm2876, %vm2877
      %v2879 = vsel %vm2878, %v2870, %v2875
      %v2880 = vrsqrt.pop %v2776
      %v2881 = vmul.f32 %v2880, %v2776
      %v2882 = vmul.f32 %v2881, %v2880
      %v2883 = vmul.f32 0.5, %v2882
      %v2884 = vsub.f32 1.5, %v2883
      %v2885 = vmul.f32 %v2880, %v2884
      %vm2886 = vweird.f32 %v2776
      %vm2887 = vweird.f32 %v2880
      %vm2888 = vmor %vm2886, %vm2887
      %v2889 = vsel %vm2888, %v2880, %v2885
      %v2890 = vrsqrt.pop %v2777
      %v2891 = vmul.f32 %v2890, %v2777
      %v2892 = vmul.f32 %v2891, %v2890
      %v2893 = vmul.f32 0.5, %v2892
      %v2894 = vsub.f32 1.5, %v2893
      %v2895 = vmul.f32 %v2890, %v2894
      %vm2896 = vweird.f32 %v2777
      %vm2897 = vweird.f32 %v2890
      %vm2898 = vmor %vm2896, %vm2897
      %v2899 = vsel %vm2898, %v2890, %v2895
      %v2900 = vrsqrt.pop %v2778
      %v2901 = vmul.f32 %v2900, %v2778
      %v2902 = vmul.f32 %v2901, %v2900
      %v2903 = vmul.f32 0.5, %v2902
      %v2904 = vsub.f32 1.5, %v2903
      %v2905 = vmul.f32 %v2900, %v2904
      %vm2906 = vweird.f32 %v2778
      %vm2907 = vweird.f32 %v2900
      %vm2908 = vmor %vm2906, %vm2907
      %v2909 = vsel %vm2908, %v2900, %v2905
      %v2910 = vrsqrt.pop %v2779
      %v2911 = vmul.f32 %v2910, %v2779
      %v2912 = vmul.f32 %v2911, %v2910
      %v2913 = vmul.f32 0.5, %v2912
      %v2914 = vsub.f32 1.5, %v2913
      %v2915 = vmul.f32 %v2910, %v2914
      %vm2916 = vweird.f32 %v2779
      %vm2917 = vweird.f32 %v2910
      %vm2918 = vmor %vm2916, %vm2917
      %v2919 = vsel %vm2918, %v2910, %v2915
      %v2920 = vrsqrt.pop %v2780
      %v2921 = vmul.f32 %v2920, %v2780
      %v2922 = vmul.f32 %v2921, %v2920
      %v2923 = vmul.f32 0.5, %v2922
      %v2924 = vsub.f32 1.5, %v2923
      %v2925 = vmul.f32 %v2920, %v2924
      %vm2926 = vweird.f32 %v2780
      %vm2927 = vweird.f32 %v2920
      %vm2928 = vmor %vm2926, %vm2927
      %v2929 = vsel %vm2928, %v2920, %v2925
      %v2930 = vrsqrt.pop %v2781
      %v2931 = vmul.f32 %v2930, %v2781
      %v2932 = vmul.f32 %v2931, %v2930
      %v2933 = vmul.f32 0.5, %v2932
      %v2934 = vsub.f32 1.5, %v2933
      %v2935 = vmul.f32 %v2930, %v2934
      %vm2936 = vweird.f32 %v2781
      %vm2937 = vweird.f32 %v2930
      %vm2938 = vmor %vm2936, %vm2937
      %v2939 = vsel %vm2938, %v2930, %v2935
      %v2940 = vrsqrt.pop %v2782
      %v2941 = vmul.f32 %v2940, %v2782
      %v2942 = vmul.f32 %v2941, %v2940
      %v2943 = vmul.f32 0.5, %v2942
      %v2944 = vsub.f32 1.5, %v2943
      %v2945 = vmul.f32 %v2940, %v2944
      %vm2946 = vweird.f32 %v2782
      %vm2947 = vweird.f32 %v2940
      %vm2948 = vmor %vm2946, %vm2947
      %v2949 = vsel %vm2948, %v2940, %v2945
      %v2950 = vrsqrt.pop %v2783
      %v2951 = vmul.f32 %v2950, %v2783
      %v2952 = vmul.f32 %v2951, %v2950
      %v2953 = vmul.f32 0.5, %v2952
      %v2954 = vsub.f32 1.5, %v2953
      %v2955 = vmul.f32 %v2950, %v2954
      %vm2956 = vweird.f32 %v2783
      %vm2957 = vweird.f32 %v2950
      %vm2958 = vmor %vm2956, %vm2957
      %v2959 = vsel %vm2958, %v2950, %v2955
      %v2960 = vrsqrt.pop %v2784
      %v2961 = vmul.f32 %v2960, %v2784
      %v2962 = vmul.f32 %v2961, %v2960
      %v2963 = vmul.f32 0.5, %v2962
      %v2964 = vsub.f32 1.5, %v2963
      %v2965 = vmul.f32 %v2960, %v2964
      %vm2966 = vweird.f32 %v2784
      %vm2967 = vweird.f32 %v2960
      %vm2968 = vmor %vm2966, %vm2967
      %v2969 = vsel %vm2968, %v2960, %v2965
      %v2970 = vrsqrt.pop %v2785
      %v2971 = vmul.f32 %v2970, %v2785
      %v2972 = vmul.f32 %v2971, %v2970
      %v2973 = vmul.f32 0.5, %v2972
      %v2974 = vsub.f32 1.5, %v2973
      %v2975 = vmul.f32 %v2970, %v2974
      %vm2976 = vweird.f32 %v2785
      %vm2977 = vweird.f32 %v2970
      %vm2978 = vmor %vm2976, %vm2977
      %v2979 = vsel %vm2978, %v2970, %v2975
      %v2980 = vrsqrt.pop %v2786
      %v2981 = vmul.f32 %v2980, %v2786
      %v2982 = vmul.f32 %v2981, %v2980
      %v2983 = vmul.f32 0.5, %v2982
      %v2984 = vsub.f32 1.5, %v2983
      %v2985 = vmul.f32 %v2980, %v2984
      %vm2986 = vweird.f32 %v2786
      %vm2987 = vweird.f32 %v2980
      %vm2988 = vmor %vm2986, %vm2987
      %v2989 = vsel %vm2988, %v2980, %v2985
      %v2990 = vrsqrt.pop %v2787
      %v2991 = vmul.f32 %v2990, %v2787
      %v2992 = vmul.f32 %v2991, %v2990
      %v2993 = vmul.f32 0.5, %v2992
      %v2994 = vsub.f32 1.5, %v2993
      %v2995 = vmul.f32 %v2990, %v2994
      %vm2996 = vweird.f32 %v2787
      %vm2997 = vweird.f32 %v2990
      %vm2998 = vmor %vm2996, %vm2997
      %v2999 = vsel %vm2998, %v2990, %v2995
      %v3000 = vrsqrt.pop %v2788
      %v3001 = vmul.f32 %v3000, %v2788
      %v3002 = vmul.f32 %v3001, %v3000
      %v3003 = vmul.f32 0.5, %v3002
      %v3004 = vsub.f32 1.5, %v3003
      %v3005 = vmul.f32 %v3000, %v3004
      %vm3006 = vweird.f32 %v2788
      %vm3007 = vweird.f32 %v3000
      %vm3008 = vmor %vm3006, %vm3007
      %v3009 = vsel %vm3008, %v3000, %v3005
      %v3010 = vrsqrt.pop %v2789
      %v3011 = vmul.f32 %v3010, %v2789
      %v3012 = vmul.f32 %v3011, %v3010
      %v3013 = vmul.f32 0.5, %v3012
      %v3014 = vsub.f32 1.5, %v3013
      %v3015 = vmul.f32 %v3010, %v3014
      %vm3016 = vweird.f32 %v2789
      %vm3017 = vweird.f32 %v3010
      %vm3018 = vmor %vm3016, %vm3017
      %v3019 = vsel %vm3018, %v3010, %v3015
      %v3020 = vrsqrt.pop %v2790
      %v3021 = vmul.f32 %v3020, %v2790
      %v3022 = vmul.f32 %v3021, %v3020
      %v3023 = vmul.f32 0.5, %v3022
      %v3024 = vsub.f32 1.5, %v3023
      %v3025 = vmul.f32 %v3020, %v3024
      %vm3026 = vweird.f32 %v2790
      %vm3027 = vweird.f32 %v3020
      %vm3028 = vmor %vm3026, %vm3027
      %v3029 = vsel %vm3028, %v3020, %v3025
      %v3030 = vrsqrt.pop %v2791
      %v3031 = vmul.f32 %v3030, %v2791
      %v3032 = vmul.f32 %v3031, %v3030
      %v3033 = vmul.f32 0.5, %v3032
      %v3034 = vsub.f32 1.5, %v3033
      %v3035 = vmul.f32 %v3030, %v3034
      %vm3036 = vweird.f32 %v2791
      %vm3037 = vweird.f32 %v3030
      %vm3038 = vmor %vm3036, %vm3037
      %v3039 = vsel %vm3038, %v3030, %v3035
      %v3040 = vrsqrt.pop %v2792
      %v3041 = vmul.f32 %v3040, %v2792
      %v3042 = vmul.f32 %v3041, %v3040
      %v3043 = vmul.f32 0.5, %v3042
      %v3044 = vsub.f32 1.5, %v3043
      %v3045 = vmul.f32 %v3040, %v3044
      %vm3046 = vweird.f32 %v2792
      %vm3047 = vweird.f32 %v3040
      %vm3048 = vmor %vm3046, %vm3047
      %v3049 = vsel %vm3048, %v3040, %v3045
      %v3050 = vrsqrt.pop %v2793
      %v3051 = vmul.f32 %v3050, %v2793
      %v3052 = vmul.f32 %v3051, %v3050
      %v3053 = vmul.f32 0.5, %v3052
      %v3054 = vsub.f32 1.5, %v3053
      %v3055 = vmul.f32 %v3050, %v3054
      %vm3056 = vweird.f32 %v2793
      %vm3057 = vweird.f32 %v3050
      %vm3058 = vmor %vm3056, %vm3057
      %v3059 = vsel %vm3058, %v3050, %v3055
      %v3060 = vrsqrt.pop %v2794
      %v3061 = vmul.f32 %v3060, %v2794
      %v3062 = vmul.f32 %v3061, %v3060
      %v3063 = vmul.f32 0.5, %v3062
      %v3064 = vsub.f32 1.5, %v3063
      %v3065 = vmul.f32 %v3060, %v3064
      %vm3066 = vweird.f32 %v2794
      %vm3067 = vweird.f32 %v3060
      %vm3068 = vmor %vm3066, %vm3067
      %v3069 = vsel %vm3068, %v3060, %v3065
      %v3070 = vrsqrt.pop %v2795
      %v3071 = vmul.f32 %v3070, %v2795
      %v3072 = vmul.f32 %v3071, %v3070
      %v3073 = vmul.f32 0.5, %v3072
      %v3074 = vsub.f32 1.5, %v3073
      %v3075 = vmul.f32 %v3070, %v3074
      %vm3076 = vweird.f32 %v2795
      %vm3077 = vweird.f32 %v3070
      %vm3078 = vmor %vm3076, %vm3077
      %v3079 = vsel %vm3078, %v3070, %v3075
      %v3080 = vrsqrt.pop %v2796
      %v3081 = vmul.f32 %v3080, %v2796
      %v3082 = vmul.f32 %v3081, %v3080
      %v3083 = vmul.f32 0.5, %v3082
      %v3084 = vsub.f32 1.5, %v3083
      %v3085 = vmul.f32 %v3080, %v3084
      %vm3086 = vweird.f32 %v2796
      %vm3087 = vweird.f32 %v3080
      %vm3088 = vmor %vm3086, %vm3087
      %v3089 = vsel %vm3088, %v3080, %v3085
      %v3090 = vrsqrt.pop %v2797
      %v3091 = vmul.f32 %v3090, %v2797
      %v3092 = vmul.f32 %v3091, %v3090
      %v3093 = vmul.f32 0.5, %v3092
      %v3094 = vsub.f32 1.5, %v3093
      %v3095 = vmul.f32 %v3090, %v3094
      %vm3096 = vweird.f32 %v2797
      %vm3097 = vweird.f32 %v3090
      %vm3098 = vmor %vm3096, %vm3097
      %v3099 = vsel %vm3098, %v3090, %v3095
      %v3100 = vrsqrt.pop %v2798
      %v3101 = vmul.f32 %v3100, %v2798
      %v3102 = vmul.f32 %v3101, %v3100
      %v3103 = vmul.f32 0.5, %v3102
      %v3104 = vsub.f32 1.5, %v3103
      %v3105 = vmul.f32 %v3100, %v3104
      %vm3106 = vweird.f32 %v2798
      %vm3107 = vweird.f32 %v3100
      %vm3108 = vmor %vm3106, %vm3107
      %v3109 = vsel %vm3108, %v3100, %v3105
      %v3110 = vrsqrt.pop %v2799
      %v3111 = vmul.f32 %v3110, %v2799
      %v3112 = vmul.f32 %v3111, %v3110
      %v3113 = vmul.f32 0.5, %v3112
      %v3114 = vsub.f32 1.5, %v3113
      %v3115 = vmul.f32 %v3110, %v3114
      %vm3116 = vweird.f32 %v2799
      %vm3117 = vweird.f32 %v3110
      %vm3118 = vmor %vm3116, %vm3117
      %v3119 = vsel %vm3118, %v3110, %v3115
      %v3120 = vmul.f32 %v2384, %v2809
      %v3121 = vmul.f32 %v2385, %v2819
      %v3122 = vmul.f32 %v2386, %v2829
      %v3123 = vmul.f32 %v2387, %v2839
      %v3124 = vmul.f32 %v2388, %v2849
      %v3125 = vmul.f32 %v2389, %v2859
      %v3126 = vmul.f32 %v2390, %v2869
      %v3127 = vmul.f32 %v2391, %v2879
      %v3128 = vmul.f32 %v2392, %v2889
      %v3129 = vmul.f32 %v2393, %v2899
      %v3130 = vmul.f32 %v2394, %v2909
      %v3131 = vmul.f32 %v2395, %v2919
      %v3132 = vmul.f32 %v2396, %v2929
      %v3133 = vmul.f32 %v2397, %v2939
      %v3134 = vmul.f32 %v2398, %v2949
      %v3135 = vmul.f32 %v2399, %v2959
      %v3136 = vmul.f32 %v2400, %v2969
      %v3137 = vmul.f32 %v2401, %v2979
      %v3138 = vmul.f32 %v2402, %v2989
      %v3139 = vmul.f32 %v2403, %v2999
      %v3140 = vmul.f32 %v2404, %v3009
      %v3141 = vmul.f32 %v2405, %v3019
      %v3142 = vmul.f32 %v2406, %v3029
      %v3143 = vmul.f32 %v2407, %v3039
      %v3144 = vmul.f32 %v2408, %v3049
      %v3145 = vmul.f32 %v2409, %v3059
      %v3146 = vmul.f32 %v2410, %v3069
      %v3147 = vmul.f32 %v2411, %v3079
      %v3148 = vmul.f32 %v2412, %v3089
      %v3149 = vmul.f32 %v2413, %v3099
      %v3150 = vmul.f32 %v2414, %v3109
      %v3151 = vmul.f32 %v2415, %v3119
      %v3152 = vld [vmem:[%s4] sm:$0x1]
      %v3154 = vperm.slane %v3152, 0
      %v3156 = vmul.f32 %v3120, %v3154
      %v3157 = vmul.f32 %v3121, %v3154
      %v3158 = vmul.f32 %v3122, %v3154
      %v3159 = vmul.f32 %v3123, %v3154
      %v3160 = vmul.f32 %v3124, %v3154
      %v3161 = vmul.f32 %v3125, %v3154
      %v3162 = vmul.f32 %v3126, %v3154
      %v3163 = vmul.f32 %v3127, %v3154
      %v3164 = vmul.f32 %v3128, %v3154
      %v3165 = vmul.f32 %v3129, %v3154
      %v3166 = vmul.f32 %v3130, %v3154
      %v3167 = vmul.f32 %v3131, %v3154
      %v3168 = vmul.f32 %v3132, %v3154
      %v3169 = vmul.f32 %v3133, %v3154
      %v3170 = vmul.f32 %v3134, %v3154
      %v3171 = vmul.f32 %v3135, %v3154
      %v3172 = vmul.f32 %v3136, %v3154
      %v3173 = vmul.f32 %v3137, %v3154
      %v3174 = vmul.f32 %v3138, %v3154
      %v3175 = vmul.f32 %v3139, %v3154
      %v3176 = vmul.f32 %v3140, %v3154
      %v3177 = vmul.f32 %v3141, %v3154
      %v3178 = vmul.f32 %v3142, %v3154
      %v3179 = vmul.f32 %v3143, %v3154
      %v3180 = vmul.f32 %v3144, %v3154
      %v3181 = vmul.f32 %v3145, %v3154
      %v3182 = vmul.f32 %v3146, %v3154
      %v3183 = vmul.f32 %v3147, %v3154
      %v3184 = vmul.f32 %v3148, %v3154
      %v3185 = vmul.f32 %v3149, %v3154
      %v3186 = vmul.f32 %v3150, %v3154
      %v3187 = vmul.f32 %v3151, %v3154
      %v3188 = vld [vmem:[%s5] sm:$0x1]
      %v3190 = vperm.slane %v3188, 0
      %v3192 = vadd.f32 %v3156, %v3190
      %v3193 = vadd.f32 %v3157, %v3190
      %v3194 = vadd.f32 %v3158, %v3190
      %v3195 = vadd.f32 %v3159, %v3190
      %v3196 = vadd.f32 %v3160, %v3190
      %v3197 = vadd.f32 %v3161, %v3190
      %v3198 = vadd.f32 %v3162, %v3190
      %v3199 = vadd.f32 %v3163, %v3190
      %v3200 = vadd.f32 %v3164, %v3190
      %v3201 = vadd.f32 %v3165, %v3190
      %v3202 = vadd.f32 %v3166, %v3190
      %v3203 = vadd.f32 %v3167, %v3190
      %v3204 = vadd.f32 %v3168, %v3190
      %v3205 = vadd.f32 %v3169, %v3190
      %v3206 = vadd.f32 %v3170, %v3190
      %v3207 = vadd.f32 %v3171, %v3190
      %v3208 = vadd.f32 %v3172, %v3190
      %v3209 = vadd.f32 %v3173, %v3190
      %v3210 = vadd.f32 %v3174, %v3190
      %v3211 = vadd.f32 %v3175, %v3190
      %v3212 = vadd.f32 %v3176, %v3190
      %v3213 = vadd.f32 %v3177, %v3190
      %v3214 = vadd.f32 %v3178, %v3190
      %v3215 = vadd.f32 %v3179, %v3190
      %v3216 = vadd.f32 %v3180, %v3190
      %v3217 = vadd.f32 %v3181, %v3190
      %v3218 = vadd.f32 %v3182, %v3190
      %v3219 = vadd.f32 %v3183, %v3190
      %v3220 = vadd.f32 %v3184, %v3190
      %v3221 = vadd.f32 %v3185, %v3190
      %v3222 = vadd.f32 %v3186, %v3190
      %v3223 = vadd.f32 %v3187, %v3190
      %v3224 = vmul.f32 %v2416, %v2809
      %v3225 = vmul.f32 %v2417, %v2819
      %v3226 = vmul.f32 %v2418, %v2829
      %v3227 = vmul.f32 %v2419, %v2839
      %v3228 = vmul.f32 %v2420, %v2849
      %v3229 = vmul.f32 %v2421, %v2859
      %v3230 = vmul.f32 %v2422, %v2869
      %v3231 = vmul.f32 %v2423, %v2879
      %v3232 = vmul.f32 %v2424, %v2889
      %v3233 = vmul.f32 %v2425, %v2899
      %v3234 = vmul.f32 %v2426, %v2909
      %v3235 = vmul.f32 %v2427, %v2919
      %v3236 = vmul.f32 %v2428, %v2929
      %v3237 = vmul.f32 %v2429, %v2939
      %v3238 = vmul.f32 %v2430, %v2949
      %v3239 = vmul.f32 %v2431, %v2959
      %v3240 = vmul.f32 %v2432, %v2969
      %v3241 = vmul.f32 %v2433, %v2979
      %v3242 = vmul.f32 %v2434, %v2989
      %v3243 = vmul.f32 %v2435, %v2999
      %v3244 = vmul.f32 %v2436, %v3009
      %v3245 = vmul.f32 %v2437, %v3019
      %v3246 = vmul.f32 %v2438, %v3029
      %v3247 = vmul.f32 %v2439, %v3039
      %v3248 = vmul.f32 %v2440, %v3049
      %v3249 = vmul.f32 %v2441, %v3059
      %v3250 = vmul.f32 %v2442, %v3069
      %v3251 = vmul.f32 %v2443, %v3079
      %v3252 = vmul.f32 %v2444, %v3089
      %v3253 = vmul.f32 %v2445, %v3099
      %v3254 = vmul.f32 %v2446, %v3109
      %v3255 = vmul.f32 %v2447, %v3119
      %v3256 = vld [vmem:[%s6] sm:$0x1]
      %v3258 = vperm.slane %v3256, 0
      %v3260 = vmul.f32 %v3224, %v3258
      %v3261 = vmul.f32 %v3225, %v3258
      %v3262 = vmul.f32 %v3226, %v3258
      %v3263 = vmul.f32 %v3227, %v3258
      %v3264 = vmul.f32 %v3228, %v3258
      %v3265 = vmul.f32 %v3229, %v3258
      %v3266 = vmul.f32 %v3230, %v3258
      %v3267 = vmul.f32 %v3231, %v3258
      %v3268 = vmul.f32 %v3232, %v3258
      %v3269 = vmul.f32 %v3233, %v3258
      %v3270 = vmul.f32 %v3234, %v3258
      %v3271 = vmul.f32 %v3235, %v3258
      %v3272 = vmul.f32 %v3236, %v3258
      %v3273 = vmul.f32 %v3237, %v3258
      %v3274 = vmul.f32 %v3238, %v3258
      %v3275 = vmul.f32 %v3239, %v3258
      %v3276 = vmul.f32 %v3240, %v3258
      %v3277 = vmul.f32 %v3241, %v3258
      %v3278 = vmul.f32 %v3242, %v3258
      %v3279 = vmul.f32 %v3243, %v3258
      %v3280 = vmul.f32 %v3244, %v3258
      %v3281 = vmul.f32 %v3245, %v3258
      %v3282 = vmul.f32 %v3246, %v3258
      %v3283 = vmul.f32 %v3247, %v3258
      %v3284 = vmul.f32 %v3248, %v3258
      %v3285 = vmul.f32 %v3249, %v3258
      %v3286 = vmul.f32 %v3250, %v3258
      %v3287 = vmul.f32 %v3251, %v3258
      %v3288 = vmul.f32 %v3252, %v3258
      %v3289 = vmul.f32 %v3253, %v3258
      %v3290 = vmul.f32 %v3254, %v3258
      %v3291 = vmul.f32 %v3255, %v3258
      %v3292 = vld [vmem:[%s7] sm:$0x1]
      %v3294 = vperm.slane %v3292, 0
      %v3296 = vadd.f32 %v3260, %v3294
      %v3297 = vadd.f32 %v3261, %v3294
      %v3298 = vadd.f32 %v3262, %v3294
      %v3299 = vadd.f32 %v3263, %v3294
      %v3300 = vadd.f32 %v3264, %v3294
      %v3301 = vadd.f32 %v3265, %v3294
      %v3302 = vadd.f32 %v3266, %v3294
      %v3303 = vadd.f32 %v3267, %v3294
      %v3304 = vadd.f32 %v3268, %v3294
      %v3305 = vadd.f32 %v3269, %v3294
      %v3306 = vadd.f32 %v3270, %v3294
      %v3307 = vadd.f32 %v3271, %v3294
      %v3308 = vadd.f32 %v3272, %v3294
      %v3309 = vadd.f32 %v3273, %v3294
      %v3310 = vadd.f32 %v3274, %v3294
      %v3311 = vadd.f32 %v3275, %v3294
      %v3312 = vadd.f32 %v3276, %v3294
      %v3313 = vadd.f32 %v3277, %v3294
      %v3314 = vadd.f32 %v3278, %v3294
      %v3315 = vadd.f32 %v3279, %v3294
      %v3316 = vadd.f32 %v3280, %v3294
      %v3317 = vadd.f32 %v3281, %v3294
      %v3318 = vadd.f32 %v3282, %v3294
      %v3319 = vadd.f32 %v3283, %v3294
      %v3320 = vadd.f32 %v3284, %v3294
      %v3321 = vadd.f32 %v3285, %v3294
      %v3322 = vadd.f32 %v3286, %v3294
      %v3323 = vadd.f32 %v3287, %v3294
      %v3324 = vadd.f32 %v3288, %v3294
      %v3325 = vadd.f32 %v3289, %v3294
      %v3326 = vadd.f32 %v3290, %v3294
      %v3327 = vadd.f32 %v3291, %v3294
      %v3328 = vpack.c.bf16 %v3193, %v3192
      %v3329 = vpack.c.bf16 %v3195, %v3194
      %v3330 = vpack.c.bf16 %v3197, %v3196
      %v3331 = vpack.c.bf16 %v3199, %v3198
      %v3332 = vpack.c.bf16 %v3201, %v3200
      %v3333 = vpack.c.bf16 %v3203, %v3202
      %v3334 = vpack.c.bf16 %v3205, %v3204
      %v3335 = vpack.c.bf16 %v3207, %v3206
      %v3336 = vpack.c.bf16 %v3209, %v3208
      %v3337 = vpack.c.bf16 %v3211, %v3210
      %v3338 = vpack.c.bf16 %v3213, %v3212
      %v3339 = vpack.c.bf16 %v3215, %v3214
      %v3340 = vpack.c.bf16 %v3217, %v3216
      %v3341 = vpack.c.bf16 %v3219, %v3218
      %v3342 = vpack.c.bf16 %v3221, %v3220
      %v3343 = vpack.c.bf16 %v3223, %v3222
      %v3344 = vld [vmem:[%s8] sm:$0x3]
      %v3345 = vpack.c.bf16 %v3297, %v3296
      %v3346 = vpack.c.bf16 %v3299, %v3298
      %v3347 = vpack.c.bf16 %v3301, %v3300
      %v3348 = vpack.c.bf16 %v3303, %v3302
      %v3349 = vpack.c.bf16 %v3305, %v3304
      %v3350 = vpack.c.bf16 %v3307, %v3306
      %v3351 = vpack.c.bf16 %v3309, %v3308
      %v3352 = vpack.c.bf16 %v3311, %v3310
      %v3353 = vpack.c.bf16 %v3313, %v3312
      %v3354 = vpack.c.bf16 %v3315, %v3314
      %v3355 = vpack.c.bf16 %v3317, %v3316
      %v3356 = vpack.c.bf16 %v3319, %v3318
      %v3357 = vpack.c.bf16 %v3321, %v3320
      %v3358 = vpack.c.bf16 %v3323, %v3322
      %v3359 = vpack.c.bf16 %v3325, %v3324
      %v3360 = vpack.c.bf16 %v3327, %v3326
      %v3361 = vld [vmem:[%s9] sm:$0x3]
      %v3363 = vsel %vm626, %v3345, 0
      %v3366 = vsel %vm626, %v3346, 0
      %v3369 = vsel %vm626, %v3347, 0
      %v3372 = vsel %vm626, %v3348, 0
      %v3375 = vsel %vm626, %v3349, 0
      %v3378 = vsel %vm626, %v3350, 0
      %v3381 = vsel %vm626, %v3351, 0
      %v3384 = vsel %vm626, %v3352, 0
      %v3387 = vsel %vm626, %v3353, 0
      %v3390 = vsel %vm626, %v3354, 0
      %v3393 = vsel %vm626, %v3355, 0
      %v3396 = vsel %vm626, %v3356, 0
      %v3399 = vsel %vm626, %v3357, 0
      %v3402 = vsel %vm626, %v3358, 0
      %v3405 = vsel %vm626, %v3359, 0
      %v3408 = vsel %vm626, %v3360, 0
      %vm3410 = vcmask 1041408
      %v3412 = vsel %vm3410, %v3361, 0
      %3414 = vmatpush.bf16.msra.mxu0 0
      %3415 = vmatpush.bf16.msra.mxu0 0
      %3416 = vmatpush.bf16.msra.mxu0 0
      %3417 = vmatpush.bf16.msra.mxu0 0
      %3418 = vmatpush.bf16.msra.mxu0 0
      %3419 = vmatpush.bf16.msra.mxu0 0
      %3420 = vmatpush.bf16.msra.mxu0 0
      %3421 = vmatpush.bf16.msra.mxu0 %v3412
      %3422 = vmatmul.bf16.gmra.mxu0 %v3363
      %v3423 = vpop.f32.mrf.mxu0
      %v3424 = vadd.f32 0.0, %v3423
      %v3425 = vpop.f32.mrf.mxu0
      %v3426 = vadd.f32 0.0, %v3425
      %3427 = vmatmul.bf16.gmra.mxu0 %v3366
      %v3428 = vpop.f32.mrf.mxu0
      %v3429 = vadd.f32 0.0, %v3428
      %v3430 = vpop.f32.mrf.mxu0
      %v3431 = vadd.f32 0.0, %v3430
      %3432 = vmatmul.bf16.gmra.mxu0 %v3369
      %v3433 = vpop.f32.mrf.mxu0
      %v3434 = vadd.f32 0.0, %v3433
      %v3435 = vpop.f32.mrf.mxu0
      %v3436 = vadd.f32 0.0, %v3435
      %3437 = vmatmul.bf16.gmra.mxu0 %v3372
      %v3438 = vpop.f32.mrf.mxu0
      %v3439 = vadd.f32 0.0, %v3438
      %v3440 = vpop.f32.mrf.mxu0
      %v3441 = vadd.f32 0.0, %v3440
      %3442 = vmatmul.bf16.gmra.mxu0 %v3375
      %v3443 = vpop.f32.mrf.mxu0
      %v3444 = vadd.f32 0.0, %v3443
      %v3445 = vpop.f32.mrf.mxu0
      %v3446 = vadd.f32 0.0, %v3445
      %3447 = vmatmul.bf16.gmra.mxu0 %v3378
      %v3448 = vpop.f32.mrf.mxu0
      %v3449 = vadd.f32 0.0, %v3448
      %v3450 = vpop.f32.mrf.mxu0
      %v3451 = vadd.f32 0.0, %v3450
      %3452 = vmatmul.bf16.gmra.mxu0 %v3381
      %v3453 = vpop.f32.mrf.mxu0
      %v3454 = vadd.f32 0.0, %v3453
      %v3455 = vpop.f32.mrf.mxu0
      %v3456 = vadd.f32 0.0, %v3455
      %3457 = vmatmul.bf16.gmra.mxu0 %v3384
      %v3458 = vpop.f32.mrf.mxu0
      %v3459 = vadd.f32 0.0, %v3458
      %v3460 = vpop.f32.mrf.mxu0
      %v3461 = vadd.f32 0.0, %v3460
      %3462 = vmatmul.bf16.gmra.mxu0 %v3387
      %v3463 = vpop.f32.mrf.mxu0
      %v3464 = vadd.f32 0.0, %v3463
      %v3465 = vpop.f32.mrf.mxu0
      %v3466 = vadd.f32 0.0, %v3465
      %3467 = vmatmul.bf16.gmra.mxu0 %v3390
      %v3468 = vpop.f32.mrf.mxu0
      %v3469 = vadd.f32 0.0, %v3468
      %v3470 = vpop.f32.mrf.mxu0
      %v3471 = vadd.f32 0.0, %v3470
      %3472 = vmatmul.bf16.gmra.mxu0 %v3393
      %v3473 = vpop.f32.mrf.mxu0
      %v3474 = vadd.f32 0.0, %v3473
      %v3475 = vpop.f32.mrf.mxu0
      %v3476 = vadd.f32 0.0, %v3475
      %3477 = vmatmul.bf16.gmra.mxu0 %v3396
      %v3478 = vpop.f32.mrf.mxu0
      %v3479 = vadd.f32 0.0, %v3478
      %v3480 = vpop.f32.mrf.mxu0
      %v3481 = vadd.f32 0.0, %v3480
      %3482 = vmatmul.bf16.gmra.mxu0 %v3399
      %v3483 = vpop.f32.mrf.mxu0
      %v3484 = vadd.f32 0.0, %v3483
      %v3485 = vpop.f32.mrf.mxu0
      %v3486 = vadd.f32 0.0, %v3485
      %3487 = vmatmul.bf16.gmra.mxu0 %v3402
      %v3488 = vpop.f32.mrf.mxu0
      %v3489 = vadd.f32 0.0, %v3488
      %v3490 = vpop.f32.mrf.mxu0
      %v3491 = vadd.f32 0.0, %v3490
      %3492 = vmatmul.bf16.gmra.mxu0 %v3405
      %v3493 = vpop.f32.mrf.mxu0
      %v3494 = vadd.f32 0.0, %v3493
      %v3495 = vpop.f32.mrf.mxu0
      %v3496 = vadd.f32 0.0, %v3495
      %3497 = vmatmul.bf16.gmra.mxu0 %v3408
      %v3498 = vpop.f32.mrf.mxu0
      %v3499 = vadd.f32 0.0, %v3498
      %v3500 = vpop.f32.mrf.mxu0
      %v3501 = vadd.f32 0.0, %v3500
      %3502 = vdwg.mxu0
      %v3504 = vsel %vm626, %v3328, 0
      %v3507 = vsel %vm626, %v3329, 0
      %v3510 = vsel %vm626, %v3330, 0
      %v3513 = vsel %vm626, %v3331, 0
      %v3516 = vsel %vm626, %v3332, 0
      %v3519 = vsel %vm626, %v3333, 0
      %v3522 = vsel %vm626, %v3334, 0
      %v3525 = vsel %vm626, %v3335, 0
      %v3528 = vsel %vm626, %v3336, 0
      %v3531 = vsel %vm626, %v3337, 0
      %v3534 = vsel %vm626, %v3338, 0
      %v3537 = vsel %vm626, %v3339, 0
      %v3540 = vsel %vm626, %v3340, 0
      %v3543 = vsel %vm626, %v3341, 0
      %v3546 = vsel %vm626, %v3342, 0
      %v3549 = vsel %vm626, %v3343, 0
      %v3552 = vsel %vm3410, %v3344, 0
      %3554 = vmatpush.bf16.msra.mxu0 0
      %3555 = vmatpush.bf16.msra.mxu0 0
      %3556 = vmatpush.bf16.msra.mxu0 0
      %3557 = vmatpush.bf16.msra.mxu0 0
      %3558 = vmatpush.bf16.msra.mxu0 0
      %3559 = vmatpush.bf16.msra.mxu0 0
      %3560 = vmatpush.bf16.msra.mxu0 0
      %3561 = vmatpush.bf16.msra.mxu0 %v3552
      %3562 = vmatmul.bf16.gmra.mxu0 %v3504
      %v3563 = vpop.f32.mrf.mxu0
      %v3564 = vadd.f32 %v3424, %v3563
      %v3565 = vpop.f32.mrf.mxu0
      %v3566 = vadd.f32 %v3426, %v3565
      %3567 = vmatmul.bf16.gmra.mxu0 %v3507
      %v3568 = vpop.f32.mrf.mxu0
      %v3569 = vadd.f32 %v3429, %v3568
      %v3570 = vpop.f32.mrf.mxu0
      %v3571 = vadd.f32 %v3431, %v3570
      %3572 = vmatmul.bf16.gmra.mxu0 %v3510
      %v3573 = vpop.f32.mrf.mxu0
      %v3574 = vadd.f32 %v3434, %v3573
      %v3575 = vpop.f32.mrf.mxu0
      %v3576 = vadd.f32 %v3436, %v3575
      %3577 = vmatmul.bf16.gmra.mxu0 %v3513
      %v3578 = vpop.f32.mrf.mxu0
      %v3579 = vadd.f32 %v3439, %v3578
      %v3580 = vpop.f32.mrf.mxu0
      %v3581 = vadd.f32 %v3441, %v3580
      %3582 = vmatmul.bf16.gmra.mxu0 %v3516
      %v3583 = vpop.f32.mrf.mxu0
      %v3584 = vadd.f32 %v3444, %v3583
      %v3585 = vpop.f32.mrf.mxu0
      %v3586 = vadd.f32 %v3446, %v3585
      %3587 = vmatmul.bf16.gmra.mxu0 %v3519
      %v3588 = vpop.f32.mrf.mxu0
      %v3589 = vadd.f32 %v3449, %v3588
      %v3590 = vpop.f32.mrf.mxu0
      %v3591 = vadd.f32 %v3451, %v3590
      %3592 = vmatmul.bf16.gmra.mxu0 %v3522
      %v3593 = vpop.f32.mrf.mxu0
      %v3594 = vadd.f32 %v3454, %v3593
      %v3595 = vpop.f32.mrf.mxu0
      %v3596 = vadd.f32 %v3456, %v3595
      %3597 = vmatmul.bf16.gmra.mxu0 %v3525
      %v3598 = vpop.f32.mrf.mxu0
      %v3599 = vadd.f32 %v3459, %v3598
      %v3600 = vpop.f32.mrf.mxu0
      %v3601 = vadd.f32 %v3461, %v3600
      %3602 = vmatmul.bf16.gmra.mxu0 %v3528
      %v3603 = vpop.f32.mrf.mxu0
      %v3604 = vadd.f32 %v3464, %v3603
      %v3605 = vpop.f32.mrf.mxu0
      %v3606 = vadd.f32 %v3466, %v3605
      %3607 = vmatmul.bf16.gmra.mxu0 %v3531
      %v3608 = vpop.f32.mrf.mxu0
      %v3609 = vadd.f32 %v3469, %v3608
      %v3610 = vpop.f32.mrf.mxu0
      %v3611 = vadd.f32 %v3471, %v3610
      %3612 = vmatmul.bf16.gmra.mxu0 %v3534
      %v3613 = vpop.f32.mrf.mxu0
      %v3614 = vadd.f32 %v3474, %v3613
      %v3615 = vpop.f32.mrf.mxu0
      %v3616 = vadd.f32 %v3476, %v3615
      %3617 = vmatmul.bf16.gmra.mxu0 %v3537
      %v3618 = vpop.f32.mrf.mxu0
      %v3619 = vadd.f32 %v3479, %v3618
      %v3620 = vpop.f32.mrf.mxu0
      %v3621 = vadd.f32 %v3481, %v3620
      %3622 = vmatmul.bf16.gmra.mxu0 %v3540
      %v3623 = vpop.f32.mrf.mxu0
      %v3624 = vadd.f32 %v3484, %v3623
      %v3625 = vpop.f32.mrf.mxu0
      %v3626 = vadd.f32 %v3486, %v3625
      %3627 = vmatmul.bf16.gmra.mxu0 %v3543
      %v3628 = vpop.f32.mrf.mxu0
      %v3629 = vadd.f32 %v3489, %v3628
      %v3630 = vpop.f32.mrf.mxu0
      %v3631 = vadd.f32 %v3491, %v3630
      %3632 = vmatmul.bf16.gmra.mxu0 %v3546
      %v3633 = vpop.f32.mrf.mxu0
      %v3634 = vadd.f32 %v3494, %v3633
      %v3635 = vpop.f32.mrf.mxu0
      %v3636 = vadd.f32 %v3496, %v3635
      %3637 = vmatmul.bf16.gmra.mxu0 %v3549
      %v3638 = vpop.f32.mrf.mxu0
      %v3639 = vadd.f32 %v3499, %v3638
      %v3640 = vpop.f32.mrf.mxu0
      %v3641 = vadd.f32 %v3501, %v3640
      %3642 = vdwg.mxu0
      %v3643 = vld [vmem:[%s10] sm:$0x1]
      %v3645 = vperm.slane %v3643, 0
      %v3647 = vadd.f32 %v3564, %v3645
      %v3648 = vadd.f32 %v3566, %v3645
      %v3649 = vadd.f32 %v3569, %v3645
      %v3650 = vadd.f32 %v3571, %v3645
      %v3651 = vadd.f32 %v3574, %v3645
      %v3652 = vadd.f32 %v3576, %v3645
      %v3653 = vadd.f32 %v3579, %v3645
      %v3654 = vadd.f32 %v3581, %v3645
      %v3655 = vadd.f32 %v3584, %v3645
      %v3656 = vadd.f32 %v3586, %v3645
      %v3657 = vadd.f32 %v3589, %v3645
      %v3658 = vadd.f32 %v3591, %v3645
      %v3659 = vadd.f32 %v3594, %v3645
      %v3660 = vadd.f32 %v3596, %v3645
      %v3661 = vadd.f32 %v3599, %v3645
      %v3662 = vadd.f32 %v3601, %v3645
      %v3663 = vadd.f32 %v3604, %v3645
      %v3664 = vadd.f32 %v3606, %v3645
      %v3665 = vadd.f32 %v3609, %v3645
      %v3666 = vadd.f32 %v3611, %v3645
      %v3667 = vadd.f32 %v3614, %v3645
      %v3668 = vadd.f32 %v3616, %v3645
      %v3669 = vadd.f32 %v3619, %v3645
      %v3670 = vadd.f32 %v3621, %v3645
      %v3671 = vadd.f32 %v3624, %v3645
      %v3672 = vadd.f32 %v3626, %v3645
      %v3673 = vadd.f32 %v3629, %v3645
      %v3674 = vadd.f32 %v3631, %v3645
      %v3675 = vadd.f32 %v3634, %v3645
      %v3676 = vadd.f32 %v3636, %v3645
      %v3677 = vadd.f32 %v3639, %v3645
      %v3678 = vadd.f32 %v3641, %v3645
      %3679 = vst.msk [vmem:[%s471] sm:$0xff] %vm628, %v3647
      %3680 = vst.msk [vmem:[%s471 + $0x8] sm:$0xff] %vm628, %v3648
      %3681 = vst.msk [vmem:[%s471 + $0x10] sm:$0xff] %vm628, %v3649
      %3682 = vst.msk [vmem:[%s471 + $0x18] sm:$0xff] %vm628, %v3650
      %3683 = vst.msk [vmem:[%s471 + $0x20] sm:$0xff] %vm628, %v3651
      %3684 = vst.msk [vmem:[%s471 + $0x28] sm:$0xff] %vm628, %v3652
      %3685 = vst.msk [vmem:[%s471 + $0x30] sm:$0xff] %vm628, %v3653
      %3686 = vst.msk [vmem:[%s471 + $0x38] sm:$0xff] %vm628, %v3654
      %3687 = vst.msk [vmem:[%s471 + $0x40] sm:$0xff] %vm628, %v3655
      %3688 = vst.msk [vmem:[%s471 + $0x48] sm:$0xff] %vm628, %v3656
      %3689 = vst.msk [vmem:[%s471 + $0x50] sm:$0xff] %vm628, %v3657
      %3690 = vst.msk [vmem:[%s471 + $0x58] sm:$0xff] %vm628, %v3658
      %3691 = vst.msk [vmem:[%s471 + $0x60] sm:$0xff] %vm628, %v3659
      %3692 = vst.msk [vmem:[%s471 + $0x68] sm:$0xff] %vm628, %v3660
      %3693 = vst.msk [vmem:[%s471 + $0x70] sm:$0xff] %vm628, %v3661
      %3694 = vst.msk [vmem:[%s471 + $0x78] sm:$0xff] %vm628, %v3662
      %3695 = vst.msk [vmem:[%s471 + $0x80] sm:$0xff] %vm628, %v3663
      %3696 = vst.msk [vmem:[%s471 + $0x88] sm:$0xff] %vm628, %v3664
      %3697 = vst.msk [vmem:[%s471 + $0x90] sm:$0xff] %vm628, %v3665
      %3698 = vst.msk [vmem:[%s471 + $0x98] sm:$0xff] %vm628, %v3666
      %3699 = vst.msk [vmem:[%s471 + $0xa0] sm:$0xff] %vm628, %v3667
      %3700 = vst.msk [vmem:[%s471 + $0xa8] sm:$0xff] %vm628, %v3668
      %3701 = vst.msk [vmem:[%s471 + $0xb0] sm:$0xff] %vm628, %v3669
      %3702 = vst.msk [vmem:[%s471 + $0xb8] sm:$0xff] %vm628, %v3670
      %3703 = vst.msk [vmem:[%s471 + $0xc0] sm:$0xff] %vm628, %v3671
      %3704 = vst.msk [vmem:[%s471 + $0xc8] sm:$0xff] %vm628, %v3672
      %3705 = vst.msk [vmem:[%s471 + $0xd0] sm:$0xff] %vm628, %v3673
      %3706 = vst.msk [vmem:[%s471 + $0xd8] sm:$0xff] %vm628, %v3674
      %3707 = vst.msk [vmem:[%s471 + $0xe0] sm:$0xff] %vm628, %v3675
      %3708 = vst.msk [vmem:[%s471 + $0xe8] sm:$0xff] %vm628, %v3676
      %3709 = vst.msk [vmem:[%s471 + $0xf0] sm:$0xff] %vm628, %v3677
      %3710 = vst.msk [vmem:[%s471 + $0xf8] sm:$0xff] %vm628, %v3678
      %s3711 = smul.u32 16, %s27
      %p3712 = scmp.lt.s32.totalorder %s26, 1
      %s3713 = scalar_select %p3712, %s26, 1
      %p3714 = scmp.lt.s32.totalorder %s3711, 15
      %s3715 = scalar_select %p3714, %s3711, 15
      %s3716 = smul.addr %s3715, 2
      %s3717 = smul.addr %s3713, 32
      %s3718 = sadd.s32 %s3716, %s3717
      %s3719 = smul.addr %s3718, 8
      %s3720 = scalar_lea.vmem %s11, %s3719
      // Predicated region
      $region65: #{tpu_custom_call.1} parent=63 // pred_check
        %p3721 = pneg %p302
      $region66: #{tpu_custom_call.1} parent=63 // pred_check_branch
        %3723 = sbr.rel (%p3721) target = $region68
      $region67: #{tpu_custom_call.1} parent=63 // pred_region
        %s3724 = smul.u32 16, %s27
      $region68: #{tpu_custom_call.1} parent=63 // pred_fallthru
        _
    $region64: #{tpu_custom_call.1} parent=5 // pred_fallthru
      _
    %p3725 = scmp.le.s32.totalorder 2, %s17
    // Predicated region
    $region69: #{tpu_custom_call.1} parent=5 // pred_check
      %p3726 = pneg %p3725
    $region70: #{tpu_custom_call.1} parent=5 // pred_check_branch
      %3728 = sbr.rel (%p3726) target = $region72
    $region71: #{tpu_custom_call.1} parent=5 // pred_region
      %s3729 = ssub.s32 %s17, 2
      // Predicated region
      $region73: #{tpu_custom_call.1} parent=71 // pred_check
        %p3730 = pneg %p308
      $region74: #{tpu_custom_call.1} parent=71 // pred_check_branch
        %3732 = sbr.rel (%p3730) target = $region76
      $region75: #{tpu_custom_call.1} parent=71 // pred_region
        %s3733 = smul.u32 16, %s29
        %p3734 = scmp.lt.s32.totalorder %s28, 1
        %s3735 = scalar_select %p3734, %s28, 1
        %p3736 = scmp.lt.s32.totalorder %s3733, 15
        %s3737 = scalar_select %p3736, %s3733, 15
        %s3738 = smul.addr %s3737, 2
        %s3739 = smul.addr %s3735, 32
        %s3740 = sadd.s32 %s3738, %s3739
        %s3741 = smul.addr %s3740, 8
        %s3742 = scalar_lea.vmem %s11, %s3741
      $region76: #{tpu_custom_call.1} parent=71 // pred_fallthru
        _
    $region72: #{tpu_custom_call.1} parent=5 // pred_fallthru
      _
  $region6: #{tpu_custom_call.1} parent=0 // loop_footer
    %s21 = sadd.s32 1, %s17
  $region7: #{tpu_custom_call.1} parent=0 // loop_footer_branch
    %16 = sbr.rel target = $region3
  $region8: #{tpu_custom_call.1} parent=0 // loop_exit
    _

</llo_original>
